<compile_context>
chip_gen: v5e
topology: v5e:2x2
jax: 0.10.0
libtpu: 0.0.40
codegen_flags: <defaults>
</compile_context>

<pallas_src>
import functools

import jax
import jax.numpy as jnp
from jax import lax
from jax.experimental import pallas as pl
from jax.experimental.pallas import tpu as pltpu


# --------------------------- polyphase tap table ---------------------------- #
# ConvTranspose2d(k=4, s=2, p=1): out[o] += in[i] * w[k]  with  o = 2*i - 1 + k.
# Writing an output coordinate as o = 2*m + par (or 4*a + par), the contributing
# taps are the two k of matching parity, reading the input at
#   i = (o + 1 - k) / 2 = m + d   (resp. 2*a + d),   d = (par + 1 - k) // 2.
def _taps(par):
    return [(k, (par + 1 - k) // 2) for k in range(4) if k % 2 == (par + 1) % 2]


# ------------------------------- fused kernel ------------------------------- #
def _decoder_kernel(x_ref, wfc_ref, bfc_ref, w2_ref, b2_ref, w1_ref, b1_ref,
                    o_ref, xbuf, phbuf, *, B, C2, H, W):
    f32 = jnp.float32
    S = H * W                      # 49 flattened spatial positions per 7x7 grid
    BASE = 1 + W                   # lane of spatial (0, 0): 1 guard + 1 halo row
    # Buffer layout: [row = channel*B + batch, lane = 1 + (ih+1)*W + iw] with
    # zero halo rows ih = -1, H and one zero guard lane at each end.

    # Column-wrap masks: the flattened layout has no W halo, so taps that shift
    # by +-1 in W wrap across image rows and must be zeroed at the edge column.
    col = lax.broadcasted_iota(jnp.int32, (1, S), 1) % W
    mask_l = (col != 0).astype(f32)          # W-shift -1 invalid at iw == 0
    mask_r = (col != W - 1).astype(f32)      # W-shift +1 invalid at iw == W-1

    def tap_slice(buf, dm, dn):
        start = BASE + dm * W + dn           # static slice start
        sl = buf[:, start:start + S]
        if dn == -1:
            sl = sl * mask_l
        elif dn == 1:
            sl = sl * mask_r
        return sl

    # Zero the scratch once (also zeroes all halo rows / guard lanes).
    xbuf[...] = jnp.zeros_like(xbuf)
    phbuf[...] = jnp.zeros_like(phbuf)

    # ---- fc: one MXU matmul, written straight into the haloed conv2 input ----
    h = jnp.dot(x_ref[...], wfc_ref[...], preferred_element_type=f32) + bfc_ref[...]
    for ci in range(C2):                     # (B, 49) slab per conv2 input channel
        xbuf[ci * B:(ci + 1) * B, BASE:BASE + S] = h[:, ci * S:(ci + 1) * S]
    xv = xbuf[...]

    # ---- conv2 + ReLU: 4 output parities (p, q), each = sum of 4 tap matmuls ----
    for p in range(2):
        for q in range(2):
            acc = jnp.zeros((b2_ref.shape[0], S), f32)
            for kh, dh in _taps(p):
                for kw, dw in _taps(q):
                    acc = acc + jnp.dot(w2_ref[kh, kw, :, :],
                                        tap_slice(xv, dh, dw),
                                        preferred_element_type=f32)
            phbuf[p, q, :, BASE:BASE + S] = jnp.maximum(acc + b2_ref[...], 0.0)

    phv = [[phbuf[p, q, :, :] for q in range(2)] for p in range(2)]

    # ---- conv1 + tanh: output split into 16 sub-grids (oh = 4a+r, ow = 4b+s);
    #      each sub-grid reads directly from the conv2 phase buffers, so the two
    #      polyphase stages compose with no interleaving pass in between. ----
    for r in range(4):
        for s in range(4):
            acc = jnp.zeros((b1_ref.shape[0], S), f32)
            for kh, e in _taps(r):
                for kw, f in _taps(s):
                    sl = tap_slice(phv[e % 2][f % 2], e // 2, f // 2)
                    acc = acc + jnp.dot(w1_ref[kh, kw, :, :], sl,
                                        preferred_element_type=f32)
            c0 = (4 * r + s) * S
            o_ref[:, c0:c0 + S] = jnp.tanh(acc + b1_ref[...])


# -------------------------------- JAX wrapper -------------------------------- #
def decoder_forward(x, params, capacity):
    c = capacity
    B, L = x.shape
    C2, C1 = 2 * c, c
    H = W = 7
    S = H * W
    F = C2 * S
    NB = (H + 2) * W + 2           # haloed flattened length (63 + 2 guard lanes)
    f32 = jnp.float32

    # ---- wrapper-side weight plumbing (layout only; no activation math) ----
    wfc_t = params["fc_w"].T.astype(f32)             # (L, F), col f = ci*49+ih*7+iw
    bfc = params["fc_b"].reshape(1, F).astype(f32)

    eye_b = jnp.eye(B, dtype=f32)

    def conv_eff(wt):
        # PyTorch ConvTranspose2d weight (Ci, Co, 4, 4) -> per-tap (Co*B, Ci*B)
        # block-diagonal-in-batch matrices: kron(w[:, :, kh, kw].T, I_B).
        ci, co = wt.shape[0], wt.shape[1]
        w = jnp.transpose(wt, (2, 3, 1, 0))                       # (4, 4, Co, Ci)
        w = w[:, :, :, None, :, None] * eye_b[None, None, None, :, None, :]
        return w.reshape(4, 4, co * B, ci * B).astype(f32)

    w2e = conv_eff(params["conv2_w"])                # (4, 4, C1*B, C2*B)
    b2e = jnp.repeat(params["conv2_b"], B).reshape(C1 * B, 1).astype(f32)
    w1e = conv_eff(params["conv1_w"])                # (4, 4, B, C1*B)
    b1e = jnp.repeat(params["conv1_b"], B).reshape(B, 1).astype(f32)

    kern = functools.partial(_decoder_kernel, B=B, C2=C2, H=H, W=W)
    out = pl.pallas_call(
        kern,
        out_shape=jax.ShapeDtypeStruct((B, 16 * S), f32),
        grid=(1,),
        in_specs=[
            pl.BlockSpec((B, L), lambda i: (0, 0)),
            pl.BlockSpec((L, F), lambda i: (0, 0)),
            pl.BlockSpec((1, F), lambda i: (0, 0)),
            pl.BlockSpec((4, 4, C1 * B, C2 * B), lambda i: (0, 0, 0, 0)),
            pl.BlockSpec((C1 * B, 1), lambda i: (0, 0)),
            pl.BlockSpec((4, 4, B, C1 * B), lambda i: (0, 0, 0, 0)),
            pl.BlockSpec((B, 1), lambda i: (0, 0)),
        ],
        out_specs=pl.BlockSpec((B, 16 * S), lambda i: (0, 0)),
        scratch_shapes=[
            pltpu.VMEM((C2 * B, NB), f32),           # haloed conv2 input
            pltpu.VMEM((2, 2, C1 * B, NB), f32),     # conv2 phase outputs (conv1 in)
        ],
        # Toy batch (B=2): one TensorCore.  At real batch sizes, grid over batch
        # groups with dimension_semantics=("parallel",) to use both v7x TCs.
        compiler_params=pltpu.CompilerParams(dimension_semantics=("arbitrary",)),
    )(x.astype(f32), wfc_t, bfc, w2e, b2e, w1e, b1e)

    # Kernel output column layout: (r, s, a, b) -> y[batch, 0, 4a + r, 4b + s].
    y = out.reshape(B, 4, 4, H, W).transpose(0, 3, 1, 4, 2).reshape(B, 4 * H, 4 * W)
    return y[:, None, :, :]


# ---------------------- deterministic parameter creation --------------------- #
def init_params(key, capacity, latent_dims):
    c = capacity
    ks = jax.random.split(key, 6)

    def u(k, shape, fan_in):
        bound = 1.0 / jnp.sqrt(jnp.asarray(fan_in, jnp.float32))
        return jax.random.uniform(k, shape, jnp.float32, -bound, bound)

    fc_out = c * 2 * 7 * 7
    return dict(
        fc_w=u(ks[0], (fc_out, latent_dims), latent_dims),        # PyTorch (out, in)
        fc_b=u(ks[1], (fc_out,), latent_dims),
        conv2_w=u(ks[2], (c * 2, c, 4, 4), c * 2 * 4 * 4),        # (Cin, Cout, K, K)
        conv2_b=u(ks[3], (c,), c * 2 * 4 * 4),
        conv1_w=u(ks[4], (c, 1, 4, 4), c * 4 * 4),
        conv1_b=u(ks[5], (1,), c * 4 * 4),
    )


# -------------------------- pure-JAX reference check ------------------------- #
def decoder_ref(x, params, capacity):
    c = capacity
    h = x @ params["fc_w"].T + params["fc_b"]
    h = h.reshape(x.shape[0], c * 2, 7, 7)

    def ct(x_nchw, wt, b):
        K = wt.shape[-1]
        w_oihw = jnp.transpose(wt, (1, 0, 2, 3))[:, :, ::-1, ::-1]
        out = jax.lax.conv_general_dilated(
            x_nchw, w_oihw, window_strides=(1, 1),
            padding=((K - 2, K - 2), (K - 2, K - 2)),
            lhs_dilation=(2, 2),
            dimension_numbers=("NCHW", "OIHW", "NCHW"))
        return out + b[None, :, None, None]

    h = jax.nn.relu(ct(h, params["conv2_w"], params["conv2_b"]))
    return jnp.tanh(ct(h, params["conv1_w"], params["conv1_b"]))


if __name__ == "__main__":
    capacity, latent_dims, batch = 4, 8, 2
    key = jax.random.PRNGKey(0)
    pkey, xkey = jax.random.split(key)
    params = init_params(pkey, capacity, latent_dims)
    x = jax.random.normal(xkey, (batch, latent_dims), jnp.float32)

    fwd = jax.jit(functools.partial(decoder_forward, capacity=capacity))
    out = jax.block_until_ready(fwd(x, params))
    assert out.shape == (batch, 1, 28, 28), out.shape

    ref = decoder_ref(x, params, capacity)
    max_err = float(jnp.max(jnp.abs(out - ref)))
    assert max_err < 1e-4, f"mismatch vs reference: {max_err}"

    print("KERNEL_OK")
</pallas_src>

<mosaic_0001>
module attributes {stable_mosaic.version = 11 : i64} {
  func.func @_decoder_kernel(%arg0: i32, %arg1: memref<2x8xf32, #tpu.memory_space<vmem>>, %arg2: memref<8x392xf32, #tpu.memory_space<vmem>>, %arg3: memref<1x392xf32, #tpu.memory_space<vmem>>, %arg4: memref<4x4x8x16xf32, #tpu.memory_space<vmem>>, %arg5: memref<8x1xf32, #tpu.memory_space<vmem>>, %arg6: memref<4x4x2x8xf32, #tpu.memory_space<vmem>>, %arg7: memref<2x1xf32, #tpu.memory_space<vmem>>, %arg8: memref<2x784xf32, #tpu.memory_space<vmem>>, %arg9: memref<16x65xf32, #tpu.memory_space<vmem>>, %arg10: memref<2x2x8x65xf32, #tpu.memory_space<vmem>>) attributes {dimension_semantics = [#tpu.dimension_semantics<arbitrary>], iteration_bounds = array<i64: 1>, scalar_prefetch = 0 : i64, scratch_operands = 2 : i64, tpu.core_type = #tpu.core_type<tc>, window_params = [{pipeline_mode = #tpu.pipeline_mode<synchronous>, transform_indices = @transform_0, window_bounds = array<i64: 2, 8>}, {pipeline_mode = #tpu.pipeline_mode<synchronous>, transform_indices = @transform_1, window_bounds = array<i64: 8, 392>}, {pipeline_mode = #tpu.pipeline_mode<synchronous>, transform_indices = @transform_2, window_bounds = array<i64: 1, 392>}, {pipeline_mode = #tpu.pipeline_mode<synchronous>, transform_indices = @transform_3, window_bounds = array<i64: 4, 4, 8, 16>}, {pipeline_mode = #tpu.pipeline_mode<synchronous>, transform_indices = @transform_4, window_bounds = array<i64: 8, 1>}, {pipeline_mode = #tpu.pipeline_mode<synchronous>, transform_indices = @transform_5, window_bounds = array<i64: 4, 4, 2, 8>}, {pipeline_mode = #tpu.pipeline_mode<synchronous>, transform_indices = @transform_6, window_bounds = array<i64: 2, 1>}, {pipeline_mode = #tpu.pipeline_mode<synchronous>, transform_indices = @transform_7, window_bounds = array<i64: 2, 784>}]} {
    %0 = tpu.iota {dimensions = array<i32: 1>} : vector<1x49xi32>
    %c7_i32 = arith.constant 7 : i32
    %c0_i32 = arith.constant 0 : i32
    %1 = arith.cmpi eq, %c7_i32, %c0_i32 : i32
    %c1_i32 = arith.constant 1 : i32
    %2 = arith.select %1, %c1_i32, %c7_i32 : i32
    %3 = vector.broadcast %2 : i32 to vector<1x49xi32>
    %4 = arith.remsi %0, %3 : vector<1x49xi32>
    %c0_i32_0 = arith.constant 0 : i32
    %5 = vector.broadcast %c0_i32_0 : i32 to vector<1x49xi32>
    %6 = arith.cmpi ne, %4, %5 : vector<1x49xi32>
    %c0_i32_1 = arith.constant 0 : i32
    %7 = vector.broadcast %c0_i32_1 : i32 to vector<1x49xi32>
    %8 = arith.cmpi slt, %4, %7 : vector<1x49xi32>
    %c0_i32_2 = arith.constant 0 : i32
    %9 = arith.cmpi slt, %2, %c0_i32_2 : i32
    %10 = vector.broadcast %9 : i1 to vector<1x49xi1>
    %11 = vector.broadcast %10 : vector<1x49xi1> to vector<1x49xi1>
    %12 = arith.xori %8, %11 : vector<1x49xi1>
    %13 = arith.andi %12, %6 : vector<1x49xi1>
    %14 = vector.broadcast %2 : i32 to vector<1x49xi32>
    %15 = arith.addi %4, %14 : vector<1x49xi32>
    %16 = arith.select %13, %15, %4 : vector<1x49xi1>, vector<1x49xi32>
    %c0_i32_3 = arith.constant 0 : i32
    %17 = vector.broadcast %c0_i32_3 : i32 to vector<1x49xi32>
    %18 = arith.cmpi ne, %16, %17 : vector<1x49xi32>
    %19 = arith.extui %18 : vector<1x49xi1> to vector<1x49xi32>
    %20 = arith.sitofp %19 : vector<1x49xi32> to vector<1x49xf32>
    %c6_i32 = arith.constant 6 : i32
    %21 = vector.broadcast %c6_i32 : i32 to vector<1x49xi32>
    %22 = arith.cmpi ne, %16, %21 : vector<1x49xi32>
    %23 = arith.extui %22 : vector<1x49xi1> to vector<1x49xi32>
    %24 = arith.sitofp %23 : vector<1x49xi32> to vector<1x49xf32>
    %cst = arith.constant 0.000000e+00 : f32
    %25 = vector.broadcast %cst : f32 to vector<16x65xf32>
    %c0 = arith.constant 0 : index
    %c0_4 = arith.constant 0 : index
    %26 = vector.load %arg9[%c0, %c0_4] : memref<16x65xf32, #tpu.memory_space<vmem>>, vector<16x65xf32>
    tpu.vector_store %arg9[%c0, %c0_4], %25 {strides = array<i32>} : memref<16x65xf32, #tpu.memory_space<vmem>>, vector<16x65xf32>,
    %cst_5 = arith.constant 0.000000e+00 : f32
    %27 = vector.broadcast %cst_5 : f32 to vector<2x2x8x65xf32>
    %c0_6 = arith.constant 0 : index
    %c0_7 = arith.constant 0 : index
    %c0_8 = arith.constant 0 : index
    %c0_9 = arith.constant 0 : index
    %28 = vector.load %arg10[%c0_6, %c0_7, %c0_8, %c0_9] : memref<2x2x8x65xf32, #tpu.memory_space<vmem>>, vector<2x2x8x65xf32>
    tpu.vector_store %arg10[%c0_6, %c0_7, %c0_8, %c0_9], %27 {strides = array<i32>} : memref<2x2x8x65xf32, #tpu.memory_space<vmem>>, vector<2x2x8x65xf32>,
    %c0_10 = arith.constant 0 : index
    %c0_11 = arith.constant 0 : index
    %29 = vector.load %arg1[%c0_10, %c0_11] : memref<2x8xf32, #tpu.memory_space<vmem>>, vector<2x8xf32>
    %c0_12 = arith.constant 0 : index
    %c0_13 = arith.constant 0 : index
    %30 = vector.load %arg2[%c0_12, %c0_13] : memref<8x392xf32, #tpu.memory_space<vmem>>, vector<8x392xf32>
    %cst_14 = arith.constant dense<0.000000e+00> : vector<2x392xf32>
    %31 = tpu.matmul %29, %30, %cst_14 {dimension_numbers = #tpu.dot_dimension_numbers<[1], [0], [0], [1], [0, 0, 1, 1], [], []>} : vector<2x8xf32>, vector<8x392xf32>, vector<2x392xf32> -> vector<2x392xf32>
    %c0_15 = arith.constant 0 : index
    %c0_16 = arith.constant 0 : index
    %32 = vector.load %arg3[%c0_15, %c0_16] : memref<1x392xf32, #tpu.memory_space<vmem>>, vector<1x392xf32>
    %33 = vector.broadcast %32 : vector<1x392xf32> to vector<2x392xf32>
    %34 = arith.addf %31, %33 : vector<2x392xf32>
    %35 = vector.extract_strided_slice %34 {offsets = [0, 0], sizes = [2, 49], strides = [1, 1]} : vector<2x392xf32> to vector<2x49xf32>
    %c0_17 = arith.constant 0 : index
    %c8 = arith.constant 8 : index
    %36 = vector.load %arg9[%c0_17, %c8] : memref<16x65xf32, #tpu.memory_space<vmem>>, vector<2x49xf32>
    tpu.vector_store %arg9[%c0_17, %c8], %35 {strides = array<i32>} : memref<16x65xf32, #tpu.memory_space<vmem>>, vector<2x49xf32>,
    %37 = vector.extract_strided_slice %34 {offsets = [0, 49], sizes = [2, 49], strides = [1, 1]} : vector<2x392xf32> to vector<2x49xf32>
    %c2 = arith.constant 2 : index
    %c8_18 = arith.constant 8 : index
    %38 = vector.load %arg9[%c2, %c8_18] : memref<16x65xf32, #tpu.memory_space<vmem>>, vector<2x49xf32>
    tpu.vector_store %arg9[%c2, %c8_18], %37 {strides = array<i32>} : memref<16x65xf32, #tpu.memory_space<vmem>>, vector<2x49xf32>,
    %39 = vector.extract_strided_slice %34 {offsets = [0, 98], sizes = [2, 49], strides = [1, 1]} : vector<2x392xf32> to vector<2x49xf32>
    %c4 = arith.constant 4 : index
    %c8_19 = arith.constant 8 : index
    %40 = vector.load %arg9[%c4, %c8_19] : memref<16x65xf32, #tpu.memory_space<vmem>>, vector<2x49xf32>
    tpu.vector_store %arg9[%c4, %c8_19], %39 {strides = array<i32>} : memref<16x65xf32, #tpu.memory_space<vmem>>, vector<2x49xf32>,
    %41 = vector.extract_strided_slice %34 {offsets = [0, 147], sizes = [2, 49], strides = [1, 1]} : vector<2x392xf32> to vector<2x49xf32>
    %c6 = arith.constant 6 : index
    %c8_20 = arith.constant 8 : index
    %42 = vector.load %arg9[%c6, %c8_20] : memref<16x65xf32, #tpu.memory_space<vmem>>, vector<2x49xf32>
    tpu.vector_store %arg9[%c6, %c8_20], %41 {strides = array<i32>} : memref<16x65xf32, #tpu.memory_space<vmem>>, vector<2x49xf32>,
    %43 = vector.extract_strided_slice %34 {offsets = [0, 196], sizes = [2, 49], strides = [1, 1]} : vector<2x392xf32> to vector<2x49xf32>
    %c8_21 = arith.constant 8 : index
    %c8_22 = arith.constant 8 : index
    %44 = vector.load %arg9[%c8_21, %c8_22] : memref<16x65xf32, #tpu.memory_space<vmem>>, vector<2x49xf32>
    tpu.vector_store %arg9[%c8_21, %c8_22], %43 {strides = array<i32>} : memref<16x65xf32, #tpu.memory_space<vmem>>, vector<2x49xf32>,
    %45 = vector.extract_strided_slice %34 {offsets = [0, 245], sizes = [2, 49], strides = [1, 1]} : vector<2x392xf32> to vector<2x49xf32>
    %c10 = arith.constant 10 : index
    %c8_23 = arith.constant 8 : index
    %46 = vector.load %arg9[%c10, %c8_23] : memref<16x65xf32, #tpu.memory_space<vmem>>, vector<2x49xf32>
    tpu.vector_store %arg9[%c10, %c8_23], %45 {strides = array<i32>} : memref<16x65xf32, #tpu.memory_space<vmem>>, vector<2x49xf32>,
    %47 = vector.extract_strided_slice %34 {offsets = [0, 294], sizes = [2, 49], strides = [1, 1]} : vector<2x392xf32> to vector<2x49xf32>
    %c12 = arith.constant 12 : index
    %c8_24 = arith.constant 8 : index
    %48 = vector.load %arg9[%c12, %c8_24] : memref<16x65xf32, #tpu.memory_space<vmem>>, vector<2x49xf32>
    tpu.vector_store %arg9[%c12, %c8_24], %47 {strides = array<i32>} : memref<16x65xf32, #tpu.memory_space<vmem>>, vector<2x49xf32>,
    %49 = vector.extract_strided_slice %34 {offsets = [0, 343], sizes = [2, 49], strides = [1, 1]} : vector<2x392xf32> to vector<2x49xf32>
    %c14 = arith.constant 14 : index
    %c8_25 = arith.constant 8 : index
    %50 = vector.load %arg9[%c14, %c8_25] : memref<16x65xf32, #tpu.memory_space<vmem>>, vector<2x49xf32>
    tpu.vector_store %arg9[%c14, %c8_25], %49 {strides = array<i32>} : memref<16x65xf32, #tpu.memory_space<vmem>>, vector<2x49xf32>,
    %c0_26 = arith.constant 0 : index
    %c0_27 = arith.constant 0 : index
    %51 = vector.load %arg9[%c0_26, %c0_27] : memref<16x65xf32, #tpu.memory_space<vmem>>, vector<16x65xf32>
    %cst_28 = arith.constant 0.000000e+00 : f32
    %52 = vector.broadcast %cst_28 : f32 to vector<8x49xf32>
    %c1 = arith.constant 1 : index
    %c1_29 = arith.constant 1 : index
    %c0_30 = arith.constant 0 : index
    %c0_31 = arith.constant 0 : index
    %53 = vector.load %arg4[%c1, %c1_29, %c0_30, %c0_31] : memref<4x4x8x16xf32, #tpu.memory_space<vmem>>, vector<1x1x8x16xf32>
    %54 = vector.shape_cast %53 : vector<1x1x8x16xf32> to vector<8x16xf32>
    %55 = vector.extract_strided_slice %51 {offsets = [0, 8], sizes = [16, 49], strides = [1, 1]} : vector<16x65xf32> to vector<16x49xf32>
    %cst_32 = arith.constant dense<0.000000e+00> : vector<8x49xf32>
    %56 = tpu.matmul %54, %55, %cst_32 {dimension_numbers = #tpu.dot_dimension_numbers<[1], [0], [0], [1], [0, 0, 1, 1], [], []>} : vector<8x16xf32>, vector<16x49xf32>, vector<8x49xf32> -> vector<8x49xf32>
    %57 = arith.addf %52, %56 : vector<8x49xf32>
    %c1_33 = arith.constant 1 : index
    %c3 = arith.constant 3 : index
    %c0_34 = arith.constant 0 : index
    %c0_35 = arith.constant 0 : index
    %58 = vector.load %arg4[%c1_33, %c3, %c0_34, %c0_35] : memref<4x4x8x16xf32, #tpu.memory_space<vmem>>, vector<1x1x8x16xf32>
    %59 = vector.shape_cast %58 : vector<1x1x8x16xf32> to vector<8x16xf32>
    %60 = vector.extract_strided_slice %51 {offsets = [0, 7], sizes = [16, 49], strides = [1, 1]} : vector<16x65xf32> to vector<16x49xf32>
    %61 = vector.broadcast %20 : vector<1x49xf32> to vector<16x49xf32>
    %62 = arith.mulf %60, %61 : vector<16x49xf32>
    %cst_36 = arith.constant dense<0.000000e+00> : vector<8x49xf32>
    %63 = tpu.matmul %59, %62, %cst_36 {dimension_numbers = #tpu.dot_dimension_numbers<[1], [0], [0], [1], [0, 0, 1, 1], [], []>} : vector<8x16xf32>, vector<16x49xf32>, vector<8x49xf32> -> vector<8x49xf32>
    %64 = arith.addf %57, %63 : vector<8x49xf32>
    %c3_37 = arith.constant 3 : index
    %c1_38 = arith.constant 1 : index
    %c0_39 = arith.constant 0 : index
    %c0_40 = arith.constant 0 : index
    %65 = vector.load %arg4[%c3_37, %c1_38, %c0_39, %c0_40] : memref<4x4x8x16xf32, #tpu.memory_space<vmem>>, vector<1x1x8x16xf32>
    %66 = vector.shape_cast %65 : vector<1x1x8x16xf32> to vector<8x16xf32>
    %67 = vector.extract_strided_slice %51 {offsets = [0, 1], sizes = [16, 49], strides = [1, 1]} : vector<16x65xf32> to vector<16x49xf32>
    %cst_41 = arith.constant dense<0.000000e+00> : vector<8x49xf32>
    %68 = tpu.matmul %66, %67, %cst_41 {dimension_numbers = #tpu.dot_dimension_numbers<[1], [0], [0], [1], [0, 0, 1, 1], [], []>} : vector<8x16xf32>, vector<16x49xf32>, vector<8x49xf32> -> vector<8x49xf32>
    %69 = arith.addf %64, %68 : vector<8x49xf32>
    %c3_42 = arith.constant 3 : index
    %c3_43 = arith.constant 3 : index
    %c0_44 = arith.constant 0 : index
    %c0_45 = arith.constant 0 : index
    %70 = vector.load %arg4[%c3_42, %c3_43, %c0_44, %c0_45] : memref<4x4x8x16xf32, #tpu.memory_space<vmem>>, vector<1x1x8x16xf32>
    %71 = vector.shape_cast %70 : vector<1x1x8x16xf32> to vector<8x16xf32>
    %72 = vector.extract_strided_slice %51 {offsets = [0, 0], sizes = [16, 49], strides = [1, 1]} : vector<16x65xf32> to vector<16x49xf32>
    %73 = vector.broadcast %20 : vector<1x49xf32> to vector<16x49xf32>
    %74 = arith.mulf %72, %73 : vector<16x49xf32>
    %cst_46 = arith.constant dense<0.000000e+00> : vector<8x49xf32>
    %75 = tpu.matmul %71, %74, %cst_46 {dimension_numbers = #tpu.dot_dimension_numbers<[1], [0], [0], [1], [0, 0, 1, 1], [], []>} : vector<8x16xf32>, vector<16x49xf32>, vector<8x49xf32> -> vector<8x49xf32>
    %76 = arith.addf %69, %75 : vector<8x49xf32>
    %c0_47 = arith.constant 0 : index
    %c0_48 = arith.constant 0 : index
    %77 = vector.load %arg5[%c0_47, %c0_48] : memref<8x1xf32, #tpu.memory_space<vmem>>, vector<8x1xf32>
    %78 = vector.broadcast %77 : vector<8x1xf32> to vector<8x49xf32>
    %79 = arith.addf %76, %78 : vector<8x49xf32>
    %cst_49 = arith.constant 0.000000e+00 : f32
    %80 = vector.broadcast %cst_49 : f32 to vector<8x49xf32>
    %81 = arith.maximumf %79, %80 : vector<8x49xf32>
    %c0_50 = arith.constant 0 : index
    %c0_51 = arith.constant 0 : index
    %c0_52 = arith.constant 0 : index
    %c8_53 = arith.constant 8 : index
    %82 = vector.load %arg10[%c0_50, %c0_51, %c0_52, %c8_53] : memref<2x2x8x65xf32, #tpu.memory_space<vmem>>, vector<1x1x8x49xf32>
    %83 = vector.shape_cast %82 : vector<1x1x8x49xf32> to vector<8x49xf32>
    %84 = vector.shape_cast %81 : vector<8x49xf32> to vector<1x1x8x49xf32>
    tpu.vector_store %arg10[%c0_50, %c0_51, %c0_52, %c8_53], %84 {strides = array<i32>} : memref<2x2x8x65xf32, #tpu.memory_space<vmem>>, vector<1x1x8x49xf32>,
    %cst_54 = arith.constant 0.000000e+00 : f32
    %85 = vector.broadcast %cst_54 : f32 to vector<8x49xf32>
    %c1_55 = arith.constant 1 : index
    %c0_56 = arith.constant 0 : index
    %c0_57 = arith.constant 0 : index
    %c0_58 = arith.constant 0 : index
    %86 = vector.load %arg4[%c1_55, %c0_56, %c0_57, %c0_58] : memref<4x4x8x16xf32, #tpu.memory_space<vmem>>, vector<1x1x8x16xf32>
    %87 = vector.shape_cast %86 : vector<1x1x8x16xf32> to vector<8x16xf32>
    %88 = vector.extract_strided_slice %51 {offsets = [0, 9], sizes = [16, 49], strides = [1, 1]} : vector<16x65xf32> to vector<16x49xf32>
    %89 = vector.broadcast %24 : vector<1x49xf32> to vector<16x49xf32>
    %90 = arith.mulf %88, %89 : vector<16x49xf32>
    %cst_59 = arith.constant dense<0.000000e+00> : vector<8x49xf32>
    %91 = tpu.matmul %87, %90, %cst_59 {dimension_numbers = #tpu.dot_dimension_numbers<[1], [0], [0], [1], [0, 0, 1, 1], [], []>} : vector<8x16xf32>, vector<16x49xf32>, vector<8x49xf32> -> vector<8x49xf32>
    %92 = arith.addf %85, %91 : vector<8x49xf32>
    %c1_60 = arith.constant 1 : index
    %c2_61 = arith.constant 2 : index
    %c0_62 = arith.constant 0 : index
    %c0_63 = arith.constant 0 : index
    %93 = vector.load %arg4[%c1_60, %c2_61, %c0_62, %c0_63] : memref<4x4x8x16xf32, #tpu.memory_space<vmem>>, vector<1x1x8x16xf32>
    %94 = vector.shape_cast %93 : vector<1x1x8x16xf32> to vector<8x16xf32>
    %95 = vector.extract_strided_slice %51 {offsets = [0, 8], sizes = [16, 49], strides = [1, 1]} : vector<16x65xf32> to vector<16x49xf32>
    %cst_64 = arith.constant dense<0.000000e+00> : vector<8x49xf32>
    %96 = tpu.matmul %94, %95, %cst_64 {dimension_numbers = #tpu.dot_dimension_numbers<[1], [0], [0], [1], [0, 0, 1, 1], [], []>} : vector<8x16xf32>, vector<16x49xf32>, vector<8x49xf32> -> vector<8x49xf32>
    %97 = arith.addf %92, %96 : vector<8x49xf32>
    %c3_65 = arith.constant 3 : index
    %c0_66 = arith.constant 0 : index
    %c0_67 = arith.constant 0 : index
    %c0_68 = arith.constant 0 : index
    %98 = vector.load %arg4[%c3_65, %c0_66, %c0_67, %c0_68] : memref<4x4x8x16xf32, #tpu.memory_space<vmem>>, vector<1x1x8x16xf32>
    %99 = vector.shape_cast %98 : vector<1x1x8x16xf32> to vector<8x16xf32>
    %100 = vector.extract_strided_slice %51 {offsets = [0, 2], sizes = [16, 49], strides = [1, 1]} : vector<16x65xf32> to vector<16x49xf32>
    %101 = vector.broadcast %24 : vector<1x49xf32> to vector<16x49xf32>
    %102 = arith.mulf %100, %101 : vector<16x49xf32>
    %cst_69 = arith.constant dense<0.000000e+00> : vector<8x49xf32>
    %103 = tpu.matmul %99, %102, %cst_69 {dimension_numbers = #tpu.dot_dimension_numbers<[1], [0], [0], [1], [0, 0, 1, 1], [], []>} : vector<8x16xf32>, vector<16x49xf32>, vector<8x49xf32> -> vector<8x49xf32>
    %104 = arith.addf %97, %103 : vector<8x49xf32>
    %c3_70 = arith.constant 3 : index
    %c2_71 = arith.constant 2 : index
    %c0_72 = arith.constant 0 : index
    %c0_73 = arith.constant 0 : index
    %105 = vector.load %arg4[%c3_70, %c2_71, %c0_72, %c0_73] : memref<4x4x8x16xf32, #tpu.memory_space<vmem>>, vector<1x1x8x16xf32>
    %106 = vector.shape_cast %105 : vector<1x1x8x16xf32> to vector<8x16xf32>
    %107 = vector.extract_strided_slice %51 {offsets = [0, 1], sizes = [16, 49], strides = [1, 1]} : vector<16x65xf32> to vector<16x49xf32>
    %cst_74 = arith.constant dense<0.000000e+00> : vector<8x49xf32>
    %108 = tpu.matmul %106, %107, %cst_74 {dimension_numbers = #tpu.dot_dimension_numbers<[1], [0], [0], [1], [0, 0, 1, 1], [], []>} : vector<8x16xf32>, vector<16x49xf32>, vector<8x49xf32> -> vector<8x49xf32>
    %109 = arith.addf %104, %108 : vector<8x49xf32>
    %c0_75 = arith.constant 0 : index
    %c0_76 = arith.constant 0 : index
    %110 = vector.load %arg5[%c0_75, %c0_76] : memref<8x1xf32, #tpu.memory_space<vmem>>, vector<8x1xf32>
    %111 = vector.broadcast %110 : vector<8x1xf32> to vector<8x49xf32>
    %112 = arith.addf %109, %111 : vector<8x49xf32>
    %cst_77 = arith.constant 0.000000e+00 : f32
    %113 = vector.broadcast %cst_77 : f32 to vector<8x49xf32>
    %114 = arith.maximumf %112, %113 : vector<8x49xf32>
    %c0_78 = arith.constant 0 : index
    %c1_79 = arith.constant 1 : index
    %c0_80 = arith.constant 0 : index
    %c8_81 = arith.constant 8 : index
    %115 = vector.load %arg10[%c0_78, %c1_79, %c0_80, %c8_81] : memref<2x2x8x65xf32, #tpu.memory_space<vmem>>, vector<1x1x8x49xf32>
    %116 = vector.shape_cast %115 : vector<1x1x8x49xf32> to vector<8x49xf32>
    %117 = vector.shape_cast %114 : vector<8x49xf32> to vector<1x1x8x49xf32>
    tpu.vector_store %arg10[%c0_78, %c1_79, %c0_80, %c8_81], %117 {strides = array<i32>} : memref<2x2x8x65xf32, #tpu.memory_space<vmem>>, vector<1x1x8x49xf32>,
    %cst_82 = arith.constant 0.000000e+00 : f32
    %118 = vector.broadcast %cst_82 : f32 to vector<8x49xf32>
    %c0_83 = arith.constant 0 : index
    %c1_84 = arith.constant 1 : index
    %c0_85 = arith.constant 0 : index
    %c0_86 = arith.constant 0 : index
    %119 = vector.load %arg4[%c0_83, %c1_84, %c0_85, %c0_86] : memref<4x4x8x16xf32, #tpu.memory_space<vmem>>, vector<1x1x8x16xf32>
    %120 = vector.shape_cast %119 : vector<1x1x8x16xf32> to vector<8x16xf32>
    %121 = vector.extract_strided_slice %51 {offsets = [0, 15], sizes = [16, 49], strides = [1, 1]} : vector<16x65xf32> to vector<16x49xf32>
    %cst_87 = arith.constant dense<0.000000e+00> : vector<8x49xf32>
    %122 = tpu.matmul %120, %121, %cst_87 {dimension_numbers = #tpu.dot_dimension_numbers<[1], [0], [0], [1], [0, 0, 1, 1], [], []>} : vector<8x16xf32>, vector<16x49xf32>, vector<8x49xf32> -> vector<8x49xf32>
    %123 = arith.addf %118, %122 : vector<8x49xf32>
    %c0_88 = arith.constant 0 : index
    %c3_89 = arith.constant 3 : index
    %c0_90 = arith.constant 0 : index
    %c0_91 = arith.constant 0 : index
    %124 = vector.load %arg4[%c0_88, %c3_89, %c0_90, %c0_91] : memref<4x4x8x16xf32, #tpu.memory_space<vmem>>, vector<1x1x8x16xf32>
    %125 = vector.shape_cast %124 : vector<1x1x8x16xf32> to vector<8x16xf32>
    %126 = vector.extract_strided_slice %51 {offsets = [0, 14], sizes = [16, 49], strides = [1, 1]} : vector<16x65xf32> to vector<16x49xf32>
    %127 = vector.broadcast %20 : vector<1x49xf32> to vector<16x49xf32>
    %128 = arith.mulf %126, %127 : vector<16x49xf32>
    %cst_92 = arith.constant dense<0.000000e+00> : vector<8x49xf32>
    %129 = tpu.matmul %125, %128, %cst_92 {dimension_numbers = #tpu.dot_dimension_numbers<[1], [0], [0], [1], [0, 0, 1, 1], [], []>} : vector<8x16xf32>, vector<16x49xf32>, vector<8x49xf32> -> vector<8x49xf32>
    %130 = arith.addf %123, %129 : vector<8x49xf32>
    %c2_93 = arith.constant 2 : index
    %c1_94 = arith.constant 1 : index
    %c0_95 = arith.constant 0 : index
    %c0_96 = arith.constant 0 : index
    %131 = vector.load %arg4[%c2_93, %c1_94, %c0_95, %c0_96] : memref<4x4x8x16xf32, #tpu.memory_space<vmem>>, vector<1x1x8x16xf32>
    %132 = vector.shape_cast %131 : vector<1x1x8x16xf32> to vector<8x16xf32>
    %133 = vector.extract_strided_slice %51 {offsets = [0, 8], sizes = [16, 49], strides = [1, 1]} : vector<16x65xf32> to vector<16x49xf32>
    %cst_97 = arith.constant dense<0.000000e+00> : vector<8x49xf32>
    %134 = tpu.matmul %132, %133, %cst_97 {dimension_numbers = #tpu.dot_dimension_numbers<[1], [0], [0], [1], [0, 0, 1, 1], [], []>} : vector<8x16xf32>, vector<16x49xf32>, vector<8x49xf32> -> vector<8x49xf32>
    %135 = arith.addf %130, %134 : vector<8x49xf32>
    %c2_98 = arith.constant 2 : index
    %c3_99 = arith.constant 3 : index
    %c0_100 = arith.constant 0 : index
    %c0_101 = arith.constant 0 : index
    %136 = vector.load %arg4[%c2_98, %c3_99, %c0_100, %c0_101] : memref<4x4x8x16xf32, #tpu.memory_space<vmem>>, vector<1x1x8x16xf32>
    %137 = vector.shape_cast %136 : vector<1x1x8x16xf32> to vector<8x16xf32>
    %138 = vector.extract_strided_slice %51 {offsets = [0, 7], sizes = [16, 49], strides = [1, 1]} : vector<16x65xf32> to vector<16x49xf32>
    %139 = vector.broadcast %20 : vector<1x49xf32> to vector<16x49xf32>
    %140 = arith.mulf %138, %139 : vector<16x49xf32>
    %cst_102 = arith.constant dense<0.000000e+00> : vector<8x49xf32>
    %141 = tpu.matmul %137, %140, %cst_102 {dimension_numbers = #tpu.dot_dimension_numbers<[1], [0], [0], [1], [0, 0, 1, 1], [], []>} : vector<8x16xf32>, vector<16x49xf32>, vector<8x49xf32> -> vector<8x49xf32>
    %142 = arith.addf %135, %141 : vector<8x49xf32>
    %c0_103 = arith.constant 0 : index
    %c0_104 = arith.constant 0 : index
    %143 = vector.load %arg5[%c0_103, %c0_104] : memref<8x1xf32, #tpu.memory_space<vmem>>, vector<8x1xf32>
    %144 = vector.broadcast %143 : vector<8x1xf32> to vector<8x49xf32>
    %145 = arith.addf %142, %144 : vector<8x49xf32>
    %cst_105 = arith.constant 0.000000e+00 : f32
    %146 = vector.broadcast %cst_105 : f32 to vector<8x49xf32>
    %147 = arith.maximumf %145, %146 : vector<8x49xf32>
    %c1_106 = arith.constant 1 : index
    %c0_107 = arith.constant 0 : index
    %c0_108 = arith.constant 0 : index
    %c8_109 = arith.constant 8 : index
    %148 = vector.load %arg10[%c1_106, %c0_107, %c0_108, %c8_109] : memref<2x2x8x65xf32, #tpu.memory_space<vmem>>, vector<1x1x8x49xf32>
    %149 = vector.shape_cast %148 : vector<1x1x8x49xf32> to vector<8x49xf32>
    %150 = vector.shape_cast %147 : vector<8x49xf32> to vector<1x1x8x49xf32>
    tpu.vector_store %arg10[%c1_106, %c0_107, %c0_108, %c8_109], %150 {strides = array<i32>} : memref<2x2x8x65xf32, #tpu.memory_space<vmem>>, vector<1x1x8x49xf32>,
    %cst_110 = arith.constant 0.000000e+00 : f32
    %151 = vector.broadcast %cst_110 : f32 to vector<8x49xf32>
    %c0_111 = arith.constant 0 : index
    %c0_112 = arith.constant 0 : index
    %c0_113 = arith.constant 0 : index
    %c0_114 = arith.constant 0 : index
    %152 = vector.load %arg4[%c0_111, %c0_112, %c0_113, %c0_114] : memref<4x4x8x16xf32, #tpu.memory_space<vmem>>, vector<1x1x8x16xf32>
    %153 = vector.shape_cast %152 : vector<1x1x8x16xf32> to vector<8x16xf32>
    %154 = vector.extract_strided_slice %51 {offsets = [0, 16], sizes = [16, 49], strides = [1, 1]} : vector<16x65xf32> to vector<16x49xf32>
    %155 = vector.broadcast %24 : vector<1x49xf32> to vector<16x49xf32>
    %156 = arith.mulf %154, %155 : vector<16x49xf32>
    %cst_115 = arith.constant dense<0.000000e+00> : vector<8x49xf32>
    %157 = tpu.matmul %153, %156, %cst_115 {dimension_numbers = #tpu.dot_dimension_numbers<[1], [0], [0], [1], [0, 0, 1, 1], [], []>} : vector<8x16xf32>, vector<16x49xf32>, vector<8x49xf32> -> vector<8x49xf32>
    %158 = arith.addf %151, %157 : vector<8x49xf32>
    %c0_116 = arith.constant 0 : index
    %c2_117 = arith.constant 2 : index
    %c0_118 = arith.constant 0 : index
    %c0_119 = arith.constant 0 : index
    %159 = vector.load %arg4[%c0_116, %c2_117, %c0_118, %c0_119] : memref<4x4x8x16xf32, #tpu.memory_space<vmem>>, vector<1x1x8x16xf32>
    %160 = vector.shape_cast %159 : vector<1x1x8x16xf32> to vector<8x16xf32>
    %161 = vector.extract_strided_slice %51 {offsets = [0, 15], sizes = [16, 49], strides = [1, 1]} : vector<16x65xf32> to vector<16x49xf32>
    %cst_120 = arith.constant dense<0.000000e+00> : vector<8x49xf32>
    %162 = tpu.matmul %160, %161, %cst_120 {dimension_numbers = #tpu.dot_dimension_numbers<[1], [0], [0], [1], [0, 0, 1, 1], [], []>} : vector<8x16xf32>, vector<16x49xf32>, vector<8x49xf32> -> vector<8x49xf32>
    %163 = arith.addf %158, %162 : vector<8x49xf32>
    %c2_121 = arith.constant 2 : index
    %c0_122 = arith.constant 0 : index
    %c0_123 = arith.constant 0 : index
    %c0_124 = arith.constant 0 : index
    %164 = vector.load %arg4[%c2_121, %c0_122, %c0_123, %c0_124] : memref<4x4x8x16xf32, #tpu.memory_space<vmem>>, vector<1x1x8x16xf32>
    %165 = vector.shape_cast %164 : vector<1x1x8x16xf32> to vector<8x16xf32>
    %166 = vector.extract_strided_slice %51 {offsets = [0, 9], sizes = [16, 49], strides = [1, 1]} : vector<16x65xf32> to vector<16x49xf32>
    %167 = vector.broadcast %24 : vector<1x49xf32> to vector<16x49xf32>
    %168 = arith.mulf %166, %167 : vector<16x49xf32>
    %cst_125 = arith.constant dense<0.000000e+00> : vector<8x49xf32>
    %169 = tpu.matmul %165, %168, %cst_125 {dimension_numbers = #tpu.dot_dimension_numbers<[1], [0], [0], [1], [0, 0, 1, 1], [], []>} : vector<8x16xf32>, vector<16x49xf32>, vector<8x49xf32> -> vector<8x49xf32>
    %170 = arith.addf %163, %169 : vector<8x49xf32>
    %c2_126 = arith.constant 2 : index
    %c2_127 = arith.constant 2 : index
    %c0_128 = arith.constant 0 : index
    %c0_129 = arith.constant 0 : index
    %171 = vector.load %arg4[%c2_126, %c2_127, %c0_128, %c0_129] : memref<4x4x8x16xf32, #tpu.memory_space<vmem>>, vector<1x1x8x16xf32>
    %172 = vector.shape_cast %171 : vector<1x1x8x16xf32> to vector<8x16xf32>
    %173 = vector.extract_strided_slice %51 {offsets = [0, 8], sizes = [16, 49], strides = [1, 1]} : vector<16x65xf32> to vector<16x49xf32>
    %cst_130 = arith.constant dense<0.000000e+00> : vector<8x49xf32>
    %174 = tpu.matmul %172, %173, %cst_130 {dimension_numbers = #tpu.dot_dimension_numbers<[1], [0], [0], [1], [0, 0, 1, 1], [], []>} : vector<8x16xf32>, vector<16x49xf32>, vector<8x49xf32> -> vector<8x49xf32>
    %175 = arith.addf %170, %174 : vector<8x49xf32>
    %c0_131 = arith.constant 0 : index
    %c0_132 = arith.constant 0 : index
    %176 = vector.load %arg5[%c0_131, %c0_132] : memref<8x1xf32, #tpu.memory_space<vmem>>, vector<8x1xf32>
    %177 = vector.broadcast %176 : vector<8x1xf32> to vector<8x49xf32>
    %178 = arith.addf %175, %177 : vector<8x49xf32>
    %cst_133 = arith.constant 0.000000e+00 : f32
    %179 = vector.broadcast %cst_133 : f32 to vector<8x49xf32>
    %180 = arith.maximumf %178, %179 : vector<8x49xf32>
    %c1_134 = arith.constant 1 : index
    %c1_135 = arith.constant 1 : index
    %c0_136 = arith.constant 0 : index
    %c8_137 = arith.constant 8 : index
    %181 = vector.load %arg10[%c1_134, %c1_135, %c0_136, %c8_137] : memref<2x2x8x65xf32, #tpu.memory_space<vmem>>, vector<1x1x8x49xf32>
    %182 = vector.shape_cast %181 : vector<1x1x8x49xf32> to vector<8x49xf32>
    %183 = vector.shape_cast %180 : vector<8x49xf32> to vector<1x1x8x49xf32>
    tpu.vector_store %arg10[%c1_134, %c1_135, %c0_136, %c8_137], %183 {strides = array<i32>} : memref<2x2x8x65xf32, #tpu.memory_space<vmem>>, vector<1x1x8x49xf32>,
    %c0_138 = arith.constant 0 : index
    %c0_139 = arith.constant 0 : index
    %c0_140 = arith.constant 0 : index
    %c0_141 = arith.constant 0 : index
    %184 = vector.load %arg10[%c0_138, %c0_139, %c0_140, %c0_141] : memref<2x2x8x65xf32, #tpu.memory_space<vmem>>, vector<1x1x8x65xf32>
    %185 = vector.shape_cast %184 : vector<1x1x8x65xf32> to vector<8x65xf32>
    %c0_142 = arith.constant 0 : index
    %c1_143 = arith.constant 1 : index
    %c0_144 = arith.constant 0 : index
    %c0_145 = arith.constant 0 : index
    %186 = vector.load %arg10[%c0_142, %c1_143, %c0_144, %c0_145] : memref<2x2x8x65xf32, #tpu.memory_space<vmem>>, vector<1x1x8x65xf32>
    %187 = vector.shape_cast %186 : vector<1x1x8x65xf32> to vector<8x65xf32>
    %c1_146 = arith.constant 1 : index
    %c0_147 = arith.constant 0 : index
    %c0_148 = arith.constant 0 : index
    %c0_149 = arith.constant 0 : index
    %188 = vector.load %arg10[%c1_146, %c0_147, %c0_148, %c0_149] : memref<2x2x8x65xf32, #tpu.memory_space<vmem>>, vector<1x1x8x65xf32>
    %189 = vector.shape_cast %188 : vector<1x1x8x65xf32> to vector<8x65xf32>
    %c1_150 = arith.constant 1 : index
    %c1_151 = arith.constant 1 : index
    %c0_152 = arith.constant 0 : index
    %c0_153 = arith.constant 0 : index
    %190 = vector.load %arg10[%c1_150, %c1_151, %c0_152, %c0_153] : memref<2x2x8x65xf32, #tpu.memory_space<vmem>>, vector<1x1x8x65xf32>
    %191 = vector.shape_cast %190 : vector<1x1x8x65xf32> to vector<8x65xf32>
    %cst_154 = arith.constant 0.000000e+00 : f32
    %192 = vector.broadcast %cst_154 : f32 to vector<2x49xf32>
    %193 = vector.extract_strided_slice %185 {offsets = [0, 8], sizes = [8, 49], strides = [1, 1]} : vector<8x65xf32> to vector<8x49xf32>
    %c1_155 = arith.constant 1 : index
    %c1_156 = arith.constant 1 : index
    %c0_157 = arith.constant 0 : index
    %c0_158 = arith.constant 0 : index
    %194 = vector.load %arg6[%c1_155, %c1_156, %c0_157, %c0_158] : memref<4x4x2x8xf32, #tpu.memory_space<vmem>>, vector<1x1x2x8xf32>
    %195 = vector.shape_cast %194 : vector<1x1x2x8xf32> to vector<2x8xf32>
    %cst_159 = arith.constant dense<0.000000e+00> : vector<2x49xf32>
    %196 = tpu.matmul %195, %193, %cst_159 {dimension_numbers = #tpu.dot_dimension_numbers<[1], [0], [0], [1], [0, 0, 1, 1], [], []>} : vector<2x8xf32>, vector<8x49xf32>, vector<2x49xf32> -> vector<2x49xf32>
    %197 = arith.addf %192, %196 : vector<2x49xf32>
    %198 = vector.extract_strided_slice %187 {offsets = [0, 7], sizes = [8, 49], strides = [1, 1]} : vector<8x65xf32> to vector<8x49xf32>
    %199 = vector.broadcast %20 : vector<1x49xf32> to vector<8x49xf32>
    %200 = arith.mulf %198, %199 : vector<8x49xf32>
    %c1_160 = arith.constant 1 : index
    %c3_161 = arith.constant 3 : index
    %c0_162 = arith.constant 0 : index
    %c0_163 = arith.constant 0 : index
    %201 = vector.load %arg6[%c1_160, %c3_161, %c0_162, %c0_163] : memref<4x4x2x8xf32, #tpu.memory_space<vmem>>, vector<1x1x2x8xf32>
    %202 = vector.shape_cast %201 : vector<1x1x2x8xf32> to vector<2x8xf32>
    %cst_164 = arith.constant dense<0.000000e+00> : vector<2x49xf32>
    %203 = tpu.matmul %202, %200, %cst_164 {dimension_numbers = #tpu.dot_dimension_numbers<[1], [0], [0], [1], [0, 0, 1, 1], [], []>} : vector<2x8xf32>, vector<8x49xf32>, vector<2x49xf32> -> vector<2x49xf32>
    %204 = arith.addf %197, %203 : vector<2x49xf32>
    %205 = vector.extract_strided_slice %189 {offsets = [0, 1], sizes = [8, 49], strides = [1, 1]} : vector<8x65xf32> to vector<8x49xf32>
    %c3_165 = arith.constant 3 : index
    %c1_166 = arith.constant 1 : index
    %c0_167 = arith.constant 0 : index
    %c0_168 = arith.constant 0 : index
    %206 = vector.load %arg6[%c3_165, %c1_166, %c0_167, %c0_168] : memref<4x4x2x8xf32, #tpu.memory_space<vmem>>, vector<1x1x2x8xf32>
    %207 = vector.shape_cast %206 : vector<1x1x2x8xf32> to vector<2x8xf32>
    %cst_169 = arith.constant dense<0.000000e+00> : vector<2x49xf32>
    %208 = tpu.matmul %207, %205, %cst_169 {dimension_numbers = #tpu.dot_dimension_numbers<[1], [0], [0], [1], [0, 0, 1, 1], [], []>} : vector<2x8xf32>, vector<8x49xf32>, vector<2x49xf32> -> vector<2x49xf32>
    %209 = arith.addf %204, %208 : vector<2x49xf32>
    %210 = vector.extract_strided_slice %191 {offsets = [0, 0], sizes = [8, 49], strides = [1, 1]} : vector<8x65xf32> to vector<8x49xf32>
    %211 = vector.broadcast %20 : vector<1x49xf32> to vector<8x49xf32>
    %212 = arith.mulf %210, %211 : vector<8x49xf32>
    %c3_170 = arith.constant 3 : index
    %c3_171 = arith.constant 3 : index
    %c0_172 = arith.constant 0 : index
    %c0_173 = arith.constant 0 : index
    %213 = vector.load %arg6[%c3_170, %c3_171, %c0_172, %c0_173] : memref<4x4x2x8xf32, #tpu.memory_space<vmem>>, vector<1x1x2x8xf32>
    %214 = vector.shape_cast %213 : vector<1x1x2x8xf32> to vector<2x8xf32>
    %cst_174 = arith.constant dense<0.000000e+00> : vector<2x49xf32>
    %215 = tpu.matmul %214, %212, %cst_174 {dimension_numbers = #tpu.dot_dimension_numbers<[1], [0], [0], [1], [0, 0, 1, 1], [], []>} : vector<2x8xf32>, vector<8x49xf32>, vector<2x49xf32> -> vector<2x49xf32>
    %216 = arith.addf %209, %215 : vector<2x49xf32>
    %c0_175 = arith.constant 0 : index
    %c0_176 = arith.constant 0 : index
    %217 = vector.load %arg7[%c0_175, %c0_176] : memref<2x1xf32, #tpu.memory_space<vmem>>, vector<2x1xf32>
    %218 = vector.broadcast %217 : vector<2x1xf32> to vector<2x49xf32>
    %219 = arith.addf %216, %218 : vector<2x49xf32>
    %220 = math.tanh %219 : vector<2x49xf32>
    %c0_177 = arith.constant 0 : index
    %c0_178 = arith.constant 0 : index
    %221 = vector.load %arg8[%c0_177, %c0_178] : memref<2x784xf32, #tpu.memory_space<vmem>>, vector<2x49xf32>
    tpu.vector_store %arg8[%c0_177, %c0_178], %220 {strides = array<i32>} : memref<2x784xf32, #tpu.memory_space<vmem>>, vector<2x49xf32>,
    %cst_179 = arith.constant 0.000000e+00 : f32
    %222 = vector.broadcast %cst_179 : f32 to vector<2x49xf32>
    %223 = vector.extract_strided_slice %187 {offsets = [0, 8], sizes = [8, 49], strides = [1, 1]} : vector<8x65xf32> to vector<8x49xf32>
    %c1_180 = arith.constant 1 : index
    %c0_181 = arith.constant 0 : index
    %c0_182 = arith.constant 0 : index
    %c0_183 = arith.constant 0 : index
    %224 = vector.load %arg6[%c1_180, %c0_181, %c0_182, %c0_183] : memref<4x4x2x8xf32, #tpu.memory_space<vmem>>, vector<1x1x2x8xf32>
    %225 = vector.shape_cast %224 : vector<1x1x2x8xf32> to vector<2x8xf32>
    %cst_184 = arith.constant dense<0.000000e+00> : vector<2x49xf32>
    %226 = tpu.matmul %225, %223, %cst_184 {dimension_numbers = #tpu.dot_dimension_numbers<[1], [0], [0], [1], [0, 0, 1, 1], [], []>} : vector<2x8xf32>, vector<8x49xf32>, vector<2x49xf32> -> vector<2x49xf32>
    %227 = arith.addf %222, %226 : vector<2x49xf32>
    %228 = vector.extract_strided_slice %185 {offsets = [0, 8], sizes = [8, 49], strides = [1, 1]} : vector<8x65xf32> to vector<8x49xf32>
    %c1_185 = arith.constant 1 : index
    %c2_186 = arith.constant 2 : index
    %c0_187 = arith.constant 0 : index
    %c0_188 = arith.constant 0 : index
    %229 = vector.load %arg6[%c1_185, %c2_186, %c0_187, %c0_188] : memref<4x4x2x8xf32, #tpu.memory_space<vmem>>, vector<1x1x2x8xf32>
    %230 = vector.shape_cast %229 : vector<1x1x2x8xf32> to vector<2x8xf32>
    %cst_189 = arith.constant dense<0.000000e+00> : vector<2x49xf32>
    %231 = tpu.matmul %230, %228, %cst_189 {dimension_numbers = #tpu.dot_dimension_numbers<[1], [0], [0], [1], [0, 0, 1, 1], [], []>} : vector<2x8xf32>, vector<8x49xf32>, vector<2x49xf32> -> vector<2x49xf32>
    %232 = arith.addf %227, %231 : vector<2x49xf32>
    %233 = vector.extract_strided_slice %191 {offsets = [0, 1], sizes = [8, 49], strides = [1, 1]} : vector<8x65xf32> to vector<8x49xf32>
    %c3_190 = arith.constant 3 : index
    %c0_191 = arith.constant 0 : index
    %c0_192 = arith.constant 0 : index
    %c0_193 = arith.constant 0 : index
    %234 = vector.load %arg6[%c3_190, %c0_191, %c0_192, %c0_193] : memref<4x4x2x8xf32, #tpu.memory_space<vmem>>, vector<1x1x2x8xf32>
    %235 = vector.shape_cast %234 : vector<1x1x2x8xf32> to vector<2x8xf32>
    %cst_194 = arith.constant dense<0.000000e+00> : vector<2x49xf32>
    %236 = tpu.matmul %235, %233, %cst_194 {dimension_numbers = #tpu.dot_dimension_numbers<[1], [0], [0], [1], [0, 0, 1, 1], [], []>} : vector<2x8xf32>, vector<8x49xf32>, vector<2x49xf32> -> vector<2x49xf32>
    %237 = arith.addf %232, %236 : vector<2x49xf32>
    %238 = vector.extract_strided_slice %189 {offsets = [0, 1], sizes = [8, 49], strides = [1, 1]} : vector<8x65xf32> to vector<8x49xf32>
    %c3_195 = arith.constant 3 : index
    %c2_196 = arith.constant 2 : index
    %c0_197 = arith.constant 0 : index
    %c0_198 = arith.constant 0 : index
    %239 = vector.load %arg6[%c3_195, %c2_196, %c0_197, %c0_198] : memref<4x4x2x8xf32, #tpu.memory_space<vmem>>, vector<1x1x2x8xf32>
    %240 = vector.shape_cast %239 : vector<1x1x2x8xf32> to vector<2x8xf32>
    %cst_199 = arith.constant dense<0.000000e+00> : vector<2x49xf32>
    %241 = tpu.matmul %240, %238, %cst_199 {dimension_numbers = #tpu.dot_dimension_numbers<[1], [0], [0], [1], [0, 0, 1, 1], [], []>} : vector<2x8xf32>, vector<8x49xf32>, vector<2x49xf32> -> vector<2x49xf32>
    %242 = arith.addf %237, %241 : vector<2x49xf32>
    %c0_200 = arith.constant 0 : index
    %c0_201 = arith.constant 0 : index
    %243 = vector.load %arg7[%c0_200, %c0_201] : memref<2x1xf32, #tpu.memory_space<vmem>>, vector<2x1xf32>
    %244 = vector.broadcast %243 : vector<2x1xf32> to vector<2x49xf32>
    %245 = arith.addf %242, %244 : vector<2x49xf32>
    %246 = math.tanh %245 : vector<2x49xf32>
    %c0_202 = arith.constant 0 : index
    %c49 = arith.constant 49 : index
    %247 = vector.load %arg8[%c0_202, %c49] : memref<2x784xf32, #tpu.memory_space<vmem>>, vector<2x49xf32>
    tpu.vector_store %arg8[%c0_202, %c49], %246 {strides = array<i32>} : memref<2x784xf32, #tpu.memory_space<vmem>>, vector<2x49xf32>,
    %cst_203 = arith.constant 0.000000e+00 : f32
    %248 = vector.broadcast %cst_203 : f32 to vector<2x49xf32>
    %249 = vector.extract_strided_slice %187 {offsets = [0, 8], sizes = [8, 49], strides = [1, 1]} : vector<8x65xf32> to vector<8x49xf32>
    %c1_204 = arith.constant 1 : index
    %c1_205 = arith.constant 1 : index
    %c0_206 = arith.constant 0 : index
    %c0_207 = arith.constant 0 : index
    %250 = vector.load %arg6[%c1_204, %c1_205, %c0_206, %c0_207] : memref<4x4x2x8xf32, #tpu.memory_space<vmem>>, vector<1x1x2x8xf32>
    %251 = vector.shape_cast %250 : vector<1x1x2x8xf32> to vector<2x8xf32>
    %cst_208 = arith.constant dense<0.000000e+00> : vector<2x49xf32>
    %252 = tpu.matmul %251, %249, %cst_208 {dimension_numbers = #tpu.dot_dimension_numbers<[1], [0], [0], [1], [0, 0, 1, 1], [], []>} : vector<2x8xf32>, vector<8x49xf32>, vector<2x49xf32> -> vector<2x49xf32>
    %253 = arith.addf %248, %252 : vector<2x49xf32>
    %254 = vector.extract_strided_slice %185 {offsets = [0, 8], sizes = [8, 49], strides = [1, 1]} : vector<8x65xf32> to vector<8x49xf32>
    %c1_209 = arith.constant 1 : index
    %c3_210 = arith.constant 3 : index
    %c0_211 = arith.constant 0 : index
    %c0_212 = arith.constant 0 : index
    %255 = vector.load %arg6[%c1_209, %c3_210, %c0_211, %c0_212] : memref<4x4x2x8xf32, #tpu.memory_space<vmem>>, vector<1x1x2x8xf32>
    %256 = vector.shape_cast %255 : vector<1x1x2x8xf32> to vector<2x8xf32>
    %cst_213 = arith.constant dense<0.000000e+00> : vector<2x49xf32>
    %257 = tpu.matmul %256, %254, %cst_213 {dimension_numbers = #tpu.dot_dimension_numbers<[1], [0], [0], [1], [0, 0, 1, 1], [], []>} : vector<2x8xf32>, vector<8x49xf32>, vector<2x49xf32> -> vector<2x49xf32>
    %258 = arith.addf %253, %257 : vector<2x49xf32>
    %259 = vector.extract_strided_slice %191 {offsets = [0, 1], sizes = [8, 49], strides = [1, 1]} : vector<8x65xf32> to vector<8x49xf32>
    %c3_214 = arith.constant 3 : index
    %c1_215 = arith.constant 1 : index
    %c0_216 = arith.constant 0 : index
    %c0_217 = arith.constant 0 : index
    %260 = vector.load %arg6[%c3_214, %c1_215, %c0_216, %c0_217] : memref<4x4x2x8xf32, #tpu.memory_space<vmem>>, vector<1x1x2x8xf32>
    %261 = vector.shape_cast %260 : vector<1x1x2x8xf32> to vector<2x8xf32>
    %cst_218 = arith.constant dense<0.000000e+00> : vector<2x49xf32>
    %262 = tpu.matmul %261, %259, %cst_218 {dimension_numbers = #tpu.dot_dimension_numbers<[1], [0], [0], [1], [0, 0, 1, 1], [], []>} : vector<2x8xf32>, vector<8x49xf32>, vector<2x49xf32> -> vector<2x49xf32>
    %263 = arith.addf %258, %262 : vector<2x49xf32>
    %264 = vector.extract_strided_slice %189 {offsets = [0, 1], sizes = [8, 49], strides = [1, 1]} : vector<8x65xf32> to vector<8x49xf32>
    %c3_219 = arith.constant 3 : index
    %c3_220 = arith.constant 3 : index
    %c0_221 = arith.constant 0 : index
    %c0_222 = arith.constant 0 : index
    %265 = vector.load %arg6[%c3_219, %c3_220, %c0_221, %c0_222] : memref<4x4x2x8xf32, #tpu.memory_space<vmem>>, vector<1x1x2x8xf32>
    %266 = vector.shape_cast %265 : vector<1x1x2x8xf32> to vector<2x8xf32>
    %cst_223 = arith.constant dense<0.000000e+00> : vector<2x49xf32>
    %267 = tpu.matmul %266, %264, %cst_223 {dimension_numbers = #tpu.dot_dimension_numbers<[1], [0], [0], [1], [0, 0, 1, 1], [], []>} : vector<2x8xf32>, vector<8x49xf32>, vector<2x49xf32> -> vector<2x49xf32>
    %268 = arith.addf %263, %267 : vector<2x49xf32>
    %c0_224 = arith.constant 0 : index
    %c0_225 = arith.constant 0 : index
    %269 = vector.load %arg7[%c0_224, %c0_225] : memref<2x1xf32, #tpu.memory_space<vmem>>, vector<2x1xf32>
    %270 = vector.broadcast %269 : vector<2x1xf32> to vector<2x49xf32>
    %271 = arith.addf %268, %270 : vector<2x49xf32>
    %272 = math.tanh %271 : vector<2x49xf32>
    %c0_226 = arith.constant 0 : index
    %c98 = arith.constant 98 : index
    %273 = vector.load %arg8[%c0_226, %c98] : memref<2x784xf32, #tpu.memory_space<vmem>>, vector<2x49xf32>
    tpu.vector_store %arg8[%c0_226, %c98], %272 {strides = array<i32>} : memref<2x784xf32, #tpu.memory_space<vmem>>, vector<2x49xf32>,
    %cst_227 = arith.constant 0.000000e+00 : f32
    %274 = vector.broadcast %cst_227 : f32 to vector<2x49xf32>
    %275 = vector.extract_strided_slice %185 {offsets = [0, 9], sizes = [8, 49], strides = [1, 1]} : vector<8x65xf32> to vector<8x49xf32>
    %276 = vector.broadcast %24 : vector<1x49xf32> to vector<8x49xf32>
    %277 = arith.mulf %275, %276 : vector<8x49xf32>
    %c1_228 = arith.constant 1 : index
    %c0_229 = arith.constant 0 : index
    %c0_230 = arith.constant 0 : index
    %c0_231 = arith.constant 0 : index
    %278 = vector.load %arg6[%c1_228, %c0_229, %c0_230, %c0_231] : memref<4x4x2x8xf32, #tpu.memory_space<vmem>>, vector<1x1x2x8xf32>
    %279 = vector.shape_cast %278 : vector<1x1x2x8xf32> to vector<2x8xf32>
    %cst_232 = arith.constant dense<0.000000e+00> : vector<2x49xf32>
    %280 = tpu.matmul %279, %277, %cst_232 {dimension_numbers = #tpu.dot_dimension_numbers<[1], [0], [0], [1], [0, 0, 1, 1], [], []>} : vector<2x8xf32>, vector<8x49xf32>, vector<2x49xf32> -> vector<2x49xf32>
    %281 = arith.addf %274, %280 : vector<2x49xf32>
    %282 = vector.extract_strided_slice %187 {offsets = [0, 8], sizes = [8, 49], strides = [1, 1]} : vector<8x65xf32> to vector<8x49xf32>
    %c1_233 = arith.constant 1 : index
    %c2_234 = arith.constant 2 : index
    %c0_235 = arith.constant 0 : index
    %c0_236 = arith.constant 0 : index
    %283 = vector.load %arg6[%c1_233, %c2_234, %c0_235, %c0_236] : memref<4x4x2x8xf32, #tpu.memory_space<vmem>>, vector<1x1x2x8xf32>
    %284 = vector.shape_cast %283 : vector<1x1x2x8xf32> to vector<2x8xf32>
    %cst_237 = arith.constant dense<0.000000e+00> : vector<2x49xf32>
    %285 = tpu.matmul %284, %282, %cst_237 {dimension_numbers = #tpu.dot_dimension_numbers<[1], [0], [0], [1], [0, 0, 1, 1], [], []>} : vector<2x8xf32>, vector<8x49xf32>, vector<2x49xf32> -> vector<2x49xf32>
    %286 = arith.addf %281, %285 : vector<2x49xf32>
    %287 = vector.extract_strided_slice %189 {offsets = [0, 2], sizes = [8, 49], strides = [1, 1]} : vector<8x65xf32> to vector<8x49xf32>
    %288 = vector.broadcast %24 : vector<1x49xf32> to vector<8x49xf32>
    %289 = arith.mulf %287, %288 : vector<8x49xf32>
    %c3_238 = arith.constant 3 : index
    %c0_239 = arith.constant 0 : index
    %c0_240 = arith.constant 0 : index
    %c0_241 = arith.constant 0 : index
    %290 = vector.load %arg6[%c3_238, %c0_239, %c0_240, %c0_241] : memref<4x4x2x8xf32, #tpu.memory_space<vmem>>, vector<1x1x2x8xf32>
    %291 = vector.shape_cast %290 : vector<1x1x2x8xf32> to vector<2x8xf32>
    %cst_242 = arith.constant dense<0.000000e+00> : vector<2x49xf32>
    %292 = tpu.matmul %291, %289, %cst_242 {dimension_numbers = #tpu.dot_dimension_numbers<[1], [0], [0], [1], [0, 0, 1, 1], [], []>} : vector<2x8xf32>, vector<8x49xf32>, vector<2x49xf32> -> vector<2x49xf32>
    %293 = arith.addf %286, %292 : vector<2x49xf32>
    %294 = vector.extract_strided_slice %191 {offsets = [0, 1], sizes = [8, 49], strides = [1, 1]} : vector<8x65xf32> to vector<8x49xf32>
    %c3_243 = arith.constant 3 : index
    %c2_244 = arith.constant 2 : index
    %c0_245 = arith.constant 0 : index
    %c0_246 = arith.constant 0 : index
    %295 = vector.load %arg6[%c3_243, %c2_244, %c0_245, %c0_246] : memref<4x4x2x8xf32, #tpu.memory_space<vmem>>, vector<1x1x2x8xf32>
    %296 = vector.shape_cast %295 : vector<1x1x2x8xf32> to vector<2x8xf32>
    %cst_247 = arith.constant dense<0.000000e+00> : vector<2x49xf32>
    %297 = tpu.matmul %296, %294, %cst_247 {dimension_numbers = #tpu.dot_dimension_numbers<[1], [0], [0], [1], [0, 0, 1, 1], [], []>} : vector<2x8xf32>, vector<8x49xf32>, vector<2x49xf32> -> vector<2x49xf32>
    %298 = arith.addf %293, %297 : vector<2x49xf32>
    %c0_248 = arith.constant 0 : index
    %c0_249 = arith.constant 0 : index
    %299 = vector.load %arg7[%c0_248, %c0_249] : memref<2x1xf32, #tpu.memory_space<vmem>>, vector<2x1xf32>
    %300 = vector.broadcast %299 : vector<2x1xf32> to vector<2x49xf32>
    %301 = arith.addf %298, %300 : vector<2x49xf32>
    %302 = math.tanh %301 : vector<2x49xf32>
    %c0_250 = arith.constant 0 : index
    %c147 = arith.constant 147 : index
    %303 = vector.load %arg8[%c0_250, %c147] : memref<2x784xf32, #tpu.memory_space<vmem>>, vector<2x49xf32>
    tpu.vector_store %arg8[%c0_250, %c147], %302 {strides = array<i32>} : memref<2x784xf32, #tpu.memory_space<vmem>>, vector<2x49xf32>,
    %cst_251 = arith.constant 0.000000e+00 : f32
    %304 = vector.broadcast %cst_251 : f32 to vector<2x49xf32>
    %305 = vector.extract_strided_slice %189 {offsets = [0, 8], sizes = [8, 49], strides = [1, 1]} : vector<8x65xf32> to vector<8x49xf32>
    %c0_252 = arith.constant 0 : index
    %c1_253 = arith.constant 1 : index
    %c0_254 = arith.constant 0 : index
    %c0_255 = arith.constant 0 : index
    %306 = vector.load %arg6[%c0_252, %c1_253, %c0_254, %c0_255] : memref<4x4x2x8xf32, #tpu.memory_space<vmem>>, vector<1x1x2x8xf32>
    %307 = vector.shape_cast %306 : vector<1x1x2x8xf32> to vector<2x8xf32>
    %cst_256 = arith.constant dense<0.000000e+00> : vector<2x49xf32>
    %308 = tpu.matmul %307, %305, %cst_256 {dimension_numbers = #tpu.dot_dimension_numbers<[1], [0], [0], [1], [0, 0, 1, 1], [], []>} : vector<2x8xf32>, vector<8x49xf32>, vector<2x49xf32> -> vector<2x49xf32>
    %309 = arith.addf %304, %308 : vector<2x49xf32>
    %310 = vector.extract_strided_slice %191 {offsets = [0, 7], sizes = [8, 49], strides = [1, 1]} : vector<8x65xf32> to vector<8x49xf32>
    %311 = vector.broadcast %20 : vector<1x49xf32> to vector<8x49xf32>
    %312 = arith.mulf %310, %311 : vector<8x49xf32>
    %c0_257 = arith.constant 0 : index
    %c3_258 = arith.constant 3 : index
    %c0_259 = arith.constant 0 : index
    %c0_260 = arith.constant 0 : index
    %313 = vector.load %arg6[%c0_257, %c3_258, %c0_259, %c0_260] : memref<4x4x2x8xf32, #tpu.memory_space<vmem>>, vector<1x1x2x8xf32>
    %314 = vector.shape_cast %313 : vector<1x1x2x8xf32> to vector<2x8xf32>
    %cst_261 = arith.constant dense<0.000000e+00> : vector<2x49xf32>
    %315 = tpu.matmul %314, %312, %cst_261 {dimension_numbers = #tpu.dot_dimension_numbers<[1], [0], [0], [1], [0, 0, 1, 1], [], []>} : vector<2x8xf32>, vector<8x49xf32>, vector<2x49xf32> -> vector<2x49xf32>
    %316 = arith.addf %309, %315 : vector<2x49xf32>
    %317 = vector.extract_strided_slice %185 {offsets = [0, 8], sizes = [8, 49], strides = [1, 1]} : vector<8x65xf32> to vector<8x49xf32>
    %c2_262 = arith.constant 2 : index
    %c1_263 = arith.constant 1 : index
    %c0_264 = arith.constant 0 : index
    %c0_265 = arith.constant 0 : index
    %318 = vector.load %arg6[%c2_262, %c1_263, %c0_264, %c0_265] : memref<4x4x2x8xf32, #tpu.memory_space<vmem>>, vector<1x1x2x8xf32>
    %319 = vector.shape_cast %318 : vector<1x1x2x8xf32> to vector<2x8xf32>
    %cst_266 = arith.constant dense<0.000000e+00> : vector<2x49xf32>
    %320 = tpu.matmul %319, %317, %cst_266 {dimension_numbers = #tpu.dot_dimension_numbers<[1], [0], [0], [1], [0, 0, 1, 1], [], []>} : vector<2x8xf32>, vector<8x49xf32>, vector<2x49xf32> -> vector<2x49xf32>
    %321 = arith.addf %316, %320 : vector<2x49xf32>
    %322 = vector.extract_strided_slice %187 {offsets = [0, 7], sizes = [8, 49], strides = [1, 1]} : vector<8x65xf32> to vector<8x49xf32>
    %323 = vector.broadcast %20 : vector<1x49xf32> to vector<8x49xf32>
    %324 = arith.mulf %322, %323 : vector<8x49xf32>
    %c2_267 = arith.constant 2 : index
    %c3_268 = arith.constant 3 : index
    %c0_269 = arith.constant 0 : index
    %c0_270 = arith.constant 0 : index
    %325 = vector.load %arg6[%c2_267, %c3_268, %c0_269, %c0_270] : memref<4x4x2x8xf32, #tpu.memory_space<vmem>>, vector<1x1x2x8xf32>
    %326 = vector.shape_cast %325 : vector<1x1x2x8xf32> to vector<2x8xf32>
    %cst_271 = arith.constant dense<0.000000e+00> : vector<2x49xf32>
    %327 = tpu.matmul %326, %324, %cst_271 {dimension_numbers = #tpu.dot_dimension_numbers<[1], [0], [0], [1], [0, 0, 1, 1], [], []>} : vector<2x8xf32>, vector<8x49xf32>, vector<2x49xf32> -> vector<2x49xf32>
    %328 = arith.addf %321, %327 : vector<2x49xf32>
    %c0_272 = arith.constant 0 : index
    %c0_273 = arith.constant 0 : index
    %329 = vector.load %arg7[%c0_272, %c0_273] : memref<2x1xf32, #tpu.memory_space<vmem>>, vector<2x1xf32>
    %330 = vector.broadcast %329 : vector<2x1xf32> to vector<2x49xf32>
    %331 = arith.addf %328, %330 : vector<2x49xf32>
    %332 = math.tanh %331 : vector<2x49xf32>
    %c0_274 = arith.constant 0 : index
    %c196 = arith.constant 196 : index
    %333 = vector.load %arg8[%c0_274, %c196] : memref<2x784xf32, #tpu.memory_space<vmem>>, vector<2x49xf32>
    tpu.vector_store %arg8[%c0_274, %c196], %332 {strides = array<i32>} : memref<2x784xf32, #tpu.memory_space<vmem>>, vector<2x49xf32>,
    %cst_275 = arith.constant 0.000000e+00 : f32
    %334 = vector.broadcast %cst_275 : f32 to vector<2x49xf32>
    %335 = vector.extract_strided_slice %191 {offsets = [0, 8], sizes = [8, 49], strides = [1, 1]} : vector<8x65xf32> to vector<8x49xf32>
    %c0_276 = arith.constant 0 : index
    %c0_277 = arith.constant 0 : index
    %c0_278 = arith.constant 0 : index
    %c0_279 = arith.constant 0 : index
    %336 = vector.load %arg6[%c0_276, %c0_277, %c0_278, %c0_279] : memref<4x4x2x8xf32, #tpu.memory_space<vmem>>, vector<1x1x2x8xf32>
    %337 = vector.shape_cast %336 : vector<1x1x2x8xf32> to vector<2x8xf32>
    %cst_280 = arith.constant dense<0.000000e+00> : vector<2x49xf32>
    %338 = tpu.matmul %337, %335, %cst_280 {dimension_numbers = #tpu.dot_dimension_numbers<[1], [0], [0], [1], [0, 0, 1, 1], [], []>} : vector<2x8xf32>, vector<8x49xf32>, vector<2x49xf32> -> vector<2x49xf32>
    %339 = arith.addf %334, %338 : vector<2x49xf32>
    %340 = vector.extract_strided_slice %189 {offsets = [0, 8], sizes = [8, 49], strides = [1, 1]} : vector<8x65xf32> to vector<8x49xf32>
    %c0_281 = arith.constant 0 : index
    %c2_282 = arith.constant 2 : index
    %c0_283 = arith.constant 0 : index
    %c0_284 = arith.constant 0 : index
    %341 = vector.load %arg6[%c0_281, %c2_282, %c0_283, %c0_284] : memref<4x4x2x8xf32, #tpu.memory_space<vmem>>, vector<1x1x2x8xf32>
    %342 = vector.shape_cast %341 : vector<1x1x2x8xf32> to vector<2x8xf32>
    %cst_285 = arith.constant dense<0.000000e+00> : vector<2x49xf32>
    %343 = tpu.matmul %342, %340, %cst_285 {dimension_numbers = #tpu.dot_dimension_numbers<[1], [0], [0], [1], [0, 0, 1, 1], [], []>} : vector<2x8xf32>, vector<8x49xf32>, vector<2x49xf32> -> vector<2x49xf32>
    %344 = arith.addf %339, %343 : vector<2x49xf32>
    %345 = vector.extract_strided_slice %187 {offsets = [0, 8], sizes = [8, 49], strides = [1, 1]} : vector<8x65xf32> to vector<8x49xf32>
    %c2_286 = arith.constant 2 : index
    %c0_287 = arith.constant 0 : index
    %c0_288 = arith.constant 0 : index
    %c0_289 = arith.constant 0 : index
    %346 = vector.load %arg6[%c2_286, %c0_287, %c0_288, %c0_289] : memref<4x4x2x8xf32, #tpu.memory_space<vmem>>, vector<1x1x2x8xf32>
    %347 = vector.shape_cast %346 : vector<1x1x2x8xf32> to vector<2x8xf32>
    %cst_290 = arith.constant dense<0.000000e+00> : vector<2x49xf32>
    %348 = tpu.matmul %347, %345, %cst_290 {dimension_numbers = #tpu.dot_dimension_numbers<[1], [0], [0], [1], [0, 0, 1, 1], [], []>} : vector<2x8xf32>, vector<8x49xf32>, vector<2x49xf32> -> vector<2x49xf32>
    %349 = arith.addf %344, %348 : vector<2x49xf32>
    %350 = vector.extract_strided_slice %185 {offsets = [0, 8], sizes = [8, 49], strides = [1, 1]} : vector<8x65xf32> to vector<8x49xf32>
    %c2_291 = arith.constant 2 : index
    %c2_292 = arith.constant 2 : index
    %c0_293 = arith.constant 0 : index
    %c0_294 = arith.constant 0 : index
    %351 = vector.load %arg6[%c2_291, %c2_292, %c0_293, %c0_294] : memref<4x4x2x8xf32, #tpu.memory_space<vmem>>, vector<1x1x2x8xf32>
    %352 = vector.shape_cast %351 : vector<1x1x2x8xf32> to vector<2x8xf32>
    %cst_295 = arith.constant dense<0.000000e+00> : vector<2x49xf32>
    %353 = tpu.matmul %352, %350, %cst_295 {dimension_numbers = #tpu.dot_dimension_numbers<[1], [0], [0], [1], [0, 0, 1, 1], [], []>} : vector<2x8xf32>, vector<8x49xf32>, vector<2x49xf32> -> vector<2x49xf32>
    %354 = arith.addf %349, %353 : vector<2x49xf32>
    %c0_296 = arith.constant 0 : index
    %c0_297 = arith.constant 0 : index
    %355 = vector.load %arg7[%c0_296, %c0_297] : memref<2x1xf32, #tpu.memory_space<vmem>>, vector<2x1xf32>
    %356 = vector.broadcast %355 : vector<2x1xf32> to vector<2x49xf32>
    %357 = arith.addf %354, %356 : vector<2x49xf32>
    %358 = math.tanh %357 : vector<2x49xf32>
    %c0_298 = arith.constant 0 : index
    %c245 = arith.constant 245 : index
    %359 = vector.load %arg8[%c0_298, %c245] : memref<2x784xf32, #tpu.memory_space<vmem>>, vector<2x49xf32>
    tpu.vector_store %arg8[%c0_298, %c245], %358 {strides = array<i32>} : memref<2x784xf32, #tpu.memory_space<vmem>>, vector<2x49xf32>,
    %cst_299 = arith.constant 0.000000e+00 : f32
    %360 = vector.broadcast %cst_299 : f32 to vector<2x49xf32>
    %361 = vector.extract_strided_slice %191 {offsets = [0, 8], sizes = [8, 49], strides = [1, 1]} : vector<8x65xf32> to vector<8x49xf32>
    %c0_300 = arith.constant 0 : index
    %c1_301 = arith.constant 1 : index
    %c0_302 = arith.constant 0 : index
    %c0_303 = arith.constant 0 : index
    %362 = vector.load %arg6[%c0_300, %c1_301, %c0_302, %c0_303] : memref<4x4x2x8xf32, #tpu.memory_space<vmem>>, vector<1x1x2x8xf32>
    %363 = vector.shape_cast %362 : vector<1x1x2x8xf32> to vector<2x8xf32>
    %cst_304 = arith.constant dense<0.000000e+00> : vector<2x49xf32>
    %364 = tpu.matmul %363, %361, %cst_304 {dimension_numbers = #tpu.dot_dimension_numbers<[1], [0], [0], [1], [0, 0, 1, 1], [], []>} : vector<2x8xf32>, vector<8x49xf32>, vector<2x49xf32> -> vector<2x49xf32>
    %365 = arith.addf %360, %364 : vector<2x49xf32>
    %366 = vector.extract_strided_slice %189 {offsets = [0, 8], sizes = [8, 49], strides = [1, 1]} : vector<8x65xf32> to vector<8x49xf32>
    %c0_305 = arith.constant 0 : index
    %c3_306 = arith.constant 3 : index
    %c0_307 = arith.constant 0 : index
    %c0_308 = arith.constant 0 : index
    %367 = vector.load %arg6[%c0_305, %c3_306, %c0_307, %c0_308] : memref<4x4x2x8xf32, #tpu.memory_space<vmem>>, vector<1x1x2x8xf32>
    %368 = vector.shape_cast %367 : vector<1x1x2x8xf32> to vector<2x8xf32>
    %cst_309 = arith.constant dense<0.000000e+00> : vector<2x49xf32>
    %369 = tpu.matmul %368, %366, %cst_309 {dimension_numbers = #tpu.dot_dimension_numbers<[1], [0], [0], [1], [0, 0, 1, 1], [], []>} : vector<2x8xf32>, vector<8x49xf32>, vector<2x49xf32> -> vector<2x49xf32>
    %370 = arith.addf %365, %369 : vector<2x49xf32>
    %371 = vector.extract_strided_slice %187 {offsets = [0, 8], sizes = [8, 49], strides = [1, 1]} : vector<8x65xf32> to vector<8x49xf32>
    %c2_310 = arith.constant 2 : index
    %c1_311 = arith.constant 1 : index
    %c0_312 = arith.constant 0 : index
    %c0_313 = arith.constant 0 : index
    %372 = vector.load %arg6[%c2_310, %c1_311, %c0_312, %c0_313] : memref<4x4x2x8xf32, #tpu.memory_space<vmem>>, vector<1x1x2x8xf32>
    %373 = vector.shape_cast %372 : vector<1x1x2x8xf32> to vector<2x8xf32>
    %cst_314 = arith.constant dense<0.000000e+00> : vector<2x49xf32>
    %374 = tpu.matmul %373, %371, %cst_314 {dimension_numbers = #tpu.dot_dimension_numbers<[1], [0], [0], [1], [0, 0, 1, 1], [], []>} : vector<2x8xf32>, vector<8x49xf32>, vector<2x49xf32> -> vector<2x49xf32>
    %375 = arith.addf %370, %374 : vector<2x49xf32>
    %376 = vector.extract_strided_slice %185 {offsets = [0, 8], sizes = [8, 49], strides = [1, 1]} : vector<8x65xf32> to vector<8x49xf32>
    %c2_315 = arith.constant 2 : index
    %c3_316 = arith.constant 3 : index
    %c0_317 = arith.constant 0 : index
    %c0_318 = arith.constant 0 : index
    %377 = vector.load %arg6[%c2_315, %c3_316, %c0_317, %c0_318] : memref<4x4x2x8xf32, #tpu.memory_space<vmem>>, vector<1x1x2x8xf32>
    %378 = vector.shape_cast %377 : vector<1x1x2x8xf32> to vector<2x8xf32>
    %cst_319 = arith.constant dense<0.000000e+00> : vector<2x49xf32>
    %379 = tpu.matmul %378, %376, %cst_319 {dimension_numbers = #tpu.dot_dimension_numbers<[1], [0], [0], [1], [0, 0, 1, 1], [], []>} : vector<2x8xf32>, vector<8x49xf32>, vector<2x49xf32> -> vector<2x49xf32>
    %380 = arith.addf %375, %379 : vector<2x49xf32>
    %c0_320 = arith.constant 0 : index
    %c0_321 = arith.constant 0 : index
    %381 = vector.load %arg7[%c0_320, %c0_321] : memref<2x1xf32, #tpu.memory_space<vmem>>, vector<2x1xf32>
    %382 = vector.broadcast %381 : vector<2x1xf32> to vector<2x49xf32>
    %383 = arith.addf %380, %382 : vector<2x49xf32>
    %384 = math.tanh %383 : vector<2x49xf32>
    %c0_322 = arith.constant 0 : index
    %c294 = arith.constant 294 : index
    %385 = vector.load %arg8[%c0_322, %c294] : memref<2x784xf32, #tpu.memory_space<vmem>>, vector<2x49xf32>
    tpu.vector_store %arg8[%c0_322, %c294], %384 {strides = array<i32>} : memref<2x784xf32, #tpu.memory_space<vmem>>, vector<2x49xf32>,
    %cst_323 = arith.constant 0.000000e+00 : f32
    %386 = vector.broadcast %cst_323 : f32 to vector<2x49xf32>
    %387 = vector.extract_strided_slice %189 {offsets = [0, 9], sizes = [8, 49], strides = [1, 1]} : vector<8x65xf32> to vector<8x49xf32>
    %388 = vector.broadcast %24 : vector<1x49xf32> to vector<8x49xf32>
    %389 = arith.mulf %387, %388 : vector<8x49xf32>
    %c0_324 = arith.constant 0 : index
    %c0_325 = arith.constant 0 : index
    %c0_326 = arith.constant 0 : index
    %c0_327 = arith.constant 0 : index
    %390 = vector.load %arg6[%c0_324, %c0_325, %c0_326, %c0_327] : memref<4x4x2x8xf32, #tpu.memory_space<vmem>>, vector<1x1x2x8xf32>
    %391 = vector.shape_cast %390 : vector<1x1x2x8xf32> to vector<2x8xf32>
    %cst_328 = arith.constant dense<0.000000e+00> : vector<2x49xf32>
    %392 = tpu.matmul %391, %389, %cst_328 {dimension_numbers = #tpu.dot_dimension_numbers<[1], [0], [0], [1], [0, 0, 1, 1], [], []>} : vector<2x8xf32>, vector<8x49xf32>, vector<2x49xf32> -> vector<2x49xf32>
    %393 = arith.addf %386, %392 : vector<2x49xf32>
    %394 = vector.extract_strided_slice %191 {offsets = [0, 8], sizes = [8, 49], strides = [1, 1]} : vector<8x65xf32> to vector<8x49xf32>
    %c0_329 = arith.constant 0 : index
    %c2_330 = arith.constant 2 : index
    %c0_331 = arith.constant 0 : index
    %c0_332 = arith.constant 0 : index
    %395 = vector.load %arg6[%c0_329, %c2_330, %c0_331, %c0_332] : memref<4x4x2x8xf32, #tpu.memory_space<vmem>>, vector<1x1x2x8xf32>
    %396 = vector.shape_cast %395 : vector<1x1x2x8xf32> to vector<2x8xf32>
    %cst_333 = arith.constant dense<0.000000e+00> : vector<2x49xf32>
    %397 = tpu.matmul %396, %394, %cst_333 {dimension_numbers = #tpu.dot_dimension_numbers<[1], [0], [0], [1], [0, 0, 1, 1], [], []>} : vector<2x8xf32>, vector<8x49xf32>, vector<2x49xf32> -> vector<2x49xf32>
    %398 = arith.addf %393, %397 : vector<2x49xf32>
    %399 = vector.extract_strided_slice %185 {offsets = [0, 9], sizes = [8, 49], strides = [1, 1]} : vector<8x65xf32> to vector<8x49xf32>
    %400 = vector.broadcast %24 : vector<1x49xf32> to vector<8x49xf32>
    %401 = arith.mulf %399, %400 : vector<8x49xf32>
    %c2_334 = arith.constant 2 : index
    %c0_335 = arith.constant 0 : index
    %c0_336 = arith.constant 0 : index
    %c0_337 = arith.constant 0 : index
    %402 = vector.load %arg6[%c2_334, %c0_335, %c0_336, %c0_337] : memref<4x4x2x8xf32, #tpu.memory_space<vmem>>, vector<1x1x2x8xf32>
    %403 = vector.shape_cast %402 : vector<1x1x2x8xf32> to vector<2x8xf32>
    %cst_338 = arith.constant dense<0.000000e+00> : vector<2x49xf32>
    %404 = tpu.matmul %403, %401, %cst_338 {dimension_numbers = #tpu.dot_dimension_numbers<[1], [0], [0], [1], [0, 0, 1, 1], [], []>} : vector<2x8xf32>, vector<8x49xf32>, vector<2x49xf32> -> vector<2x49xf32>
    %405 = arith.addf %398, %404 : vector<2x49xf32>
    %406 = vector.extract_strided_slice %187 {offsets = [0, 8], sizes = [8, 49], strides = [1, 1]} : vector<8x65xf32> to vector<8x49xf32>
    %c2_339 = arith.constant 2 : index
    %c2_340 = arith.constant 2 : index
    %c0_341 = arith.constant 0 : index
    %c0_342 = arith.constant 0 : index
    %407 = vector.load %arg6[%c2_339, %c2_340, %c0_341, %c0_342] : memref<4x4x2x8xf32, #tpu.memory_space<vmem>>, vector<1x1x2x8xf32>
    %408 = vector.shape_cast %407 : vector<1x1x2x8xf32> to vector<2x8xf32>
    %cst_343 = arith.constant dense<0.000000e+00> : vector<2x49xf32>
    %409 = tpu.matmul %408, %406, %cst_343 {dimension_numbers = #tpu.dot_dimension_numbers<[1], [0], [0], [1], [0, 0, 1, 1], [], []>} : vector<2x8xf32>, vector<8x49xf32>, vector<2x49xf32> -> vector<2x49xf32>
    %410 = arith.addf %405, %409 : vector<2x49xf32>
    %c0_344 = arith.constant 0 : index
    %c0_345 = arith.constant 0 : index
    %411 = vector.load %arg7[%c0_344, %c0_345] : memref<2x1xf32, #tpu.memory_space<vmem>>, vector<2x1xf32>
    %412 = vector.broadcast %411 : vector<2x1xf32> to vector<2x49xf32>
    %413 = arith.addf %410, %412 : vector<2x49xf32>
    %414 = math.tanh %413 : vector<2x49xf32>
    %c0_346 = arith.constant 0 : index
    %c343 = arith.constant 343 : index
    %415 = vector.load %arg8[%c0_346, %c343] : memref<2x784xf32, #tpu.memory_space<vmem>>, vector<2x49xf32>
    tpu.vector_store %arg8[%c0_346, %c343], %414 {strides = array<i32>} : memref<2x784xf32, #tpu.memory_space<vmem>>, vector<2x49xf32>,
    %cst_347 = arith.constant 0.000000e+00 : f32
    %416 = vector.broadcast %cst_347 : f32 to vector<2x49xf32>
    %417 = vector.extract_strided_slice %189 {offsets = [0, 8], sizes = [8, 49], strides = [1, 1]} : vector<8x65xf32> to vector<8x49xf32>
    %c1_348 = arith.constant 1 : index
    %c1_349 = arith.constant 1 : index
    %c0_350 = arith.constant 0 : index
    %c0_351 = arith.constant 0 : index
    %418 = vector.load %arg6[%c1_348, %c1_349, %c0_350, %c0_351] : memref<4x4x2x8xf32, #tpu.memory_space<vmem>>, vector<1x1x2x8xf32>
    %419 = vector.shape_cast %418 : vector<1x1x2x8xf32> to vector<2x8xf32>
    %cst_352 = arith.constant dense<0.000000e+00> : vector<2x49xf32>
    %420 = tpu.matmul %419, %417, %cst_352 {dimension_numbers = #tpu.dot_dimension_numbers<[1], [0], [0], [1], [0, 0, 1, 1], [], []>} : vector<2x8xf32>, vector<8x49xf32>, vector<2x49xf32> -> vector<2x49xf32>
    %421 = arith.addf %416, %420 : vector<2x49xf32>
    %422 = vector.extract_strided_slice %191 {offsets = [0, 7], sizes = [8, 49], strides = [1, 1]} : vector<8x65xf32> to vector<8x49xf32>
    %423 = vector.broadcast %20 : vector<1x49xf32> to vector<8x49xf32>
    %424 = arith.mulf %422, %423 : vector<8x49xf32>
    %c1_353 = arith.constant 1 : index
    %c3_354 = arith.constant 3 : index
    %c0_355 = arith.constant 0 : index
    %c0_356 = arith.constant 0 : index
    %425 = vector.load %arg6[%c1_353, %c3_354, %c0_355, %c0_356] : memref<4x4x2x8xf32, #tpu.memory_space<vmem>>, vector<1x1x2x8xf32>
    %426 = vector.shape_cast %425 : vector<1x1x2x8xf32> to vector<2x8xf32>
    %cst_357 = arith.constant dense<0.000000e+00> : vector<2x49xf32>
    %427 = tpu.matmul %426, %424, %cst_357 {dimension_numbers = #tpu.dot_dimension_numbers<[1], [0], [0], [1], [0, 0, 1, 1], [], []>} : vector<2x8xf32>, vector<8x49xf32>, vector<2x49xf32> -> vector<2x49xf32>
    %428 = arith.addf %421, %427 : vector<2x49xf32>
    %429 = vector.extract_strided_slice %185 {offsets = [0, 8], sizes = [8, 49], strides = [1, 1]} : vector<8x65xf32> to vector<8x49xf32>
    %c3_358 = arith.constant 3 : index
    %c1_359 = arith.constant 1 : index
    %c0_360 = arith.constant 0 : index
    %c0_361 = arith.constant 0 : index
    %430 = vector.load %arg6[%c3_358, %c1_359, %c0_360, %c0_361] : memref<4x4x2x8xf32, #tpu.memory_space<vmem>>, vector<1x1x2x8xf32>
    %431 = vector.shape_cast %430 : vector<1x1x2x8xf32> to vector<2x8xf32>
    %cst_362 = arith.constant dense<0.000000e+00> : vector<2x49xf32>
    %432 = tpu.matmul %431, %429, %cst_362 {dimension_numbers = #tpu.dot_dimension_numbers<[1], [0], [0], [1], [0, 0, 1, 1], [], []>} : vector<2x8xf32>, vector<8x49xf32>, vector<2x49xf32> -> vector<2x49xf32>
    %433 = arith.addf %428, %432 : vector<2x49xf32>
    %434 = vector.extract_strided_slice %187 {offsets = [0, 7], sizes = [8, 49], strides = [1, 1]} : vector<8x65xf32> to vector<8x49xf32>
    %435 = vector.broadcast %20 : vector<1x49xf32> to vector<8x49xf32>
    %436 = arith.mulf %434, %435 : vector<8x49xf32>
    %c3_363 = arith.constant 3 : index
    %c3_364 = arith.constant 3 : index
    %c0_365 = arith.constant 0 : index
    %c0_366 = arith.constant 0 : index
    %437 = vector.load %arg6[%c3_363, %c3_364, %c0_365, %c0_366] : memref<4x4x2x8xf32, #tpu.memory_space<vmem>>, vector<1x1x2x8xf32>
    %438 = vector.shape_cast %437 : vector<1x1x2x8xf32> to vector<2x8xf32>
    %cst_367 = arith.constant dense<0.000000e+00> : vector<2x49xf32>
    %439 = tpu.matmul %438, %436, %cst_367 {dimension_numbers = #tpu.dot_dimension_numbers<[1], [0], [0], [1], [0, 0, 1, 1], [], []>} : vector<2x8xf32>, vector<8x49xf32>, vector<2x49xf32> -> vector<2x49xf32>
    %440 = arith.addf %433, %439 : vector<2x49xf32>
    %c0_368 = arith.constant 0 : index
    %c0_369 = arith.constant 0 : index
    %441 = vector.load %arg7[%c0_368, %c0_369] : memref<2x1xf32, #tpu.memory_space<vmem>>, vector<2x1xf32>
    %442 = vector.broadcast %441 : vector<2x1xf32> to vector<2x49xf32>
    %443 = arith.addf %440, %442 : vector<2x49xf32>
    %444 = math.tanh %443 : vector<2x49xf32>
    %c0_370 = arith.constant 0 : index
    %c392 = arith.constant 392 : index
    %445 = vector.load %arg8[%c0_370, %c392] : memref<2x784xf32, #tpu.memory_space<vmem>>, vector<2x49xf32>
    tpu.vector_store %arg8[%c0_370, %c392], %444 {strides = array<i32>} : memref<2x784xf32, #tpu.memory_space<vmem>>, vector<2x49xf32>,
    %cst_371 = arith.constant 0.000000e+00 : f32
    %446 = vector.broadcast %cst_371 : f32 to vector<2x49xf32>
    %447 = vector.extract_strided_slice %191 {offsets = [0, 8], sizes = [8, 49], strides = [1, 1]} : vector<8x65xf32> to vector<8x49xf32>
    %c1_372 = arith.constant 1 : index
    %c0_373 = arith.constant 0 : index
    %c0_374 = arith.constant 0 : index
    %c0_375 = arith.constant 0 : index
    %448 = vector.load %arg6[%c1_372, %c0_373, %c0_374, %c0_375] : memref<4x4x2x8xf32, #tpu.memory_space<vmem>>, vector<1x1x2x8xf32>
    %449 = vector.shape_cast %448 : vector<1x1x2x8xf32> to vector<2x8xf32>
    %cst_376 = arith.constant dense<0.000000e+00> : vector<2x49xf32>
    %450 = tpu.matmul %449, %447, %cst_376 {dimension_numbers = #tpu.dot_dimension_numbers<[1], [0], [0], [1], [0, 0, 1, 1], [], []>} : vector<2x8xf32>, vector<8x49xf32>, vector<2x49xf32> -> vector<2x49xf32>
    %451 = arith.addf %446, %450 : vector<2x49xf32>
    %452 = vector.extract_strided_slice %189 {offsets = [0, 8], sizes = [8, 49], strides = [1, 1]} : vector<8x65xf32> to vector<8x49xf32>
    %c1_377 = arith.constant 1 : index
    %c2_378 = arith.constant 2 : index
    %c0_379 = arith.constant 0 : index
    %c0_380 = arith.constant 0 : index
    %453 = vector.load %arg6[%c1_377, %c2_378, %c0_379, %c0_380] : memref<4x4x2x8xf32, #tpu.memory_space<vmem>>, vector<1x1x2x8xf32>
    %454 = vector.shape_cast %453 : vector<1x1x2x8xf32> to vector<2x8xf32>
    %cst_381 = arith.constant dense<0.000000e+00> : vector<2x49xf32>
    %455 = tpu.matmul %454, %452, %cst_381 {dimension_numbers = #tpu.dot_dimension_numbers<[1], [0], [0], [1], [0, 0, 1, 1], [], []>} : vector<2x8xf32>, vector<8x49xf32>, vector<2x49xf32> -> vector<2x49xf32>
    %456 = arith.addf %451, %455 : vector<2x49xf32>
    %457 = vector.extract_strided_slice %187 {offsets = [0, 8], sizes = [8, 49], strides = [1, 1]} : vector<8x65xf32> to vector<8x49xf32>
    %c3_382 = arith.constant 3 : index
    %c0_383 = arith.constant 0 : index
    %c0_384 = arith.constant 0 : index
    %c0_385 = arith.constant 0 : index
    %458 = vector.load %arg6[%c3_382, %c0_383, %c0_384, %c0_385] : memref<4x4x2x8xf32, #tpu.memory_space<vmem>>, vector<1x1x2x8xf32>
    %459 = vector.shape_cast %458 : vector<1x1x2x8xf32> to vector<2x8xf32>
    %cst_386 = arith.constant dense<0.000000e+00> : vector<2x49xf32>
    %460 = tpu.matmul %459, %457, %cst_386 {dimension_numbers = #tpu.dot_dimension_numbers<[1], [0], [0], [1], [0, 0, 1, 1], [], []>} : vector<2x8xf32>, vector<8x49xf32>, vector<2x49xf32> -> vector<2x49xf32>
    %461 = arith.addf %456, %460 : vector<2x49xf32>
    %462 = vector.extract_strided_slice %185 {offsets = [0, 8], sizes = [8, 49], strides = [1, 1]} : vector<8x65xf32> to vector<8x49xf32>
    %c3_387 = arith.constant 3 : index
    %c2_388 = arith.constant 2 : index
    %c0_389 = arith.constant 0 : index
    %c0_390 = arith.constant 0 : index
    %463 = vector.load %arg6[%c3_387, %c2_388, %c0_389, %c0_390] : memref<4x4x2x8xf32, #tpu.memory_space<vmem>>, vector<1x1x2x8xf32>
    %464 = vector.shape_cast %463 : vector<1x1x2x8xf32> to vector<2x8xf32>
    %cst_391 = arith.constant dense<0.000000e+00> : vector<2x49xf32>
    %465 = tpu.matmul %464, %462, %cst_391 {dimension_numbers = #tpu.dot_dimension_numbers<[1], [0], [0], [1], [0, 0, 1, 1], [], []>} : vector<2x8xf32>, vector<8x49xf32>, vector<2x49xf32> -> vector<2x49xf32>
    %466 = arith.addf %461, %465 : vector<2x49xf32>
    %c0_392 = arith.constant 0 : index
    %c0_393 = arith.constant 0 : index
    %467 = vector.load %arg7[%c0_392, %c0_393] : memref<2x1xf32, #tpu.memory_space<vmem>>, vector<2x1xf32>
    %468 = vector.broadcast %467 : vector<2x1xf32> to vector<2x49xf32>
    %469 = arith.addf %466, %468 : vector<2x49xf32>
    %470 = math.tanh %469 : vector<2x49xf32>
    %c0_394 = arith.constant 0 : index
    %c441 = arith.constant 441 : index
    %471 = vector.load %arg8[%c0_394, %c441] : memref<2x784xf32, #tpu.memory_space<vmem>>, vector<2x49xf32>
    tpu.vector_store %arg8[%c0_394, %c441], %470 {strides = array<i32>} : memref<2x784xf32, #tpu.memory_space<vmem>>, vector<2x49xf32>,
    %cst_395 = arith.constant 0.000000e+00 : f32
    %472 = vector.broadcast %cst_395 : f32 to vector<2x49xf32>
    %473 = vector.extract_strided_slice %191 {offsets = [0, 8], sizes = [8, 49], strides = [1, 1]} : vector<8x65xf32> to vector<8x49xf32>
    %c1_396 = arith.constant 1 : index
    %c1_397 = arith.constant 1 : index
    %c0_398 = arith.constant 0 : index
    %c0_399 = arith.constant 0 : index
    %474 = vector.load %arg6[%c1_396, %c1_397, %c0_398, %c0_399] : memref<4x4x2x8xf32, #tpu.memory_space<vmem>>, vector<1x1x2x8xf32>
    %475 = vector.shape_cast %474 : vector<1x1x2x8xf32> to vector<2x8xf32>
    %cst_400 = arith.constant dense<0.000000e+00> : vector<2x49xf32>
    %476 = tpu.matmul %475, %473, %cst_400 {dimension_numbers = #tpu.dot_dimension_numbers<[1], [0], [0], [1], [0, 0, 1, 1], [], []>} : vector<2x8xf32>, vector<8x49xf32>, vector<2x49xf32> -> vector<2x49xf32>
    %477 = arith.addf %472, %476 : vector<2x49xf32>
    %478 = vector.extract_strided_slice %189 {offsets = [0, 8], sizes = [8, 49], strides = [1, 1]} : vector<8x65xf32> to vector<8x49xf32>
    %c1_401 = arith.constant 1 : index
    %c3_402 = arith.constant 3 : index
    %c0_403 = arith.constant 0 : index
    %c0_404 = arith.constant 0 : index
    %479 = vector.load %arg6[%c1_401, %c3_402, %c0_403, %c0_404] : memref<4x4x2x8xf32, #tpu.memory_space<vmem>>, vector<1x1x2x8xf32>
    %480 = vector.shape_cast %479 : vector<1x1x2x8xf32> to vector<2x8xf32>
    %cst_405 = arith.constant dense<0.000000e+00> : vector<2x49xf32>
    %481 = tpu.matmul %480, %478, %cst_405 {dimension_numbers = #tpu.dot_dimension_numbers<[1], [0], [0], [1], [0, 0, 1, 1], [], []>} : vector<2x8xf32>, vector<8x49xf32>, vector<2x49xf32> -> vector<2x49xf32>
    %482 = arith.addf %477, %481 : vector<2x49xf32>
    %483 = vector.extract_strided_slice %187 {offsets = [0, 8], sizes = [8, 49], strides = [1, 1]} : vector<8x65xf32> to vector<8x49xf32>
    %c3_406 = arith.constant 3 : index
    %c1_407 = arith.constant 1 : index
    %c0_408 = arith.constant 0 : index
    %c0_409 = arith.constant 0 : index
    %484 = vector.load %arg6[%c3_406, %c1_407, %c0_408, %c0_409] : memref<4x4x2x8xf32, #tpu.memory_space<vmem>>, vector<1x1x2x8xf32>
    %485 = vector.shape_cast %484 : vector<1x1x2x8xf32> to vector<2x8xf32>
    %cst_410 = arith.constant dense<0.000000e+00> : vector<2x49xf32>
    %486 = tpu.matmul %485, %483, %cst_410 {dimension_numbers = #tpu.dot_dimension_numbers<[1], [0], [0], [1], [0, 0, 1, 1], [], []>} : vector<2x8xf32>, vector<8x49xf32>, vector<2x49xf32> -> vector<2x49xf32>
    %487 = arith.addf %482, %486 : vector<2x49xf32>
    %488 = vector.extract_strided_slice %185 {offsets = [0, 8], sizes = [8, 49], strides = [1, 1]} : vector<8x65xf32> to vector<8x49xf32>
    %c3_411 = arith.constant 3 : index
    %c3_412 = arith.constant 3 : index
    %c0_413 = arith.constant 0 : index
    %c0_414 = arith.constant 0 : index
    %489 = vector.load %arg6[%c3_411, %c3_412, %c0_413, %c0_414] : memref<4x4x2x8xf32, #tpu.memory_space<vmem>>, vector<1x1x2x8xf32>
    %490 = vector.shape_cast %489 : vector<1x1x2x8xf32> to vector<2x8xf32>
    %cst_415 = arith.constant dense<0.000000e+00> : vector<2x49xf32>
    %491 = tpu.matmul %490, %488, %cst_415 {dimension_numbers = #tpu.dot_dimension_numbers<[1], [0], [0], [1], [0, 0, 1, 1], [], []>} : vector<2x8xf32>, vector<8x49xf32>, vector<2x49xf32> -> vector<2x49xf32>
    %492 = arith.addf %487, %491 : vector<2x49xf32>
    %c0_416 = arith.constant 0 : index
    %c0_417 = arith.constant 0 : index
    %493 = vector.load %arg7[%c0_416, %c0_417] : memref<2x1xf32, #tpu.memory_space<vmem>>, vector<2x1xf32>
    %494 = vector.broadcast %493 : vector<2x1xf32> to vector<2x49xf32>
    %495 = arith.addf %492, %494 : vector<2x49xf32>
    %496 = math.tanh %495 : vector<2x49xf32>
    %c0_418 = arith.constant 0 : index
    %c490 = arith.constant 490 : index
    %497 = vector.load %arg8[%c0_418, %c490] : memref<2x784xf32, #tpu.memory_space<vmem>>, vector<2x49xf32>
    tpu.vector_store %arg8[%c0_418, %c490], %496 {strides = array<i32>} : memref<2x784xf32, #tpu.memory_space<vmem>>, vector<2x49xf32>,
    %cst_419 = arith.constant 0.000000e+00 : f32
    %498 = vector.broadcast %cst_419 : f32 to vector<2x49xf32>
    %499 = vector.extract_strided_slice %189 {offsets = [0, 9], sizes = [8, 49], strides = [1, 1]} : vector<8x65xf32> to vector<8x49xf32>
    %500 = vector.broadcast %24 : vector<1x49xf32> to vector<8x49xf32>
    %501 = arith.mulf %499, %500 : vector<8x49xf32>
    %c1_420 = arith.constant 1 : index
    %c0_421 = arith.constant 0 : index
    %c0_422 = arith.constant 0 : index
    %c0_423 = arith.constant 0 : index
    %502 = vector.load %arg6[%c1_420, %c0_421, %c0_422, %c0_423] : memref<4x4x2x8xf32, #tpu.memory_space<vmem>>, vector<1x1x2x8xf32>
    %503 = vector.shape_cast %502 : vector<1x1x2x8xf32> to vector<2x8xf32>
    %cst_424 = arith.constant dense<0.000000e+00> : vector<2x49xf32>
    %504 = tpu.matmul %503, %501, %cst_424 {dimension_numbers = #tpu.dot_dimension_numbers<[1], [0], [0], [1], [0, 0, 1, 1], [], []>} : vector<2x8xf32>, vector<8x49xf32>, vector<2x49xf32> -> vector<2x49xf32>
    %505 = arith.addf %498, %504 : vector<2x49xf32>
    %506 = vector.extract_strided_slice %191 {offsets = [0, 8], sizes = [8, 49], strides = [1, 1]} : vector<8x65xf32> to vector<8x49xf32>
    %c1_425 = arith.constant 1 : index
    %c2_426 = arith.constant 2 : index
    %c0_427 = arith.constant 0 : index
    %c0_428 = arith.constant 0 : index
    %507 = vector.load %arg6[%c1_425, %c2_426, %c0_427, %c0_428] : memref<4x4x2x8xf32, #tpu.memory_space<vmem>>, vector<1x1x2x8xf32>
    %508 = vector.shape_cast %507 : vector<1x1x2x8xf32> to vector<2x8xf32>
    %cst_429 = arith.constant dense<0.000000e+00> : vector<2x49xf32>
    %509 = tpu.matmul %508, %506, %cst_429 {dimension_numbers = #tpu.dot_dimension_numbers<[1], [0], [0], [1], [0, 0, 1, 1], [], []>} : vector<2x8xf32>, vector<8x49xf32>, vector<2x49xf32> -> vector<2x49xf32>
    %510 = arith.addf %505, %509 : vector<2x49xf32>
    %511 = vector.extract_strided_slice %185 {offsets = [0, 9], sizes = [8, 49], strides = [1, 1]} : vector<8x65xf32> to vector<8x49xf32>
    %512 = vector.broadcast %24 : vector<1x49xf32> to vector<8x49xf32>
    %513 = arith.mulf %511, %512 : vector<8x49xf32>
    %c3_430 = arith.constant 3 : index
    %c0_431 = arith.constant 0 : index
    %c0_432 = arith.constant 0 : index
    %c0_433 = arith.constant 0 : index
    %514 = vector.load %arg6[%c3_430, %c0_431, %c0_432, %c0_433] : memref<4x4x2x8xf32, #tpu.memory_space<vmem>>, vector<1x1x2x8xf32>
    %515 = vector.shape_cast %514 : vector<1x1x2x8xf32> to vector<2x8xf32>
    %cst_434 = arith.constant dense<0.000000e+00> : vector<2x49xf32>
    %516 = tpu.matmul %515, %513, %cst_434 {dimension_numbers = #tpu.dot_dimension_numbers<[1], [0], [0], [1], [0, 0, 1, 1], [], []>} : vector<2x8xf32>, vector<8x49xf32>, vector<2x49xf32> -> vector<2x49xf32>
    %517 = arith.addf %510, %516 : vector<2x49xf32>
    %518 = vector.extract_strided_slice %187 {offsets = [0, 8], sizes = [8, 49], strides = [1, 1]} : vector<8x65xf32> to vector<8x49xf32>
    %c3_435 = arith.constant 3 : index
    %c2_436 = arith.constant 2 : index
    %c0_437 = arith.constant 0 : index
    %c0_438 = arith.constant 0 : index
    %519 = vector.load %arg6[%c3_435, %c2_436, %c0_437, %c0_438] : memref<4x4x2x8xf32, #tpu.memory_space<vmem>>, vector<1x1x2x8xf32>
    %520 = vector.shape_cast %519 : vector<1x1x2x8xf32> to vector<2x8xf32>
    %cst_439 = arith.constant dense<0.000000e+00> : vector<2x49xf32>
    %521 = tpu.matmul %520, %518, %cst_439 {dimension_numbers = #tpu.dot_dimension_numbers<[1], [0], [0], [1], [0, 0, 1, 1], [], []>} : vector<2x8xf32>, vector<8x49xf32>, vector<2x49xf32> -> vector<2x49xf32>
    %522 = arith.addf %517, %521 : vector<2x49xf32>
    %c0_440 = arith.constant 0 : index
    %c0_441 = arith.constant 0 : index
    %523 = vector.load %arg7[%c0_440, %c0_441] : memref<2x1xf32, #tpu.memory_space<vmem>>, vector<2x1xf32>
    %524 = vector.broadcast %523 : vector<2x1xf32> to vector<2x49xf32>
    %525 = arith.addf %522, %524 : vector<2x49xf32>
    %526 = math.tanh %525 : vector<2x49xf32>
    %c0_442 = arith.constant 0 : index
    %c539 = arith.constant 539 : index
    %527 = vector.load %arg8[%c0_442, %c539] : memref<2x784xf32, #tpu.memory_space<vmem>>, vector<2x49xf32>
    tpu.vector_store %arg8[%c0_442, %c539], %526 {strides = array<i32>} : memref<2x784xf32, #tpu.memory_space<vmem>>, vector<2x49xf32>,
    %cst_443 = arith.constant 0.000000e+00 : f32
    %528 = vector.broadcast %cst_443 : f32 to vector<2x49xf32>
    %529 = vector.extract_strided_slice %185 {offsets = [0, 15], sizes = [8, 49], strides = [1, 1]} : vector<8x65xf32> to vector<8x49xf32>
    %c0_444 = arith.constant 0 : index
    %c1_445 = arith.constant 1 : index
    %c0_446 = arith.constant 0 : index
    %c0_447 = arith.constant 0 : index
    %530 = vector.load %arg6[%c0_444, %c1_445, %c0_446, %c0_447] : memref<4x4x2x8xf32, #tpu.memory_space<vmem>>, vector<1x1x2x8xf32>
    %531 = vector.shape_cast %530 : vector<1x1x2x8xf32> to vector<2x8xf32>
    %cst_448 = arith.constant dense<0.000000e+00> : vector<2x49xf32>
    %532 = tpu.matmul %531, %529, %cst_448 {dimension_numbers = #tpu.dot_dimension_numbers<[1], [0], [0], [1], [0, 0, 1, 1], [], []>} : vector<2x8xf32>, vector<8x49xf32>, vector<2x49xf32> -> vector<2x49xf32>
    %533 = arith.addf %528, %532 : vector<2x49xf32>
    %534 = vector.extract_strided_slice %187 {offsets = [0, 14], sizes = [8, 49], strides = [1, 1]} : vector<8x65xf32> to vector<8x49xf32>
    %535 = vector.broadcast %20 : vector<1x49xf32> to vector<8x49xf32>
    %536 = arith.mulf %534, %535 : vector<8x49xf32>
    %c0_449 = arith.constant 0 : index
    %c3_450 = arith.constant 3 : index
    %c0_451 = arith.constant 0 : index
    %c0_452 = arith.constant 0 : index
    %537 = vector.load %arg6[%c0_449, %c3_450, %c0_451, %c0_452] : memref<4x4x2x8xf32, #tpu.memory_space<vmem>>, vector<1x1x2x8xf32>
    %538 = vector.shape_cast %537 : vector<1x1x2x8xf32> to vector<2x8xf32>
    %cst_453 = arith.constant dense<0.000000e+00> : vector<2x49xf32>
    %539 = tpu.matmul %538, %536, %cst_453 {dimension_numbers = #tpu.dot_dimension_numbers<[1], [0], [0], [1], [0, 0, 1, 1], [], []>} : vector<2x8xf32>, vector<8x49xf32>, vector<2x49xf32> -> vector<2x49xf32>
    %540 = arith.addf %533, %539 : vector<2x49xf32>
    %541 = vector.extract_strided_slice %189 {offsets = [0, 8], sizes = [8, 49], strides = [1, 1]} : vector<8x65xf32> to vector<8x49xf32>
    %c2_454 = arith.constant 2 : index
    %c1_455 = arith.constant 1 : index
    %c0_456 = arith.constant 0 : index
    %c0_457 = arith.constant 0 : index
    %542 = vector.load %arg6[%c2_454, %c1_455, %c0_456, %c0_457] : memref<4x4x2x8xf32, #tpu.memory_space<vmem>>, vector<1x1x2x8xf32>
    %543 = vector.shape_cast %542 : vector<1x1x2x8xf32> to vector<2x8xf32>
    %cst_458 = arith.constant dense<0.000000e+00> : vector<2x49xf32>
    %544 = tpu.matmul %543, %541, %cst_458 {dimension_numbers = #tpu.dot_dimension_numbers<[1], [0], [0], [1], [0, 0, 1, 1], [], []>} : vector<2x8xf32>, vector<8x49xf32>, vector<2x49xf32> -> vector<2x49xf32>
    %545 = arith.addf %540, %544 : vector<2x49xf32>
    %546 = vector.extract_strided_slice %191 {offsets = [0, 7], sizes = [8, 49], strides = [1, 1]} : vector<8x65xf32> to vector<8x49xf32>
    %547 = vector.broadcast %20 : vector<1x49xf32> to vector<8x49xf32>
    %548 = arith.mulf %546, %547 : vector<8x49xf32>
    %c2_459 = arith.constant 2 : index
    %c3_460 = arith.constant 3 : index
    %c0_461 = arith.constant 0 : index
    %c0_462 = arith.constant 0 : index
    %549 = vector.load %arg6[%c2_459, %c3_460, %c0_461, %c0_462] : memref<4x4x2x8xf32, #tpu.memory_space<vmem>>, vector<1x1x2x8xf32>
    %550 = vector.shape_cast %549 : vector<1x1x2x8xf32> to vector<2x8xf32>
    %cst_463 = arith.constant dense<0.000000e+00> : vector<2x49xf32>
    %551 = tpu.matmul %550, %548, %cst_463 {dimension_numbers = #tpu.dot_dimension_numbers<[1], [0], [0], [1], [0, 0, 1, 1], [], []>} : vector<2x8xf32>, vector<8x49xf32>, vector<2x49xf32> -> vector<2x49xf32>
    %552 = arith.addf %545, %551 : vector<2x49xf32>
    %c0_464 = arith.constant 0 : index
    %c0_465 = arith.constant 0 : index
    %553 = vector.load %arg7[%c0_464, %c0_465] : memref<2x1xf32, #tpu.memory_space<vmem>>, vector<2x1xf32>
    %554 = vector.broadcast %553 : vector<2x1xf32> to vector<2x49xf32>
    %555 = arith.addf %552, %554 : vector<2x49xf32>
    %556 = math.tanh %555 : vector<2x49xf32>
    %c0_466 = arith.constant 0 : index
    %c588 = arith.constant 588 : index
    %557 = vector.load %arg8[%c0_466, %c588] : memref<2x784xf32, #tpu.memory_space<vmem>>, vector<2x49xf32>
    tpu.vector_store %arg8[%c0_466, %c588], %556 {strides = array<i32>} : memref<2x784xf32, #tpu.memory_space<vmem>>, vector<2x49xf32>,
    %cst_467 = arith.constant 0.000000e+00 : f32
    %558 = vector.broadcast %cst_467 : f32 to vector<2x49xf32>
    %559 = vector.extract_strided_slice %187 {offsets = [0, 15], sizes = [8, 49], strides = [1, 1]} : vector<8x65xf32> to vector<8x49xf32>
    %c0_468 = arith.constant 0 : index
    %c0_469 = arith.constant 0 : index
    %c0_470 = arith.constant 0 : index
    %c0_471 = arith.constant 0 : index
    %560 = vector.load %arg6[%c0_468, %c0_469, %c0_470, %c0_471] : memref<4x4x2x8xf32, #tpu.memory_space<vmem>>, vector<1x1x2x8xf32>
    %561 = vector.shape_cast %560 : vector<1x1x2x8xf32> to vector<2x8xf32>
    %cst_472 = arith.constant dense<0.000000e+00> : vector<2x49xf32>
    %562 = tpu.matmul %561, %559, %cst_472 {dimension_numbers = #tpu.dot_dimension_numbers<[1], [0], [0], [1], [0, 0, 1, 1], [], []>} : vector<2x8xf32>, vector<8x49xf32>, vector<2x49xf32> -> vector<2x49xf32>
    %563 = arith.addf %558, %562 : vector<2x49xf32>
    %564 = vector.extract_strided_slice %185 {offsets = [0, 15], sizes = [8, 49], strides = [1, 1]} : vector<8x65xf32> to vector<8x49xf32>
    %c0_473 = arith.constant 0 : index
    %c2_474 = arith.constant 2 : index
    %c0_475 = arith.constant 0 : index
    %c0_476 = arith.constant 0 : index
    %565 = vector.load %arg6[%c0_473, %c2_474, %c0_475, %c0_476] : memref<4x4x2x8xf32, #tpu.memory_space<vmem>>, vector<1x1x2x8xf32>
    %566 = vector.shape_cast %565 : vector<1x1x2x8xf32> to vector<2x8xf32>
    %cst_477 = arith.constant dense<0.000000e+00> : vector<2x49xf32>
    %567 = tpu.matmul %566, %564, %cst_477 {dimension_numbers = #tpu.dot_dimension_numbers<[1], [0], [0], [1], [0, 0, 1, 1], [], []>} : vector<2x8xf32>, vector<8x49xf32>, vector<2x49xf32> -> vector<2x49xf32>
    %568 = arith.addf %563, %567 : vector<2x49xf32>
    %569 = vector.extract_strided_slice %191 {offsets = [0, 8], sizes = [8, 49], strides = [1, 1]} : vector<8x65xf32> to vector<8x49xf32>
    %c2_478 = arith.constant 2 : index
    %c0_479 = arith.constant 0 : index
    %c0_480 = arith.constant 0 : index
    %c0_481 = arith.constant 0 : index
    %570 = vector.load %arg6[%c2_478, %c0_479, %c0_480, %c0_481] : memref<4x4x2x8xf32, #tpu.memory_space<vmem>>, vector<1x1x2x8xf32>
    %571 = vector.shape_cast %570 : vector<1x1x2x8xf32> to vector<2x8xf32>
    %cst_482 = arith.constant dense<0.000000e+00> : vector<2x49xf32>
    %572 = tpu.matmul %571, %569, %cst_482 {dimension_numbers = #tpu.dot_dimension_numbers<[1], [0], [0], [1], [0, 0, 1, 1], [], []>} : vector<2x8xf32>, vector<8x49xf32>, vector<2x49xf32> -> vector<2x49xf32>
    %573 = arith.addf %568, %572 : vector<2x49xf32>
    %574 = vector.extract_strided_slice %189 {offsets = [0, 8], sizes = [8, 49], strides = [1, 1]} : vector<8x65xf32> to vector<8x49xf32>
    %c2_483 = arith.constant 2 : index
    %c2_484 = arith.constant 2 : index
    %c0_485 = arith.constant 0 : index
    %c0_486 = arith.constant 0 : index
    %575 = vector.load %arg6[%c2_483, %c2_484, %c0_485, %c0_486] : memref<4x4x2x8xf32, #tpu.memory_space<vmem>>, vector<1x1x2x8xf32>
    %576 = vector.shape_cast %575 : vector<1x1x2x8xf32> to vector<2x8xf32>
    %cst_487 = arith.constant dense<0.000000e+00> : vector<2x49xf32>
    %577 = tpu.matmul %576, %574, %cst_487 {dimension_numbers = #tpu.dot_dimension_numbers<[1], [0], [0], [1], [0, 0, 1, 1], [], []>} : vector<2x8xf32>, vector<8x49xf32>, vector<2x49xf32> -> vector<2x49xf32>
    %578 = arith.addf %573, %577 : vector<2x49xf32>
    %c0_488 = arith.constant 0 : index
    %c0_489 = arith.constant 0 : index
    %579 = vector.load %arg7[%c0_488, %c0_489] : memref<2x1xf32, #tpu.memory_space<vmem>>, vector<2x1xf32>
    %580 = vector.broadcast %579 : vector<2x1xf32> to vector<2x49xf32>
    %581 = arith.addf %578, %580 : vector<2x49xf32>
    %582 = math.tanh %581 : vector<2x49xf32>
    %c0_490 = arith.constant 0 : index
    %c637 = arith.constant 637 : index
    %583 = vector.load %arg8[%c0_490, %c637] : memref<2x784xf32, #tpu.memory_space<vmem>>, vector<2x49xf32>
    tpu.vector_store %arg8[%c0_490, %c637], %582 {strides = array<i32>} : memref<2x784xf32, #tpu.memory_space<vmem>>, vector<2x49xf32>,
    %cst_491 = arith.constant 0.000000e+00 : f32
    %584 = vector.broadcast %cst_491 : f32 to vector<2x49xf32>
    %585 = vector.extract_strided_slice %187 {offsets = [0, 15], sizes = [8, 49], strides = [1, 1]} : vector<8x65xf32> to vector<8x49xf32>
    %c0_492 = arith.constant 0 : index
    %c1_493 = arith.constant 1 : index
    %c0_494 = arith.constant 0 : index
    %c0_495 = arith.constant 0 : index
    %586 = vector.load %arg6[%c0_492, %c1_493, %c0_494, %c0_495] : memref<4x4x2x8xf32, #tpu.memory_space<vmem>>, vector<1x1x2x8xf32>
    %587 = vector.shape_cast %586 : vector<1x1x2x8xf32> to vector<2x8xf32>
    %cst_496 = arith.constant dense<0.000000e+00> : vector<2x49xf32>
    %588 = tpu.matmul %587, %585, %cst_496 {dimension_numbers = #tpu.dot_dimension_numbers<[1], [0], [0], [1], [0, 0, 1, 1], [], []>} : vector<2x8xf32>, vector<8x49xf32>, vector<2x49xf32> -> vector<2x49xf32>
    %589 = arith.addf %584, %588 : vector<2x49xf32>
    %590 = vector.extract_strided_slice %185 {offsets = [0, 15], sizes = [8, 49], strides = [1, 1]} : vector<8x65xf32> to vector<8x49xf32>
    %c0_497 = arith.constant 0 : index
    %c3_498 = arith.constant 3 : index
    %c0_499 = arith.constant 0 : index
    %c0_500 = arith.constant 0 : index
    %591 = vector.load %arg6[%c0_497, %c3_498, %c0_499, %c0_500] : memref<4x4x2x8xf32, #tpu.memory_space<vmem>>, vector<1x1x2x8xf32>
    %592 = vector.shape_cast %591 : vector<1x1x2x8xf32> to vector<2x8xf32>
    %cst_501 = arith.constant dense<0.000000e+00> : vector<2x49xf32>
    %593 = tpu.matmul %592, %590, %cst_501 {dimension_numbers = #tpu.dot_dimension_numbers<[1], [0], [0], [1], [0, 0, 1, 1], [], []>} : vector<2x8xf32>, vector<8x49xf32>, vector<2x49xf32> -> vector<2x49xf32>
    %594 = arith.addf %589, %593 : vector<2x49xf32>
    %595 = vector.extract_strided_slice %191 {offsets = [0, 8], sizes = [8, 49], strides = [1, 1]} : vector<8x65xf32> to vector<8x49xf32>
    %c2_502 = arith.constant 2 : index
    %c1_503 = arith.constant 1 : index
    %c0_504 = arith.constant 0 : index
    %c0_505 = arith.constant 0 : index
    %596 = vector.load %arg6[%c2_502, %c1_503, %c0_504, %c0_505] : memref<4x4x2x8xf32, #tpu.memory_space<vmem>>, vector<1x1x2x8xf32>
    %597 = vector.shape_cast %596 : vector<1x1x2x8xf32> to vector<2x8xf32>
    %cst_506 = arith.constant dense<0.000000e+00> : vector<2x49xf32>
    %598 = tpu.matmul %597, %595, %cst_506 {dimension_numbers = #tpu.dot_dimension_numbers<[1], [0], [0], [1], [0, 0, 1, 1], [], []>} : vector<2x8xf32>, vector<8x49xf32>, vector<2x49xf32> -> vector<2x49xf32>
    %599 = arith.addf %594, %598 : vector<2x49xf32>
    %600 = vector.extract_strided_slice %189 {offsets = [0, 8], sizes = [8, 49], strides = [1, 1]} : vector<8x65xf32> to vector<8x49xf32>
    %c2_507 = arith.constant 2 : index
    %c3_508 = arith.constant 3 : index
    %c0_509 = arith.constant 0 : index
    %c0_510 = arith.constant 0 : index
    %601 = vector.load %arg6[%c2_507, %c3_508, %c0_509, %c0_510] : memref<4x4x2x8xf32, #tpu.memory_space<vmem>>, vector<1x1x2x8xf32>
    %602 = vector.shape_cast %601 : vector<1x1x2x8xf32> to vector<2x8xf32>
    %cst_511 = arith.constant dense<0.000000e+00> : vector<2x49xf32>
    %603 = tpu.matmul %602, %600, %cst_511 {dimension_numbers = #tpu.dot_dimension_numbers<[1], [0], [0], [1], [0, 0, 1, 1], [], []>} : vector<2x8xf32>, vector<8x49xf32>, vector<2x49xf32> -> vector<2x49xf32>
    %604 = arith.addf %599, %603 : vector<2x49xf32>
    %c0_512 = arith.constant 0 : index
    %c0_513 = arith.constant 0 : index
    %605 = vector.load %arg7[%c0_512, %c0_513] : memref<2x1xf32, #tpu.memory_space<vmem>>, vector<2x1xf32>
    %606 = vector.broadcast %605 : vector<2x1xf32> to vector<2x49xf32>
    %607 = arith.addf %604, %606 : vector<2x49xf32>
    %608 = math.tanh %607 : vector<2x49xf32>
    %c0_514 = arith.constant 0 : index
    %c686 = arith.constant 686 : index
    %609 = vector.load %arg8[%c0_514, %c686] : memref<2x784xf32, #tpu.memory_space<vmem>>, vector<2x49xf32>
    tpu.vector_store %arg8[%c0_514, %c686], %608 {strides = array<i32>} : memref<2x784xf32, #tpu.memory_space<vmem>>, vector<2x49xf32>,
    %cst_515 = arith.constant 0.000000e+00 : f32
    %610 = vector.broadcast %cst_515 : f32 to vector<2x49xf32>
    %611 = vector.extract_strided_slice %185 {offsets = [0, 16], sizes = [8, 49], strides = [1, 1]} : vector<8x65xf32> to vector<8x49xf32>
    %612 = vector.broadcast %24 : vector<1x49xf32> to vector<8x49xf32>
    %613 = arith.mulf %611, %612 : vector<8x49xf32>
    %c0_516 = arith.constant 0 : index
    %c0_517 = arith.constant 0 : index
    %c0_518 = arith.constant 0 : index
    %c0_519 = arith.constant 0 : index
    %614 = vector.load %arg6[%c0_516, %c0_517, %c0_518, %c0_519] : memref<4x4x2x8xf32, #tpu.memory_space<vmem>>, vector<1x1x2x8xf32>
    %615 = vector.shape_cast %614 : vector<1x1x2x8xf32> to vector<2x8xf32>
    %cst_520 = arith.constant dense<0.000000e+00> : vector<2x49xf32>
    %616 = tpu.matmul %615, %613, %cst_520 {dimension_numbers = #tpu.dot_dimension_numbers<[1], [0], [0], [1], [0, 0, 1, 1], [], []>} : vector<2x8xf32>, vector<8x49xf32>, vector<2x49xf32> -> vector<2x49xf32>
    %617 = arith.addf %610, %616 : vector<2x49xf32>
    %618 = vector.extract_strided_slice %187 {offsets = [0, 15], sizes = [8, 49], strides = [1, 1]} : vector<8x65xf32> to vector<8x49xf32>
    %c0_521 = arith.constant 0 : index
    %c2_522 = arith.constant 2 : index
    %c0_523 = arith.constant 0 : index
    %c0_524 = arith.constant 0 : index
    %619 = vector.load %arg6[%c0_521, %c2_522, %c0_523, %c0_524] : memref<4x4x2x8xf32, #tpu.memory_space<vmem>>, vector<1x1x2x8xf32>
    %620 = vector.shape_cast %619 : vector<1x1x2x8xf32> to vector<2x8xf32>
    %cst_525 = arith.constant dense<0.000000e+00> : vector<2x49xf32>
    %621 = tpu.matmul %620, %618, %cst_525 {dimension_numbers = #tpu.dot_dimension_numbers<[1], [0], [0], [1], [0, 0, 1, 1], [], []>} : vector<2x8xf32>, vector<8x49xf32>, vector<2x49xf32> -> vector<2x49xf32>
    %622 = arith.addf %617, %621 : vector<2x49xf32>
    %623 = vector.extract_strided_slice %189 {offsets = [0, 9], sizes = [8, 49], strides = [1, 1]} : vector<8x65xf32> to vector<8x49xf32>
    %624 = vector.broadcast %24 : vector<1x49xf32> to vector<8x49xf32>
    %625 = arith.mulf %623, %624 : vector<8x49xf32>
    %c2_526 = arith.constant 2 : index
    %c0_527 = arith.constant 0 : index
    %c0_528 = arith.constant 0 : index
    %c0_529 = arith.constant 0 : index
    %626 = vector.load %arg6[%c2_526, %c0_527, %c0_528, %c0_529] : memref<4x4x2x8xf32, #tpu.memory_space<vmem>>, vector<1x1x2x8xf32>
    %627 = vector.shape_cast %626 : vector<1x1x2x8xf32> to vector<2x8xf32>
    %cst_530 = arith.constant dense<0.000000e+00> : vector<2x49xf32>
    %628 = tpu.matmul %627, %625, %cst_530 {dimension_numbers = #tpu.dot_dimension_numbers<[1], [0], [0], [1], [0, 0, 1, 1], [], []>} : vector<2x8xf32>, vector<8x49xf32>, vector<2x49xf32> -> vector<2x49xf32>
    %629 = arith.addf %622, %628 : vector<2x49xf32>
    %630 = vector.extract_strided_slice %191 {offsets = [0, 8], sizes = [8, 49], strides = [1, 1]} : vector<8x65xf32> to vector<8x49xf32>
    %c2_531 = arith.constant 2 : index
    %c2_532 = arith.constant 2 : index
    %c0_533 = arith.constant 0 : index
    %c0_534 = arith.constant 0 : index
    %631 = vector.load %arg6[%c2_531, %c2_532, %c0_533, %c0_534] : memref<4x4x2x8xf32, #tpu.memory_space<vmem>>, vector<1x1x2x8xf32>
    %632 = vector.shape_cast %631 : vector<1x1x2x8xf32> to vector<2x8xf32>
    %cst_535 = arith.constant dense<0.000000e+00> : vector<2x49xf32>
    %633 = tpu.matmul %632, %630, %cst_535 {dimension_numbers = #tpu.dot_dimension_numbers<[1], [0], [0], [1], [0, 0, 1, 1], [], []>} : vector<2x8xf32>, vector<8x49xf32>, vector<2x49xf32> -> vector<2x49xf32>
    %634 = arith.addf %629, %633 : vector<2x49xf32>
    %c0_536 = arith.constant 0 : index
    %c0_537 = arith.constant 0 : index
    %635 = vector.load %arg7[%c0_536, %c0_537] : memref<2x1xf32, #tpu.memory_space<vmem>>, vector<2x1xf32>
    %636 = vector.broadcast %635 : vector<2x1xf32> to vector<2x49xf32>
    %637 = arith.addf %634, %636 : vector<2x49xf32>
    %638 = math.tanh %637 : vector<2x49xf32>
    %c0_538 = arith.constant 0 : index
    %c735 = arith.constant 735 : index
    %639 = vector.load %arg8[%c0_538, %c735] : memref<2x784xf32, #tpu.memory_space<vmem>>, vector<2x49xf32>
    tpu.vector_store %arg8[%c0_538, %c735], %638 {strides = array<i32>} : memref<2x784xf32, #tpu.memory_space<vmem>>, vector<2x49xf32>,
    return
  }
  func.func @transform_0(%arg0: i32) -> (i32, i32) {
    %c0_i32 = arith.constant 0 : i32
    %c0_i32_0 = arith.constant 0 : i32
    %c0_i32_1 = arith.constant 0 : i32
    return %c0_i32, %c0_i32_0 : i32, i32
  }
  func.func @transform_1(%arg0: i32) -> (i32, i32) {
    %c0_i32 = arith.constant 0 : i32
    %c0_i32_0 = arith.constant 0 : i32
    %c0_i32_1 = arith.constant 0 : i32
    return %c0_i32, %c0_i32_0 : i32, i32
  }
  func.func @transform_2(%arg0: i32) -> (i32, i32) {
    %c0_i32 = arith.constant 0 : i32
    %c0_i32_0 = arith.constant 0 : i32
    %c0_i32_1 = arith.constant 0 : i32
    return %c0_i32, %c0_i32_0 : i32, i32
  }
  func.func @transform_3(%arg0: i32) -> (i32, i32, i32, i32) {
    %c0_i32 = arith.constant 0 : i32
    %c0_i32_0 = arith.constant 0 : i32
    %c0_i32_1 = arith.constant 0 : i32
    %c0_i32_2 = arith.constant 0 : i32
    %c0_i32_3 = arith.constant 0 : i32
    return %c0_i32, %c0_i32_0, %c0_i32_1, %c0_i32_2 : i32, i32, i32, i32
  }
  func.func @transform_4(%arg0: i32) -> (i32, i32) {
    %c0_i32 = arith.constant 0 : i32
    %c0_i32_0 = arith.constant 0 : i32
    %c0_i32_1 = arith.constant 0 : i32
    return %c0_i32, %c0_i32_0 : i32, i32
  }
  func.func @transform_5(%arg0: i32) -> (i32, i32, i32, i32) {
    %c0_i32 = arith.constant 0 : i32
    %c0_i32_0 = arith.constant 0 : i32
    %c0_i32_1 = arith.constant 0 : i32
    %c0_i32_2 = arith.constant 0 : i32
    %c0_i32_3 = arith.constant 0 : i32
    return %c0_i32, %c0_i32_0, %c0_i32_1, %c0_i32_2 : i32, i32, i32, i32
  }
  func.func @transform_6(%arg0: i32) -> (i32, i32) {
    %c0_i32 = arith.constant 0 : i32
    %c0_i32_0 = arith.constant 0 : i32
    %c0_i32_1 = arith.constant 0 : i32
    return %c0_i32, %c0_i32_0 : i32, i32
  }
  func.func @transform_7(%arg0: i32) -> (i32, i32) {
    %c0_i32 = arith.constant 0 : i32
    %c0_i32_0 = arith.constant 0 : i32
    %c0_i32_1 = arith.constant 0 : i32
    return %c0_i32, %c0_i32_0 : i32, i32
  }
}

</mosaic_0001>

<llo_original>
// kernel: decoder_forward.1
$region0: #{decoder_forward.1}
  #allocation0 [shape = 'u32[]', space=smem, size = 0x4, offset = 0x4, fixed_abs, tag = 'smem constant byte address 0x4 - core index']
  #allocation1 [shape = 'u32[72,128]{1,0:T(1,128)}', space=vmem, size = 0x9000, scoped, tag = 'internal scratch']
  #allocation2 [shape = 'f32[16,65]{1,0:T(8,128)}', space=vmem, size = 0x2000, scoped, tag = 'scratch operand']
  #allocation3 [shape = 'f32[2,2,8,65]{3,2,1,0:T(8,128)}', space=vmem, size = 0x4000, scoped, tag = 'scratch operand']
  %s0 = inlined_call_operand.vmem [shape: f32[2,8], index: 0, kind: input, shape index: {}]
  %s1 = inlined_call_operand.vmem [shape: f32[8,392], index: 1, kind: input, shape index: {}]
  %s2 = inlined_call_operand.vmem [shape: f32[1,392], index: 2, kind: input, shape index: {}]
  %s3 = inlined_call_operand.vmem [shape: f32[4,4,8,16], index: 3, kind: input, shape index: {}]
  %s4 = inlined_call_operand.vmem [shape: f32[8,1], index: 4, kind: input, shape index: {}]
  %s5 = inlined_call_operand.vmem [shape: f32[4,4,2,8], index: 5, kind: input, shape index: {}]
  %s6 = inlined_call_operand.vmem [shape: f32[2,1], index: 6, kind: input, shape index: {}]
  %s7 = inlined_call_operand.vmem [shape: f32[2,784], index: 7, kind: output, shape index: {}]
  %s8 = sld [smem:[#allocation0]]
  $region38: #{decoder_forward.1} parent=0
    _
  %s10 = ssub.s32 1, %s8
  %s11 = scalar_select 0, %s10, %s8
  // Predicated region
  $region2: #{decoder_forward.1} parent=0 // pred_check
    _
  $region3: #{decoder_forward.1} parent=0 // pred_check_branch
    %13 = sbr.rel (0) target = $region5
  $region4: #{decoder_forward.1} parent=0 // pred_region
    _
  $region5: #{decoder_forward.1} parent=0 // pred_fallthru
    _
  // Predicated region
  $region6: #{decoder_forward.1} parent=0 // pred_check
    _
  $region7: #{decoder_forward.1} parent=0 // pred_check_branch
    %15 = sbr.rel (0) target = $region9
  $region8: #{decoder_forward.1} parent=0 // pred_region
    _
  $region9: #{decoder_forward.1} parent=0 // pred_fallthru
    _
  // Predicated region
  $region10: #{decoder_forward.1} parent=0 // pred_check
    _
  $region11: #{decoder_forward.1} parent=0 // pred_check_branch
    %17 = sbr.rel (0) target = $region13
  $region12: #{decoder_forward.1} parent=0 // pred_region
    _
  $region13: #{decoder_forward.1} parent=0 // pred_fallthru
    _
  // Predicated region
  $region14: #{decoder_forward.1} parent=0 // pred_check
    _
  $region15: #{decoder_forward.1} parent=0 // pred_check_branch
    %19 = sbr.rel (0) target = $region17
  $region16: #{decoder_forward.1} parent=0 // pred_region
    _
  $region17: #{decoder_forward.1} parent=0 // pred_fallthru
    _
  // Predicated region
  $region18: #{decoder_forward.1} parent=0 // pred_check
    _
  $region19: #{decoder_forward.1} parent=0 // pred_check_branch
    %21 = sbr.rel (0) target = $region21
  $region20: #{decoder_forward.1} parent=0 // pred_region
    _
  $region21: #{decoder_forward.1} parent=0 // pred_fallthru
    _
  // Predicated region
  $region22: #{decoder_forward.1} parent=0 // pred_check
    _
  $region23: #{decoder_forward.1} parent=0 // pred_check_branch
    %23 = sbr.rel (0) target = $region25
  $region24: #{decoder_forward.1} parent=0 // pred_region
    _
  $region25: #{decoder_forward.1} parent=0 // pred_fallthru
    _
  // Predicated region
  $region26: #{decoder_forward.1} parent=0 // pred_check
    _
  $region27: #{decoder_forward.1} parent=0 // pred_check_branch
    %25 = sbr.rel (0) target = $region29
  $region28: #{decoder_forward.1} parent=0 // pred_region
    _
  $region29: #{decoder_forward.1} parent=0 // pred_fallthru
    _
  %v26 = vlaneseq
  %v27 = vand.u32 %v26, 127
  %vm28 = vcmp.lt.s32.totalorder %v27, 0
  %v29 = vsub.s32 0, %v27
  %v30 = vsel %vm28, %v29, %v27
  %v31 = vand.u32 %v30, 65535
  %v32 = vshrl.u32 %v30, 16
  %v34 = vmul.u32 %v31, 9362
  %v35 = vmul.u32 %v31, 37449
  %v36 = vmul.u32 %v32, 9362
  %v37 = vmul.u32 %v32, 37449
  %v38 = vshll.u32 %v35, 16
  %v39 = vshrl.u32 %v35, 16
  %v40 = vshll.u32 %v36, 16
  %v41 = vshrl.u32 %v36, 16
  %vm42 = vc.u32 %v34, %v38
  %v43 = vsel %vm42, 1, 0
  %v44 = vadd.s32 %v34, %v38
  %v45 = vadd.s32 %v37, %v43
  %vm46 = vc.u32 %v44, %v40
  %v47 = vsel %vm46, 1, 0
  %v48 = vadd.s32 %v44, %v40
  %v49 = vadd.s32 %v45, %v47
  %v50 = vadd.s32 %v49, %v39
  %v51 = vadd.s32 %v50, %v41
  %vm52 = vc.u32 %v48, 2454267026
  %v53 = vsel %vm52, 1, 0
  %v54 = vadd.s32 %v51, %v53
  %v55 = vshrl.u32 %v54, 2
  %v56 = vmul.u32 %v55, 7
  %v57 = vsub.s32 %v30, %v56
  %v58 = vsub.s32 0, %v57
  %v59 = vsel %vm28, %v58, %v57
  %vm60 = vcmp.ne.s32.totalorder %v59, 0
  %vm61 = vcmp.lt.s32.totalorder %v59, 0
  %vm62 = vmand %vm61, %vm60
  %v63 = vadd.s32 %v59, 7
  %v64 = vsel %vm62, %v63, %v59
  %vm65 = vcmp.ne.s32.totalorder %v64, 0
  %v66 = vsel %vm65, 1, 0
  %v67 = vcvt.s32.f32 %v66
  %vm68 = vcmp.ne.s32.totalorder %v64, 6
  %v69 = vsel %vm68, 1, 0
  %v70 = vcvt.s32.f32 %v69
  %vm71 = vcmask 531456
  %72 = vst.msk [vmem:[#allocation2] sm:$0xff] %vm71, 0.0
  %73 = vst.msk [vmem:[#allocation2 + $0x8] sm:$0xff] %vm71, 0.0
  %74 = vst.msk [vmem:[#allocation3] sm:$0xff] %vm71, 0.0
  %75 = vst.msk [vmem:[#allocation3 + $0x8] sm:$0xff] %vm71, 0.0
  %76 = vst.msk [vmem:[#allocation3 + $0x10] sm:$0xff] %vm71, 0.0
  %77 = vst.msk [vmem:[#allocation3 + $0x18] sm:$0xff] %vm71, 0.0
  %v78 = vld [vmem:[%s0] sm:$0x3]
  %v79 = vld [vmem:[%s1] sm:$0xff]
  %v80 = vld [vmem:[%s1 + $0x8] sm:$0xff]
  %v81 = vld [vmem:[%s1 + $0x10] sm:$0xff]
  %v82 = vld [vmem:[%s1 + $0x18] sm:$0xff]
  %v83 = vld [vmem:[%s2] sm:$0xf]
  %v85 = vperm.slane %v83, 0
  %v86 = vperm.slane %v83, 1
  %v87 = vperm.slane %v83, 2
  %v88 = vperm.slane %v83, 3
  %vm93 = vcmask 64512
  %v95 = vsel %vm93, %v78, 0
  %97 = vmatpush.msra.mxu0 0.0
  %98 = vmatpush.msra.mxu0 0.0
  %99 = vmatpush.msra.mxu0 0.0
  %100 = vmatpush.msra.mxu0 0.0
  %101 = vmatpush.msra.mxu0 0.0
  %102 = vmatpush.msra.mxu0 0.0
  %103 = vmatpush.msra.mxu0 0.0
  %104 = vmatpush.msra.mxu0 0.0
  %105 = vmatpush.msra.mxu0 0.0
  %106 = vmatpush.msra.mxu0 0.0
  %107 = vmatpush.msra.mxu0 0.0
  %108 = vmatpush.msra.mxu0 0.0
  %109 = vmatpush.msra.mxu0 0.0
  %110 = vmatpush.msra.mxu0 0.0
  %111 = vmatpush.msra.mxu0 0.0
  %112 = vmatpush.msra.mxu0 %v79
  %113 = vmatmul.f32.gmra.mxu0 %v95
  %v114 = vpop.f32.mrf.mxu0
  %v115 = vadd.f32 %v85, %v114
  %116 = vdwg.mxu0
  %117 = vmatpush.msra.mxu0 0.0
  %118 = vmatpush.msra.mxu0 0.0
  %119 = vmatpush.msra.mxu0 0.0
  %120 = vmatpush.msra.mxu0 0.0
  %121 = vmatpush.msra.mxu0 0.0
  %122 = vmatpush.msra.mxu0 0.0
  %123 = vmatpush.msra.mxu0 0.0
  %124 = vmatpush.msra.mxu0 0.0
  %125 = vmatpush.msra.mxu0 0.0
  %126 = vmatpush.msra.mxu0 0.0
  %127 = vmatpush.msra.mxu0 0.0
  %128 = vmatpush.msra.mxu0 0.0
  %129 = vmatpush.msra.mxu0 0.0
  %130 = vmatpush.msra.mxu0 0.0
  %131 = vmatpush.msra.mxu0 0.0
  %132 = vmatpush.msra.mxu0 %v80
  %133 = vmatmul.f32.gmra.mxu0 %v95
  %v134 = vpop.f32.mrf.mxu0
  %v135 = vadd.f32 %v86, %v134
  %136 = vdwg.mxu0
  %137 = vmatpush.msra.mxu0 0.0
  %138 = vmatpush.msra.mxu0 0.0
  %139 = vmatpush.msra.mxu0 0.0
  %140 = vmatpush.msra.mxu0 0.0
  %141 = vmatpush.msra.mxu0 0.0
  %142 = vmatpush.msra.mxu0 0.0
  %143 = vmatpush.msra.mxu0 0.0
  %144 = vmatpush.msra.mxu0 0.0
  %145 = vmatpush.msra.mxu0 0.0
  %146 = vmatpush.msra.mxu0 0.0
  %147 = vmatpush.msra.mxu0 0.0
  %148 = vmatpush.msra.mxu0 0.0
  %149 = vmatpush.msra.mxu0 0.0
  %150 = vmatpush.msra.mxu0 0.0
  %151 = vmatpush.msra.mxu0 0.0
  %152 = vmatpush.msra.mxu0 %v81
  %153 = vmatmul.f32.gmra.mxu0 %v95
  %v154 = vpop.f32.mrf.mxu0
  %v155 = vadd.f32 %v87, %v154
  %156 = vdwg.mxu0
  %157 = vmatpush.msra.mxu0 0.0
  %158 = vmatpush.msra.mxu0 0.0
  %159 = vmatpush.msra.mxu0 0.0
  %160 = vmatpush.msra.mxu0 0.0
  %161 = vmatpush.msra.mxu0 0.0
  %162 = vmatpush.msra.mxu0 0.0
  %163 = vmatpush.msra.mxu0 0.0
  %164 = vmatpush.msra.mxu0 0.0
  %165 = vmatpush.msra.mxu0 0.0
  %166 = vmatpush.msra.mxu0 0.0
  %167 = vmatpush.msra.mxu0 0.0
  %168 = vmatpush.msra.mxu0 0.0
  %169 = vmatpush.msra.mxu0 0.0
  %170 = vmatpush.msra.mxu0 0.0
  %171 = vmatpush.msra.mxu0 0.0
  %172 = vmatpush.msra.mxu0 %v82
  %173 = vmatmul.f32.gmra.mxu0 %v95
  %v174 = vpop.f32.mrf.mxu0
  %v175 = vadd.f32 %v88, %v174
  %176 = vdwg.mxu0
  %178 = vrot.lane.b32.xlu0 %v115, 8
  %v179 = vpop.permute.xlu0 %178
  %vm181 = vcmask 459840
  %182 = vst.msk [vmem:[#allocation2] sm:$0x3] %vm181, %v179
  %183 = vrot.lane.b32.xlu0 %v115, 87
  %v184 = vpop.permute.xlu0 %183
  %186 = vst.msk [vmem:[#allocation2 + $0x2] sm:$0x3] %vm181, %v184
  %188 = vrot.lane.b32.xlu0 %v115, 38
  %v189 = vpop.permute.xlu0 %188
  %190 = vrot.lane.b32.xlu0 %v135, 38
  %v191 = vpop.permute.xlu0 %190
  %vm192 = vcmask 310272
  %v193 = vsel %vm192, %v189, %v191
  %195 = vst.msk [vmem:[#allocation2 + $0x4] sm:$0x3] %vm181, %v193
  %196 = vrot.lane.b32.xlu0 %v135, 117
  %v197 = vpop.permute.xlu0 %196
  %199 = vst.msk [vmem:[#allocation2 + $0x6] sm:$0x3] %vm181, %v197
  %200 = vrot.lane.b32.xlu0 %v135, 68
  %v201 = vpop.permute.xlu0 %200
  %203 = vst.msk [vmem:[#allocation2 + $0x8] sm:$0x3] %vm181, %v201
  %205 = vrot.lane.b32.xlu0 %v135, 19
  %v206 = vpop.permute.xlu0 %205
  %207 = vrot.lane.b32.xlu0 %v155, 19
  %v208 = vpop.permute.xlu0 %207
  %vm209 = vcmask 154624
  %v210 = vsel %vm209, %v206, %v208
  %212 = vst.msk [vmem:[#allocation2 + $0xa] sm:$0x3] %vm181, %v210
  %213 = vrot.lane.b32.xlu0 %v155, 98
  %v214 = vpop.permute.xlu0 %213
  %216 = vst.msk [vmem:[#allocation2 + $0xc] sm:$0x3] %vm181, %v214
  %218 = vrot.lane.b32.xlu0 %v155, 49
  %v219 = vpop.permute.xlu0 %218
  %220 = vrot.lane.b32.xlu0 %v175, 49
  %v221 = vpop.permute.xlu0 %220
  %vm222 = vcmask 400384
  %v223 = vsel %vm222, %v219, %v221
  %225 = vst.msk [vmem:[#allocation2 + $0xe] sm:$0x3] %vm181, %v223
  %v226 = vld [vmem:[#allocation2] sm:$0xff]
  %v227 = vld [vmem:[#allocation2 + $0x8] sm:$0xff]
  %s228 = scalar_lea.vmem %s3, 40
  %v229 = vld [vmem:[%s228] sm:$0xff]
  %s230 = scalar_lea.vmem %s3, 56
  %v231 = vld [vmem:[%s230] sm:$0xff]
  %233 = vrot.lane.b32.xlu0 %v67, 7
  %v234 = vpop.permute.xlu0 %233
  %v236 = vmul.f32 %v226, %v234
  %v237 = vmul.f32 %v227, %v234
  %240 = vrot.lane.b32.xlu0 %v236, 121
  %v241 = vpop.permute.xlu0 %240
  %242 = vrot.lane.b32.xlu0 %v237, 121
  %v243 = vpop.permute.xlu0 %242
  %vm246 = vcmask 130048
  %v248 = vsel %vm246, %v231, 0
  %250 = vmatpush.msra.mxu0 0.0
  %251 = vmatpush.msra.mxu0 0.0
  %252 = vmatpush.msra.mxu0 0.0
  %253 = vmatpush.msra.mxu0 0.0
  %254 = vmatpush.msra.mxu0 0.0
  %255 = vmatpush.msra.mxu0 0.0
  %256 = vmatpush.msra.mxu0 0.0
  %257 = vmatpush.msra.mxu0 0.0
  %258 = vmatpush.msra.mxu0 0.0
  %259 = vmatpush.msra.mxu0 0.0
  %260 = vmatpush.msra.mxu0 0.0
  %261 = vmatpush.msra.mxu0 0.0
  %262 = vmatpush.msra.mxu0 0.0
  %263 = vmatpush.msra.mxu0 0.0
  %264 = vmatpush.msra.mxu0 %v243
  %265 = vmatpush.msra.mxu0 %v241
  %266 = vmatmul.f32.gmra.mxu0 %v248
  %v267 = vpop.f32.mrf.mxu0
  %v268 = vadd.f32 0.0, %v267
  %269 = vdwg.mxu0
  %272 = vrot.lane.b32.xlu0 %v226, 120
  %v273 = vpop.permute.xlu0 %272
  %274 = vrot.lane.b32.xlu0 %v227, 120
  %v275 = vpop.permute.xlu0 %274
  %v279 = vsel %vm246, %v229, 0
  %281 = vmatpush.msra.mxu0 0.0
  %282 = vmatpush.msra.mxu0 0.0
  %283 = vmatpush.msra.mxu0 0.0
  %284 = vmatpush.msra.mxu0 0.0
  %285 = vmatpush.msra.mxu0 0.0
  %286 = vmatpush.msra.mxu0 0.0
  %287 = vmatpush.msra.mxu0 0.0
  %288 = vmatpush.msra.mxu0 0.0
  %289 = vmatpush.msra.mxu0 0.0
  %290 = vmatpush.msra.mxu0 0.0
  %291 = vmatpush.msra.mxu0 0.0
  %292 = vmatpush.msra.mxu0 0.0
  %293 = vmatpush.msra.mxu0 0.0
  %294 = vmatpush.msra.mxu0 0.0
  %295 = vmatpush.msra.mxu0 %v275
  %296 = vmatpush.msra.mxu0 %v273
  %297 = vmatmul.f32.gmra.mxu0 %v279
  %v298 = vpop.f32.mrf.mxu0
  %v299 = vadd.f32 %v268, %v298
  %300 = vdwg.mxu0
  %s301 = scalar_lea.vmem %s3, 104
  %v302 = vld [vmem:[%s301] sm:$0xff]
  %303 = vrot.lane.b32.xlu0 %v226, 127
  %v304 = vpop.permute.xlu0 %303
  %305 = vrot.lane.b32.xlu0 %v227, 127
  %v306 = vpop.permute.xlu0 %305
  %v310 = vsel %vm246, %v302, 0
  %312 = vmatpush.msra.mxu0 0.0
  %313 = vmatpush.msra.mxu0 0.0
  %314 = vmatpush.msra.mxu0 0.0
  %315 = vmatpush.msra.mxu0 0.0
  %316 = vmatpush.msra.mxu0 0.0
  %317 = vmatpush.msra.mxu0 0.0
  %318 = vmatpush.msra.mxu0 0.0
  %319 = vmatpush.msra.mxu0 0.0
  %320 = vmatpush.msra.mxu0 0.0
  %321 = vmatpush.msra.mxu0 0.0
  %322 = vmatpush.msra.mxu0 0.0
  %323 = vmatpush.msra.mxu0 0.0
  %324 = vmatpush.msra.mxu0 0.0
  %325 = vmatpush.msra.mxu0 0.0
  %326 = vmatpush.msra.mxu0 %v306
  %327 = vmatpush.msra.mxu0 %v304
  %328 = vmatmul.f32.gmra.mxu0 %v310
  %v329 = vpop.f32.mrf.mxu0
  %v330 = vadd.f32 0.0, %v329
  %331 = vdwg.mxu0
  %v332 = vadd.f32 %v299, %v330
  %s333 = scalar_lea.vmem %s3, 120
  %v334 = vld [vmem:[%s333] sm:$0xff]
  %v335 = vmul.f32 %v226, %v67
  %v336 = vmul.f32 %v227, %v67
  %v338 = vsel %vm246, %v334, 0
  %340 = vmatpush.msra.mxu0 0.0
  %341 = vmatpush.msra.mxu0 0.0
  %342 = vmatpush.msra.mxu0 0.0
  %343 = vmatpush.msra.mxu0 0.0
  %344 = vmatpush.msra.mxu0 0.0
  %345 = vmatpush.msra.mxu0 0.0
  %346 = vmatpush.msra.mxu0 0.0
  %347 = vmatpush.msra.mxu0 0.0
  %348 = vmatpush.msra.mxu0 0.0
  %349 = vmatpush.msra.mxu0 0.0
  %350 = vmatpush.msra.mxu0 0.0
  %351 = vmatpush.msra.mxu0 0.0
  %352 = vmatpush.msra.mxu0 0.0
  %353 = vmatpush.msra.mxu0 0.0
  %354 = vmatpush.msra.mxu0 %v336
  %355 = vmatpush.msra.mxu0 %v335
  %356 = vmatmul.f32.gmra.mxu0 %v338
  %v357 = vpop.f32.mrf.mxu0
  %v358 = vadd.f32 0.0, %v357
  %359 = vdwg.mxu0
  %v360 = vadd.f32 %v332, %v358
  %v361 = vld [vmem:[%s4] sm:$0xff]
  %363 = vset.pattern.permute.xlu0 0
  %364 = vperm.xlu0 %363, %v361
  %v365 = vpop.permute.xlu0 %364
  %v367 = vadd.f32 %v360, %v365
  %v368 = vmax.f32 %v367, 0.0
  %370 = vrot.lane.b32.xlu0 %v368, 8
  %v371 = vpop.permute.xlu0 %370
  %vm373 = vcmask 465984
  %374 = vst.msk [vmem:[#allocation3] sm:$0xff] %vm373, %v371
  %s375 = scalar_lea.vmem %s3, 32
  %v376 = vld [vmem:[%s375] sm:$0xff]
  %378 = vrot.lane.b32.xlu0 %v70, 9
  %v379 = vpop.permute.xlu0 %378
  %v381 = vmul.f32 %v226, %v379
  %v382 = vmul.f32 %v227, %v379
  %s383 = scalar_lea.vmem %s3, 48
  %v384 = vld [vmem:[%s383] sm:$0xff]
  %v386 = vsel %vm246, %v384, 0
  %388 = vmatpush.msra.mxu0 0.0
  %389 = vmatpush.msra.mxu0 0.0
  %390 = vmatpush.msra.mxu0 0.0
  %391 = vmatpush.msra.mxu0 0.0
  %392 = vmatpush.msra.mxu0 0.0
  %393 = vmatpush.msra.mxu0 0.0
  %394 = vmatpush.msra.mxu0 0.0
  %395 = vmatpush.msra.mxu0 0.0
  %396 = vmatpush.msra.mxu0 0.0
  %397 = vmatpush.msra.mxu0 0.0
  %398 = vmatpush.msra.mxu0 0.0
  %399 = vmatpush.msra.mxu0 0.0
  %400 = vmatpush.msra.mxu0 0.0
  %401 = vmatpush.msra.mxu0 0.0
  %402 = vmatpush.msra.mxu0 %v275
  %403 = vmatpush.msra.mxu0 %v273
  %404 = vmatmul.f32.gmra.mxu0 %v386
  %v405 = vpop.f32.mrf.mxu0
  %v406 = vadd.f32 0.0, %v405
  %407 = vdwg.mxu0
  %410 = vrot.lane.b32.xlu0 %v381, 119
  %v411 = vpop.permute.xlu0 %410
  %412 = vrot.lane.b32.xlu0 %v382, 119
  %v413 = vpop.permute.xlu0 %412
  %v417 = vsel %vm246, %v376, 0
  %419 = vmatpush.msra.mxu0 0.0
  %420 = vmatpush.msra.mxu0 0.0
  %421 = vmatpush.msra.mxu0 0.0
  %422 = vmatpush.msra.mxu0 0.0
  %423 = vmatpush.msra.mxu0 0.0
  %424 = vmatpush.msra.mxu0 0.0
  %425 = vmatpush.msra.mxu0 0.0
  %426 = vmatpush.msra.mxu0 0.0
  %427 = vmatpush.msra.mxu0 0.0
  %428 = vmatpush.msra.mxu0 0.0
  %429 = vmatpush.msra.mxu0 0.0
  %430 = vmatpush.msra.mxu0 0.0
  %431 = vmatpush.msra.mxu0 0.0
  %432 = vmatpush.msra.mxu0 0.0
  %433 = vmatpush.msra.mxu0 %v413
  %434 = vmatpush.msra.mxu0 %v411
  %435 = vmatmul.f32.gmra.mxu0 %v417
  %v436 = vpop.f32.mrf.mxu0
  %v437 = vadd.f32 %v406, %v436
  %438 = vdwg.mxu0
  %s439 = scalar_lea.vmem %s3, 96
  %v440 = vld [vmem:[%s439] sm:$0xff]
  %441 = vrot.lane.b32.xlu0 %v70, 2
  %v442 = vpop.permute.xlu0 %441
  %v444 = vmul.f32 %v226, %v442
  %v445 = vmul.f32 %v227, %v442
  %448 = vrot.lane.b32.xlu0 %v444, 126
  %v449 = vpop.permute.xlu0 %448
  %450 = vrot.lane.b32.xlu0 %v445, 126
  %v451 = vpop.permute.xlu0 %450
  %v455 = vsel %vm246, %v440, 0
  %457 = vmatpush.msra.mxu0 0.0
  %458 = vmatpush.msra.mxu0 0.0
  %459 = vmatpush.msra.mxu0 0.0
  %460 = vmatpush.msra.mxu0 0.0
  %461 = vmatpush.msra.mxu0 0.0
  %462 = vmatpush.msra.mxu0 0.0
  %463 = vmatpush.msra.mxu0 0.0
  %464 = vmatpush.msra.mxu0 0.0
  %465 = vmatpush.msra.mxu0 0.0
  %466 = vmatpush.msra.mxu0 0.0
  %467 = vmatpush.msra.mxu0 0.0
  %468 = vmatpush.msra.mxu0 0.0
  %469 = vmatpush.msra.mxu0 0.0
  %470 = vmatpush.msra.mxu0 0.0
  %471 = vmatpush.msra.mxu0 %v451
  %472 = vmatpush.msra.mxu0 %v449
  %473 = vmatmul.f32.gmra.mxu0 %v455
  %v474 = vpop.f32.mrf.mxu0
  %v475 = vadd.f32 0.0, %v474
  %476 = vdwg.mxu0
  %v477 = vadd.f32 %v437, %v475
  %s478 = scalar_lea.vmem %s3, 112
  %v479 = vld [vmem:[%s478] sm:$0xff]
  %v481 = vsel %vm246, %v479, 0
  %483 = vmatpush.msra.mxu0 0.0
  %484 = vmatpush.msra.mxu0 0.0
  %485 = vmatpush.msra.mxu0 0.0
  %486 = vmatpush.msra.mxu0 0.0
  %487 = vmatpush.msra.mxu0 0.0
  %488 = vmatpush.msra.mxu0 0.0
  %489 = vmatpush.msra.mxu0 0.0
  %490 = vmatpush.msra.mxu0 0.0
  %491 = vmatpush.msra.mxu0 0.0
  %492 = vmatpush.msra.mxu0 0.0
  %493 = vmatpush.msra.mxu0 0.0
  %494 = vmatpush.msra.mxu0 0.0
  %495 = vmatpush.msra.mxu0 0.0
  %496 = vmatpush.msra.mxu0 0.0
  %497 = vmatpush.msra.mxu0 %v306
  %498 = vmatpush.msra.mxu0 %v304
  %499 = vmatmul.f32.gmra.mxu0 %v481
  %v500 = vpop.f32.mrf.mxu0
  %v501 = vadd.f32 0.0, %v500
  %502 = vdwg.mxu0
  %v503 = vadd.f32 %v477, %v501
  %v504 = vld [vmem:[%s4] sm:$0xff]
  %506 = vset.pattern.permute.xlu0 0
  %507 = vperm.xlu0 %506, %v504
  %v508 = vpop.permute.xlu0 %507
  %v510 = vadd.f32 %v503, %v508
  %v511 = vmax.f32 %v510, 0.0
  %513 = vrot.lane.b32.xlu0 %v511, 8
  %v514 = vpop.permute.xlu0 %513
  %s516 = scalar_lea.vmem [#allocation3], 8
  %517 = vst.msk [vmem:[%s516] sm:$0xff] %vm373, %v514
  %s518 = scalar_lea.vmem %s3, 8
  %v519 = vld [vmem:[%s518] sm:$0xff]
  %s520 = scalar_lea.vmem %s3, 24
  %v521 = vld [vmem:[%s520] sm:$0xff]
  %522 = vrot.lane.b32.xlu0 %v67, 14
  %v523 = vpop.permute.xlu0 %522
  %v525 = vmul.f32 %v226, %v523
  %v526 = vmul.f32 %v227, %v523
  %529 = vrot.lane.b32.xlu0 %v525, 114
  %v530 = vpop.permute.xlu0 %529
  %531 = vrot.lane.b32.xlu0 %v526, 114
  %v532 = vpop.permute.xlu0 %531
  %v536 = vsel %vm246, %v521, 0
  %538 = vmatpush.msra.mxu0 0.0
  %539 = vmatpush.msra.mxu0 0.0
  %540 = vmatpush.msra.mxu0 0.0
  %541 = vmatpush.msra.mxu0 0.0
  %542 = vmatpush.msra.mxu0 0.0
  %543 = vmatpush.msra.mxu0 0.0
  %544 = vmatpush.msra.mxu0 0.0
  %545 = vmatpush.msra.mxu0 0.0
  %546 = vmatpush.msra.mxu0 0.0
  %547 = vmatpush.msra.mxu0 0.0
  %548 = vmatpush.msra.mxu0 0.0
  %549 = vmatpush.msra.mxu0 0.0
  %550 = vmatpush.msra.mxu0 0.0
  %551 = vmatpush.msra.mxu0 0.0
  %552 = vmatpush.msra.mxu0 %v532
  %553 = vmatpush.msra.mxu0 %v530
  %554 = vmatmul.f32.gmra.mxu0 %v536
  %v555 = vpop.f32.mrf.mxu0
  %v556 = vadd.f32 0.0, %v555
  %557 = vdwg.mxu0
  %558 = vrot.lane.b32.xlu0 %v226, 113
  %v559 = vpop.permute.xlu0 %558
  %560 = vrot.lane.b32.xlu0 %v227, 113
  %v561 = vpop.permute.xlu0 %560
  %v565 = vsel %vm246, %v519, 0
  %567 = vmatpush.msra.mxu0 0.0
  %568 = vmatpush.msra.mxu0 0.0
  %569 = vmatpush.msra.mxu0 0.0
  %570 = vmatpush.msra.mxu0 0.0
  %571 = vmatpush.msra.mxu0 0.0
  %572 = vmatpush.msra.mxu0 0.0
  %573 = vmatpush.msra.mxu0 0.0
  %574 = vmatpush.msra.mxu0 0.0
  %575 = vmatpush.msra.mxu0 0.0
  %576 = vmatpush.msra.mxu0 0.0
  %577 = vmatpush.msra.mxu0 0.0
  %578 = vmatpush.msra.mxu0 0.0
  %579 = vmatpush.msra.mxu0 0.0
  %580 = vmatpush.msra.mxu0 0.0
  %581 = vmatpush.msra.mxu0 %v561
  %582 = vmatpush.msra.mxu0 %v559
  %583 = vmatmul.f32.gmra.mxu0 %v565
  %v584 = vpop.f32.mrf.mxu0
  %v585 = vadd.f32 %v556, %v584
  %586 = vdwg.mxu0
  %s587 = scalar_lea.vmem %s3, 72
  %v588 = vld [vmem:[%s587] sm:$0xff]
  %v590 = vsel %vm246, %v588, 0
  %592 = vmatpush.msra.mxu0 0.0
  %593 = vmatpush.msra.mxu0 0.0
  %594 = vmatpush.msra.mxu0 0.0
  %595 = vmatpush.msra.mxu0 0.0
  %596 = vmatpush.msra.mxu0 0.0
  %597 = vmatpush.msra.mxu0 0.0
  %598 = vmatpush.msra.mxu0 0.0
  %599 = vmatpush.msra.mxu0 0.0
  %600 = vmatpush.msra.mxu0 0.0
  %601 = vmatpush.msra.mxu0 0.0
  %602 = vmatpush.msra.mxu0 0.0
  %603 = vmatpush.msra.mxu0 0.0
  %604 = vmatpush.msra.mxu0 0.0
  %605 = vmatpush.msra.mxu0 0.0
  %606 = vmatpush.msra.mxu0 %v275
  %607 = vmatpush.msra.mxu0 %v273
  %608 = vmatmul.f32.gmra.mxu0 %v590
  %v609 = vpop.f32.mrf.mxu0
  %v610 = vadd.f32 0.0, %v609
  %611 = vdwg.mxu0
  %v612 = vadd.f32 %v585, %v610
  %s613 = scalar_lea.vmem %s3, 88
  %v614 = vld [vmem:[%s613] sm:$0xff]
  %v616 = vsel %vm246, %v614, 0
  %618 = vmatpush.msra.mxu0 0.0
  %619 = vmatpush.msra.mxu0 0.0
  %620 = vmatpush.msra.mxu0 0.0
  %621 = vmatpush.msra.mxu0 0.0
  %622 = vmatpush.msra.mxu0 0.0
  %623 = vmatpush.msra.mxu0 0.0
  %624 = vmatpush.msra.mxu0 0.0
  %625 = vmatpush.msra.mxu0 0.0
  %626 = vmatpush.msra.mxu0 0.0
  %627 = vmatpush.msra.mxu0 0.0
  %628 = vmatpush.msra.mxu0 0.0
  %629 = vmatpush.msra.mxu0 0.0
  %630 = vmatpush.msra.mxu0 0.0
  %631 = vmatpush.msra.mxu0 0.0
  %632 = vmatpush.msra.mxu0 %v243
  %633 = vmatpush.msra.mxu0 %v241
  %634 = vmatmul.f32.gmra.mxu0 %v616
  %v635 = vpop.f32.mrf.mxu0
  %v636 = vadd.f32 0.0, %v635
  %637 = vdwg.mxu0
  %v638 = vadd.f32 %v612, %v636
  %v639 = vld [vmem:[%s4] sm:$0xff]
  %641 = vset.pattern.permute.xlu0 0
  %642 = vperm.xlu0 %641, %v639
  %v643 = vpop.permute.xlu0 %642
  %v645 = vadd.f32 %v638, %v643
  %v646 = vmax.f32 %v645, 0.0
  %648 = vrot.lane.b32.xlu0 %v646, 8
  %v649 = vpop.permute.xlu0 %648
  %s651 = scalar_lea.vmem [#allocation3], 16
  %652 = vst.msk [vmem:[%s651] sm:$0xff] %vm373, %v649
  %v653 = vld [vmem:[%s3] sm:$0xff]
  %654 = vrot.lane.b32.xlu0 %v70, 16
  %v655 = vpop.permute.xlu0 %654
  %v657 = vmul.f32 %v226, %v655
  %v658 = vmul.f32 %v227, %v655
  %s659 = scalar_lea.vmem %s3, 16
  %v660 = vld [vmem:[%s659] sm:$0xff]
  %v662 = vsel %vm246, %v660, 0
  %664 = vmatpush.msra.mxu0 0.0
  %665 = vmatpush.msra.mxu0 0.0
  %666 = vmatpush.msra.mxu0 0.0
  %667 = vmatpush.msra.mxu0 0.0
  %668 = vmatpush.msra.mxu0 0.0
  %669 = vmatpush.msra.mxu0 0.0
  %670 = vmatpush.msra.mxu0 0.0
  %671 = vmatpush.msra.mxu0 0.0
  %672 = vmatpush.msra.mxu0 0.0
  %673 = vmatpush.msra.mxu0 0.0
  %674 = vmatpush.msra.mxu0 0.0
  %675 = vmatpush.msra.mxu0 0.0
  %676 = vmatpush.msra.mxu0 0.0
  %677 = vmatpush.msra.mxu0 0.0
  %678 = vmatpush.msra.mxu0 %v561
  %679 = vmatpush.msra.mxu0 %v559
  %680 = vmatmul.f32.gmra.mxu0 %v662
  %v681 = vpop.f32.mrf.mxu0
  %v682 = vadd.f32 0.0, %v681
  %683 = vdwg.mxu0
  %686 = vrot.lane.b32.xlu0 %v657, 112
  %v687 = vpop.permute.xlu0 %686
  %688 = vrot.lane.b32.xlu0 %v658, 112
  %v689 = vpop.permute.xlu0 %688
  %v693 = vsel %vm246, %v653, 0
  %695 = vmatpush.msra.mxu0 0.0
  %696 = vmatpush.msra.mxu0 0.0
  %697 = vmatpush.msra.mxu0 0.0
  %698 = vmatpush.msra.mxu0 0.0
  %699 = vmatpush.msra.mxu0 0.0
  %700 = vmatpush.msra.mxu0 0.0
  %701 = vmatpush.msra.mxu0 0.0
  %702 = vmatpush.msra.mxu0 0.0
  %703 = vmatpush.msra.mxu0 0.0
  %704 = vmatpush.msra.mxu0 0.0
  %705 = vmatpush.msra.mxu0 0.0
  %706 = vmatpush.msra.mxu0 0.0
  %707 = vmatpush.msra.mxu0 0.0
  %708 = vmatpush.msra.mxu0 0.0
  %709 = vmatpush.msra.mxu0 %v689
  %710 = vmatpush.msra.mxu0 %v687
  %711 = vmatmul.f32.gmra.mxu0 %v693
  %v712 = vpop.f32.mrf.mxu0
  %v713 = vadd.f32 %v682, %v712
  %714 = vdwg.mxu0
  %s715 = scalar_lea.vmem %s3, 64
  %v716 = vld [vmem:[%s715] sm:$0xff]
  %v718 = vsel %vm246, %v716, 0
  %720 = vmatpush.msra.mxu0 0.0
  %721 = vmatpush.msra.mxu0 0.0
  %722 = vmatpush.msra.mxu0 0.0
  %723 = vmatpush.msra.mxu0 0.0
  %724 = vmatpush.msra.mxu0 0.0
  %725 = vmatpush.msra.mxu0 0.0
  %726 = vmatpush.msra.mxu0 0.0
  %727 = vmatpush.msra.mxu0 0.0
  %728 = vmatpush.msra.mxu0 0.0
  %729 = vmatpush.msra.mxu0 0.0
  %730 = vmatpush.msra.mxu0 0.0
  %731 = vmatpush.msra.mxu0 0.0
  %732 = vmatpush.msra.mxu0 0.0
  %733 = vmatpush.msra.mxu0 0.0
  %734 = vmatpush.msra.mxu0 %v413
  %735 = vmatpush.msra.mxu0 %v411
  %736 = vmatmul.f32.gmra.mxu0 %v718
  %v737 = vpop.f32.mrf.mxu0
  %v738 = vadd.f32 0.0, %v737
  %739 = vdwg.mxu0
  %v740 = vadd.f32 %v713, %v738
  %s741 = scalar_lea.vmem %s3, 80
  %v742 = vld [vmem:[%s741] sm:$0xff]
  %v744 = vsel %vm246, %v742, 0
  %746 = vmatpush.msra.mxu0 0.0
  %747 = vmatpush.msra.mxu0 0.0
  %748 = vmatpush.msra.mxu0 0.0
  %749 = vmatpush.msra.mxu0 0.0
  %750 = vmatpush.msra.mxu0 0.0
  %751 = vmatpush.msra.mxu0 0.0
  %752 = vmatpush.msra.mxu0 0.0
  %753 = vmatpush.msra.mxu0 0.0
  %754 = vmatpush.msra.mxu0 0.0
  %755 = vmatpush.msra.mxu0 0.0
  %756 = vmatpush.msra.mxu0 0.0
  %757 = vmatpush.msra.mxu0 0.0
  %758 = vmatpush.msra.mxu0 0.0
  %759 = vmatpush.msra.mxu0 0.0
  %760 = vmatpush.msra.mxu0 %v275
  %761 = vmatpush.msra.mxu0 %v273
  %762 = vmatmul.f32.gmra.mxu0 %v744
  %v763 = vpop.f32.mrf.mxu0
  %v764 = vadd.f32 0.0, %v763
  %765 = vdwg.mxu0
  %v766 = vadd.f32 %v740, %v764
  %v767 = vld [vmem:[%s4] sm:$0xff]
  %769 = vset.pattern.permute.xlu0 0
  %770 = vperm.xlu0 %769, %v767
  %v771 = vpop.permute.xlu0 %770
  %v773 = vadd.f32 %v766, %v771
  %v774 = vmax.f32 %v773, 0.0
  %776 = vrot.lane.b32.xlu0 %v774, 8
  %v777 = vpop.permute.xlu0 %776
  %s779 = scalar_lea.vmem [#allocation3], 24
  %780 = vst.msk [vmem:[%s779] sm:$0xff] %vm373, %v777
  %v781 = vld [vmem:[#allocation3] sm:$0xff]
  %v782 = vld [vmem:[%s516] sm:$0xff]
  %v783 = vld [vmem:[%s651] sm:$0xff]
  %v784 = vld [vmem:[%s779] sm:$0xff]
  %s785 = scalar_lea.vmem %s5, 10
  %v786 = vld [vmem:[%s785] sm:$0x3]
  %v787 = vmul.f32 %v782, %v234
  %s788 = scalar_lea.vmem %s5, 14
  %v789 = vld [vmem:[%s788] sm:$0x3]
  %791 = vrot.lane.b32.xlu0 %v787, 121
  %v792 = vpop.permute.xlu0 %791
  %v795 = vsel %vm93, %v789, 0
  %797 = vmatpush.msra.mxu0 0.0
  %798 = vmatpush.msra.mxu0 0.0
  %799 = vmatpush.msra.mxu0 0.0
  %800 = vmatpush.msra.mxu0 0.0
  %801 = vmatpush.msra.mxu0 0.0
  %802 = vmatpush.msra.mxu0 0.0
  %803 = vmatpush.msra.mxu0 0.0
  %804 = vmatpush.msra.mxu0 0.0
  %805 = vmatpush.msra.mxu0 0.0
  %806 = vmatpush.msra.mxu0 0.0
  %807 = vmatpush.msra.mxu0 0.0
  %808 = vmatpush.msra.mxu0 0.0
  %809 = vmatpush.msra.mxu0 0.0
  %810 = vmatpush.msra.mxu0 0.0
  %811 = vmatpush.msra.mxu0 0.0
  %812 = vmatpush.msra.mxu0 %v792
  %813 = vmatmul.f32.gmra.mxu0 %v795
  %v814 = vpop.f32.mrf.mxu0
  %v815 = vadd.f32 0.0, %v814
  %816 = vdwg.mxu0
  %818 = vrot.lane.b32.xlu0 %v781, 120
  %v819 = vpop.permute.xlu0 %818
  %v822 = vsel %vm93, %v786, 0
  %824 = vmatpush.msra.mxu0 0.0
  %825 = vmatpush.msra.mxu0 0.0
  %826 = vmatpush.msra.mxu0 0.0
  %827 = vmatpush.msra.mxu0 0.0
  %828 = vmatpush.msra.mxu0 0.0
  %829 = vmatpush.msra.mxu0 0.0
  %830 = vmatpush.msra.mxu0 0.0
  %831 = vmatpush.msra.mxu0 0.0
  %832 = vmatpush.msra.mxu0 0.0
  %833 = vmatpush.msra.mxu0 0.0
  %834 = vmatpush.msra.mxu0 0.0
  %835 = vmatpush.msra.mxu0 0.0
  %836 = vmatpush.msra.mxu0 0.0
  %837 = vmatpush.msra.mxu0 0.0
  %838 = vmatpush.msra.mxu0 0.0
  %839 = vmatpush.msra.mxu0 %v819
  %840 = vmatmul.f32.gmra.mxu0 %v822
  %v841 = vpop.f32.mrf.mxu0
  %v842 = vadd.f32 %v815, %v841
  %843 = vdwg.mxu0
  %s844 = scalar_lea.vmem %s5, 26
  %v845 = vld [vmem:[%s844] sm:$0x3]
  %847 = vrot.lane.b32.xlu0 %v783, 127
  %v848 = vpop.permute.xlu0 %847
  %v851 = vsel %vm93, %v845, 0
  %853 = vmatpush.msra.mxu0 0.0
  %854 = vmatpush.msra.mxu0 0.0
  %855 = vmatpush.msra.mxu0 0.0
  %856 = vmatpush.msra.mxu0 0.0
  %857 = vmatpush.msra.mxu0 0.0
  %858 = vmatpush.msra.mxu0 0.0
  %859 = vmatpush.msra.mxu0 0.0
  %860 = vmatpush.msra.mxu0 0.0
  %861 = vmatpush.msra.mxu0 0.0
  %862 = vmatpush.msra.mxu0 0.0
  %863 = vmatpush.msra.mxu0 0.0
  %864 = vmatpush.msra.mxu0 0.0
  %865 = vmatpush.msra.mxu0 0.0
  %866 = vmatpush.msra.mxu0 0.0
  %867 = vmatpush.msra.mxu0 0.0
  %868 = vmatpush.msra.mxu0 %v848
  %869 = vmatmul.f32.gmra.mxu0 %v851
  %v870 = vpop.f32.mrf.mxu0
  %v871 = vadd.f32 0.0, %v870
  %872 = vdwg.mxu0
  %v873 = vadd.f32 %v842, %v871
  %v874 = vmul.f32 %v784, %v67
  %s875 = scalar_lea.vmem %s5, 30
  %v876 = vld [vmem:[%s875] sm:$0x3]
  %v878 = vsel %vm93, %v876, 0
  %880 = vmatpush.msra.mxu0 0.0
  %881 = vmatpush.msra.mxu0 0.0
  %882 = vmatpush.msra.mxu0 0.0
  %883 = vmatpush.msra.mxu0 0.0
  %884 = vmatpush.msra.mxu0 0.0
  %885 = vmatpush.msra.mxu0 0.0
  %886 = vmatpush.msra.mxu0 0.0
  %887 = vmatpush.msra.mxu0 0.0
  %888 = vmatpush.msra.mxu0 0.0
  %889 = vmatpush.msra.mxu0 0.0
  %890 = vmatpush.msra.mxu0 0.0
  %891 = vmatpush.msra.mxu0 0.0
  %892 = vmatpush.msra.mxu0 0.0
  %893 = vmatpush.msra.mxu0 0.0
  %894 = vmatpush.msra.mxu0 0.0
  %895 = vmatpush.msra.mxu0 %v874
  %896 = vmatmul.f32.gmra.mxu0 %v878
  %v897 = vpop.f32.mrf.mxu0
  %v898 = vadd.f32 0.0, %v897
  %899 = vdwg.mxu0
  %v900 = vadd.f32 %v873, %v898
  %v901 = vld [vmem:[%s6] sm:$0x3]
  %903 = vset.pattern.permute.xlu0 0
  %904 = vperm.xlu0 %903, %v901
  %v905 = vpop.permute.xlu0 %904
  %v907 = vadd.f32 %v900, %v905
  %v908 = vtanh.pop %v907
  %vm909 = vcmask 394240
  %910 = vst.msk [vmem:[%s7] sm:$0x3] %vm909, %v908
  %s911 = scalar_lea.vmem %s5, 8
  %v912 = vld [vmem:[%s911] sm:$0x3]
  %s913 = scalar_lea.vmem %s5, 12
  %v914 = vld [vmem:[%s913] sm:$0x3]
  %v916 = vsel %vm93, %v914, 0
  %918 = vmatpush.msra.mxu0 0.0
  %919 = vmatpush.msra.mxu0 0.0
  %920 = vmatpush.msra.mxu0 0.0
  %921 = vmatpush.msra.mxu0 0.0
  %922 = vmatpush.msra.mxu0 0.0
  %923 = vmatpush.msra.mxu0 0.0
  %924 = vmatpush.msra.mxu0 0.0
  %925 = vmatpush.msra.mxu0 0.0
  %926 = vmatpush.msra.mxu0 0.0
  %927 = vmatpush.msra.mxu0 0.0
  %928 = vmatpush.msra.mxu0 0.0
  %929 = vmatpush.msra.mxu0 0.0
  %930 = vmatpush.msra.mxu0 0.0
  %931 = vmatpush.msra.mxu0 0.0
  %932 = vmatpush.msra.mxu0 0.0
  %933 = vmatpush.msra.mxu0 %v819
  %934 = vmatmul.f32.gmra.mxu0 %v916
  %v935 = vpop.f32.mrf.mxu0
  %v936 = vadd.f32 0.0, %v935
  %937 = vdwg.mxu0
  %939 = vrot.lane.b32.xlu0 %v782, 120
  %v940 = vpop.permute.xlu0 %939
  %v943 = vsel %vm93, %v912, 0
  %945 = vmatpush.msra.mxu0 0.0
  %946 = vmatpush.msra.mxu0 0.0
  %947 = vmatpush.msra.mxu0 0.0
  %948 = vmatpush.msra.mxu0 0.0
  %949 = vmatpush.msra.mxu0 0.0
  %950 = vmatpush.msra.mxu0 0.0
  %951 = vmatpush.msra.mxu0 0.0
  %952 = vmatpush.msra.mxu0 0.0
  %953 = vmatpush.msra.mxu0 0.0
  %954 = vmatpush.msra.mxu0 0.0
  %955 = vmatpush.msra.mxu0 0.0
  %956 = vmatpush.msra.mxu0 0.0
  %957 = vmatpush.msra.mxu0 0.0
  %958 = vmatpush.msra.mxu0 0.0
  %959 = vmatpush.msra.mxu0 0.0
  %960 = vmatpush.msra.mxu0 %v940
  %961 = vmatmul.f32.gmra.mxu0 %v943
  %v962 = vpop.f32.mrf.mxu0
  %v963 = vadd.f32 %v936, %v962
  %964 = vdwg.mxu0
  %s965 = scalar_lea.vmem %s5, 24
  %v966 = vld [vmem:[%s965] sm:$0x3]
  %968 = vrot.lane.b32.xlu0 %v784, 127
  %v969 = vpop.permute.xlu0 %968
  %v972 = vsel %vm93, %v966, 0
  %974 = vmatpush.msra.mxu0 0.0
  %975 = vmatpush.msra.mxu0 0.0
  %976 = vmatpush.msra.mxu0 0.0
  %977 = vmatpush.msra.mxu0 0.0
  %978 = vmatpush.msra.mxu0 0.0
  %979 = vmatpush.msra.mxu0 0.0
  %980 = vmatpush.msra.mxu0 0.0
  %981 = vmatpush.msra.mxu0 0.0
  %982 = vmatpush.msra.mxu0 0.0
  %983 = vmatpush.msra.mxu0 0.0
  %984 = vmatpush.msra.mxu0 0.0
  %985 = vmatpush.msra.mxu0 0.0
  %986 = vmatpush.msra.mxu0 0.0
  %987 = vmatpush.msra.mxu0 0.0
  %988 = vmatpush.msra.mxu0 0.0
  %989 = vmatpush.msra.mxu0 %v969
  %990 = vmatmul.f32.gmra.mxu0 %v972
  %v991 = vpop.f32.mrf.mxu0
  %v992 = vadd.f32 0.0, %v991
  %993 = vdwg.mxu0
  %v994 = vadd.f32 %v963, %v992
  %s995 = scalar_lea.vmem %s5, 28
  %v996 = vld [vmem:[%s995] sm:$0x3]
  %v998 = vsel %vm93, %v996, 0
  %1000 = vmatpush.msra.mxu0 0.0
  %1001 = vmatpush.msra.mxu0 0.0
  %1002 = vmatpush.msra.mxu0 0.0
  %1003 = vmatpush.msra.mxu0 0.0
  %1004 = vmatpush.msra.mxu0 0.0
  %1005 = vmatpush.msra.mxu0 0.0
  %1006 = vmatpush.msra.mxu0 0.0
  %1007 = vmatpush.msra.mxu0 0.0
  %1008 = vmatpush.msra.mxu0 0.0
  %1009 = vmatpush.msra.mxu0 0.0
  %1010 = vmatpush.msra.mxu0 0.0
  %1011 = vmatpush.msra.mxu0 0.0
  %1012 = vmatpush.msra.mxu0 0.0
  %1013 = vmatpush.msra.mxu0 0.0
  %1014 = vmatpush.msra.mxu0 0.0
  %1015 = vmatpush.msra.mxu0 %v848
  %1016 = vmatmul.f32.gmra.mxu0 %v998
  %v1017 = vpop.f32.mrf.mxu0
  %v1018 = vadd.f32 0.0, %v1017
  %1019 = vdwg.mxu0
  %v1020 = vadd.f32 %v994, %v1018
  %v1021 = vld [vmem:[%s6] sm:$0x3]
  %1023 = vset.pattern.permute.xlu0 0
  %1024 = vperm.xlu0 %1023, %v1021
  %v1025 = vpop.permute.xlu0 %1024
  %v1027 = vadd.f32 %v1020, %v1025
  %v1028 = vtanh.pop %v1027
  %1030 = vrot.lane.b32.xlu0 %v1028, 49
  %v1031 = vpop.permute.xlu0 %1030
  %vm1033 = vcmask 796040
  %1034 = vst.msk [vmem:[%s7] sm:$0x3] %vm1033, %v1031
  %v1035 = vld [vmem:[%s785] sm:$0x3]
  %v1036 = vld [vmem:[%s788] sm:$0x3]
  %v1038 = vsel %vm93, %v1036, 0
  %1040 = vmatpush.msra.mxu0 0.0
  %1041 = vmatpush.msra.mxu0 0.0
  %1042 = vmatpush.msra.mxu0 0.0
  %1043 = vmatpush.msra.mxu0 0.0
  %1044 = vmatpush.msra.mxu0 0.0
  %1045 = vmatpush.msra.mxu0 0.0
  %1046 = vmatpush.msra.mxu0 0.0
  %1047 = vmatpush.msra.mxu0 0.0
  %1048 = vmatpush.msra.mxu0 0.0
  %1049 = vmatpush.msra.mxu0 0.0
  %1050 = vmatpush.msra.mxu0 0.0
  %1051 = vmatpush.msra.mxu0 0.0
  %1052 = vmatpush.msra.mxu0 0.0
  %1053 = vmatpush.msra.mxu0 0.0
  %1054 = vmatpush.msra.mxu0 0.0
  %1055 = vmatpush.msra.mxu0 %v819
  %1056 = vmatmul.f32.gmra.mxu0 %v1038
  %v1057 = vpop.f32.mrf.mxu0
  %v1058 = vadd.f32 0.0, %v1057
  %1059 = vdwg.mxu0
  %v1061 = vsel %vm93, %v1035, 0
  %1063 = vmatpush.msra.mxu0 0.0
  %1064 = vmatpush.msra.mxu0 0.0
  %1065 = vmatpush.msra.mxu0 0.0
  %1066 = vmatpush.msra.mxu0 0.0
  %1067 = vmatpush.msra.mxu0 0.0
  %1068 = vmatpush.msra.mxu0 0.0
  %1069 = vmatpush.msra.mxu0 0.0
  %1070 = vmatpush.msra.mxu0 0.0
  %1071 = vmatpush.msra.mxu0 0.0
  %1072 = vmatpush.msra.mxu0 0.0
  %1073 = vmatpush.msra.mxu0 0.0
  %1074 = vmatpush.msra.mxu0 0.0
  %1075 = vmatpush.msra.mxu0 0.0
  %1076 = vmatpush.msra.mxu0 0.0
  %1077 = vmatpush.msra.mxu0 0.0
  %1078 = vmatpush.msra.mxu0 %v940
  %1079 = vmatmul.f32.gmra.mxu0 %v1061
  %v1080 = vpop.f32.mrf.mxu0
  %v1081 = vadd.f32 %v1058, %v1080
  %1082 = vdwg.mxu0
  %v1083 = vld [vmem:[%s844] sm:$0x3]
  %v1085 = vsel %vm93, %v1083, 0
  %1087 = vmatpush.msra.mxu0 0.0
  %1088 = vmatpush.msra.mxu0 0.0
  %1089 = vmatpush.msra.mxu0 0.0
  %1090 = vmatpush.msra.mxu0 0.0
  %1091 = vmatpush.msra.mxu0 0.0
  %1092 = vmatpush.msra.mxu0 0.0
  %1093 = vmatpush.msra.mxu0 0.0
  %1094 = vmatpush.msra.mxu0 0.0
  %1095 = vmatpush.msra.mxu0 0.0
  %1096 = vmatpush.msra.mxu0 0.0
  %1097 = vmatpush.msra.mxu0 0.0
  %1098 = vmatpush.msra.mxu0 0.0
  %1099 = vmatpush.msra.mxu0 0.0
  %1100 = vmatpush.msra.mxu0 0.0
  %1101 = vmatpush.msra.mxu0 0.0
  %1102 = vmatpush.msra.mxu0 %v969
  %1103 = vmatmul.f32.gmra.mxu0 %v1085
  %v1104 = vpop.f32.mrf.mxu0
  %v1105 = vadd.f32 0.0, %v1104
  %1106 = vdwg.mxu0
  %v1107 = vadd.f32 %v1081, %v1105
  %v1108 = vld [vmem:[%s875] sm:$0x3]
  %v1110 = vsel %vm93, %v1108, 0
  %1112 = vmatpush.msra.mxu0 0.0
  %1113 = vmatpush.msra.mxu0 0.0
  %1114 = vmatpush.msra.mxu0 0.0
  %1115 = vmatpush.msra.mxu0 0.0
  %1116 = vmatpush.msra.mxu0 0.0
  %1117 = vmatpush.msra.mxu0 0.0
  %1118 = vmatpush.msra.mxu0 0.0
  %1119 = vmatpush.msra.mxu0 0.0
  %1120 = vmatpush.msra.mxu0 0.0
  %1121 = vmatpush.msra.mxu0 0.0
  %1122 = vmatpush.msra.mxu0 0.0
  %1123 = vmatpush.msra.mxu0 0.0
  %1124 = vmatpush.msra.mxu0 0.0
  %1125 = vmatpush.msra.mxu0 0.0
  %1126 = vmatpush.msra.mxu0 0.0
  %1127 = vmatpush.msra.mxu0 %v848
  %1128 = vmatmul.f32.gmra.mxu0 %v1110
  %v1129 = vpop.f32.mrf.mxu0
  %v1130 = vadd.f32 0.0, %v1129
  %1131 = vdwg.mxu0
  %v1132 = vadd.f32 %v1107, %v1130
  %v1133 = vld [vmem:[%s6] sm:$0x3]
  %1135 = vset.pattern.permute.xlu0 0
  %1136 = vperm.xlu0 %1135, %v1133
  %v1137 = vpop.permute.xlu0 %1136
  %v1139 = vadd.f32 %v1132, %v1137
  %v1140 = vtanh.pop %v1139
  %1142 = vrot.lane.b32.xlu0 %v1140, 98
  %v1143 = vpop.permute.xlu0 %1142
  %v1144 = vrot.slane %v1143, 6
  %vm1145 = vcmask 801792
  %v1146 = vsel %vm1145, %v1144, %v1143
  %vm1148 = vcmask 1042192
  %vm1149 = vcmask 150530
  %vm1150 = vmor %vm1149, %vm1148
  %1151 = vst.msk [vmem:[%s7] sm:$0xf] %vm1150, %v1146
  %v1152 = vmul.f32 %v781, %v379
  %v1153 = vld [vmem:[%s911] sm:$0x3]
  %v1154 = vld [vmem:[%s913] sm:$0x3]
  %v1156 = vsel %vm93, %v1154, 0
  %1158 = vmatpush.msra.mxu0 0.0
  %1159 = vmatpush.msra.mxu0 0.0
  %1160 = vmatpush.msra.mxu0 0.0
  %1161 = vmatpush.msra.mxu0 0.0
  %1162 = vmatpush.msra.mxu0 0.0
  %1163 = vmatpush.msra.mxu0 0.0
  %1164 = vmatpush.msra.mxu0 0.0
  %1165 = vmatpush.msra.mxu0 0.0
  %1166 = vmatpush.msra.mxu0 0.0
  %1167 = vmatpush.msra.mxu0 0.0
  %1168 = vmatpush.msra.mxu0 0.0
  %1169 = vmatpush.msra.mxu0 0.0
  %1170 = vmatpush.msra.mxu0 0.0
  %1171 = vmatpush.msra.mxu0 0.0
  %1172 = vmatpush.msra.mxu0 0.0
  %1173 = vmatpush.msra.mxu0 %v940
  %1174 = vmatmul.f32.gmra.mxu0 %v1156
  %v1175 = vpop.f32.mrf.mxu0
  %v1176 = vadd.f32 0.0, %v1175
  %1177 = vdwg.mxu0
  %1179 = vrot.lane.b32.xlu0 %v1152, 119
  %v1180 = vpop.permute.xlu0 %1179
  %v1183 = vsel %vm93, %v1153, 0
  %1185 = vmatpush.msra.mxu0 0.0
  %1186 = vmatpush.msra.mxu0 0.0
  %1187 = vmatpush.msra.mxu0 0.0
  %1188 = vmatpush.msra.mxu0 0.0
  %1189 = vmatpush.msra.mxu0 0.0
  %1190 = vmatpush.msra.mxu0 0.0
  %1191 = vmatpush.msra.mxu0 0.0
  %1192 = vmatpush.msra.mxu0 0.0
  %1193 = vmatpush.msra.mxu0 0.0
  %1194 = vmatpush.msra.mxu0 0.0
  %1195 = vmatpush.msra.mxu0 0.0
  %1196 = vmatpush.msra.mxu0 0.0
  %1197 = vmatpush.msra.mxu0 0.0
  %1198 = vmatpush.msra.mxu0 0.0
  %1199 = vmatpush.msra.mxu0 0.0
  %1200 = vmatpush.msra.mxu0 %v1180
  %1201 = vmatmul.f32.gmra.mxu0 %v1183
  %v1202 = vpop.f32.mrf.mxu0
  %v1203 = vadd.f32 %v1176, %v1202
  %1204 = vdwg.mxu0
  %v1205 = vmul.f32 %v783, %v442
  %v1206 = vld [vmem:[%s965] sm:$0x3]
  %1208 = vrot.lane.b32.xlu0 %v1205, 126
  %v1209 = vpop.permute.xlu0 %1208
  %v1212 = vsel %vm93, %v1206, 0
  %1214 = vmatpush.msra.mxu0 0.0
  %1215 = vmatpush.msra.mxu0 0.0
  %1216 = vmatpush.msra.mxu0 0.0
  %1217 = vmatpush.msra.mxu0 0.0
  %1218 = vmatpush.msra.mxu0 0.0
  %1219 = vmatpush.msra.mxu0 0.0
  %1220 = vmatpush.msra.mxu0 0.0
  %1221 = vmatpush.msra.mxu0 0.0
  %1222 = vmatpush.msra.mxu0 0.0
  %1223 = vmatpush.msra.mxu0 0.0
  %1224 = vmatpush.msra.mxu0 0.0
  %1225 = vmatpush.msra.mxu0 0.0
  %1226 = vmatpush.msra.mxu0 0.0
  %1227 = vmatpush.msra.mxu0 0.0
  %1228 = vmatpush.msra.mxu0 0.0
  %1229 = vmatpush.msra.mxu0 %v1209
  %1230 = vmatmul.f32.gmra.mxu0 %v1212
  %v1231 = vpop.f32.mrf.mxu0
  %v1232 = vadd.f32 0.0, %v1231
  %1233 = vdwg.mxu0
  %v1234 = vadd.f32 %v1203, %v1232
  %v1235 = vld [vmem:[%s995] sm:$0x3]
  %v1237 = vsel %vm93, %v1235, 0
  %1239 = vmatpush.msra.mxu0 0.0
  %1240 = vmatpush.msra.mxu0 0.0
  %1241 = vmatpush.msra.mxu0 0.0
  %1242 = vmatpush.msra.mxu0 0.0
  %1243 = vmatpush.msra.mxu0 0.0
  %1244 = vmatpush.msra.mxu0 0.0
  %1245 = vmatpush.msra.mxu0 0.0
  %1246 = vmatpush.msra.mxu0 0.0
  %1247 = vmatpush.msra.mxu0 0.0
  %1248 = vmatpush.msra.mxu0 0.0
  %1249 = vmatpush.msra.mxu0 0.0
  %1250 = vmatpush.msra.mxu0 0.0
  %1251 = vmatpush.msra.mxu0 0.0
  %1252 = vmatpush.msra.mxu0 0.0
  %1253 = vmatpush.msra.mxu0 0.0
  %1254 = vmatpush.msra.mxu0 %v969
  %1255 = vmatmul.f32.gmra.mxu0 %v1237
  %v1256 = vpop.f32.mrf.mxu0
  %v1257 = vadd.f32 0.0, %v1256
  %1258 = vdwg.mxu0
  %v1259 = vadd.f32 %v1234, %v1257
  %v1260 = vld [vmem:[%s6] sm:$0x3]
  %1262 = vset.pattern.permute.xlu0 0
  %1263 = vperm.xlu0 %1262, %v1260
  %v1264 = vpop.permute.xlu0 %1263
  %v1266 = vadd.f32 %v1259, %v1264
  %v1267 = vtanh.pop %v1266
  %1269 = vrot.lane.b32.xlu0 %v1267, 19
  %v1270 = vpop.permute.xlu0 %1269
  %vm1272 = vcmask 550040
  %1273 = vst.msk [vmem:[%s7 + $0x2] sm:$0x3] %vm1272, %v1270
  %s1274 = scalar_lea.vmem %s5, 2
  %v1275 = vld [vmem:[%s1274] sm:$0x3]
  %v1276 = vmul.f32 %v784, %v234
  %s1277 = scalar_lea.vmem %s5, 6
  %v1278 = vld [vmem:[%s1277] sm:$0x3]
  %1280 = vrot.lane.b32.xlu0 %v1276, 121
  %v1281 = vpop.permute.xlu0 %1280
  %v1284 = vsel %vm93, %v1278, 0
  %1286 = vmatpush.msra.mxu0 0.0
  %1287 = vmatpush.msra.mxu0 0.0
  %1288 = vmatpush.msra.mxu0 0.0
  %1289 = vmatpush.msra.mxu0 0.0
  %1290 = vmatpush.msra.mxu0 0.0
  %1291 = vmatpush.msra.mxu0 0.0
  %1292 = vmatpush.msra.mxu0 0.0
  %1293 = vmatpush.msra.mxu0 0.0
  %1294 = vmatpush.msra.mxu0 0.0
  %1295 = vmatpush.msra.mxu0 0.0
  %1296 = vmatpush.msra.mxu0 0.0
  %1297 = vmatpush.msra.mxu0 0.0
  %1298 = vmatpush.msra.mxu0 0.0
  %1299 = vmatpush.msra.mxu0 0.0
  %1300 = vmatpush.msra.mxu0 0.0
  %1301 = vmatpush.msra.mxu0 %v1281
  %1302 = vmatmul.f32.gmra.mxu0 %v1284
  %v1303 = vpop.f32.mrf.mxu0
  %v1304 = vadd.f32 0.0, %v1303
  %1305 = vdwg.mxu0
  %1306 = vrot.lane.b32.xlu0 %v783, 120
  %v1307 = vpop.permute.xlu0 %1306
  %v1310 = vsel %vm93, %v1275, 0
  %1312 = vmatpush.msra.mxu0 0.0
  %1313 = vmatpush.msra.mxu0 0.0
  %1314 = vmatpush.msra.mxu0 0.0
  %1315 = vmatpush.msra.mxu0 0.0
  %1316 = vmatpush.msra.mxu0 0.0
  %1317 = vmatpush.msra.mxu0 0.0
  %1318 = vmatpush.msra.mxu0 0.0
  %1319 = vmatpush.msra.mxu0 0.0
  %1320 = vmatpush.msra.mxu0 0.0
  %1321 = vmatpush.msra.mxu0 0.0
  %1322 = vmatpush.msra.mxu0 0.0
  %1323 = vmatpush.msra.mxu0 0.0
  %1324 = vmatpush.msra.mxu0 0.0
  %1325 = vmatpush.msra.mxu0 0.0
  %1326 = vmatpush.msra.mxu0 0.0
  %1327 = vmatpush.msra.mxu0 %v1307
  %1328 = vmatmul.f32.gmra.mxu0 %v1310
  %v1329 = vpop.f32.mrf.mxu0
  %v1330 = vadd.f32 %v1304, %v1329
  %1331 = vdwg.mxu0
  %s1332 = scalar_lea.vmem %s5, 18
  %v1333 = vld [vmem:[%s1332] sm:$0x3]
  %v1335 = vsel %vm93, %v1333, 0
  %1337 = vmatpush.msra.mxu0 0.0
  %1338 = vmatpush.msra.mxu0 0.0
  %1339 = vmatpush.msra.mxu0 0.0
  %1340 = vmatpush.msra.mxu0 0.0
  %1341 = vmatpush.msra.mxu0 0.0
  %1342 = vmatpush.msra.mxu0 0.0
  %1343 = vmatpush.msra.mxu0 0.0
  %1344 = vmatpush.msra.mxu0 0.0
  %1345 = vmatpush.msra.mxu0 0.0
  %1346 = vmatpush.msra.mxu0 0.0
  %1347 = vmatpush.msra.mxu0 0.0
  %1348 = vmatpush.msra.mxu0 0.0
  %1349 = vmatpush.msra.mxu0 0.0
  %1350 = vmatpush.msra.mxu0 0.0
  %1351 = vmatpush.msra.mxu0 0.0
  %1352 = vmatpush.msra.mxu0 %v819
  %1353 = vmatmul.f32.gmra.mxu0 %v1335
  %v1354 = vpop.f32.mrf.mxu0
  %v1355 = vadd.f32 0.0, %v1354
  %1356 = vdwg.mxu0
  %v1357 = vadd.f32 %v1330, %v1355
  %s1358 = scalar_lea.vmem %s5, 22
  %v1359 = vld [vmem:[%s1358] sm:$0x3]
  %v1361 = vsel %vm93, %v1359, 0
  %1363 = vmatpush.msra.mxu0 0.0
  %1364 = vmatpush.msra.mxu0 0.0
  %1365 = vmatpush.msra.mxu0 0.0
  %1366 = vmatpush.msra.mxu0 0.0
  %1367 = vmatpush.msra.mxu0 0.0
  %1368 = vmatpush.msra.mxu0 0.0
  %1369 = vmatpush.msra.mxu0 0.0
  %1370 = vmatpush.msra.mxu0 0.0
  %1371 = vmatpush.msra.mxu0 0.0
  %1372 = vmatpush.msra.mxu0 0.0
  %1373 = vmatpush.msra.mxu0 0.0
  %1374 = vmatpush.msra.mxu0 0.0
  %1375 = vmatpush.msra.mxu0 0.0
  %1376 = vmatpush.msra.mxu0 0.0
  %1377 = vmatpush.msra.mxu0 0.0
  %1378 = vmatpush.msra.mxu0 %v792
  %1379 = vmatmul.f32.gmra.mxu0 %v1361
  %v1380 = vpop.f32.mrf.mxu0
  %v1381 = vadd.f32 0.0, %v1380
  %1382 = vdwg.mxu0
  %v1383 = vadd.f32 %v1357, %v1381
  %v1384 = vld [vmem:[%s6] sm:$0x3]
  %1386 = vset.pattern.permute.xlu0 0
  %1387 = vperm.xlu0 %1386, %v1384
  %v1388 = vpop.permute.xlu0 %1387
  %v1390 = vadd.f32 %v1383, %v1388
  %v1391 = vtanh.pop %v1390
  %1393 = vrot.lane.b32.xlu0 %v1391, 68
  %v1394 = vpop.permute.xlu0 %1393
  %vm1396 = vcmask 951840
  %1397 = vst.msk [vmem:[%s7 + $0x2] sm:$0x3] %vm1396, %v1394
  %v1398 = vld [vmem:[%s5] sm:$0x3]
  %s1399 = scalar_lea.vmem %s5, 4
  %v1400 = vld [vmem:[%s1399] sm:$0x3]
  %v1402 = vsel %vm93, %v1400, 0
  %1404 = vmatpush.msra.mxu0 0.0
  %1405 = vmatpush.msra.mxu0 0.0
  %1406 = vmatpush.msra.mxu0 0.0
  %1407 = vmatpush.msra.mxu0 0.0
  %1408 = vmatpush.msra.mxu0 0.0
  %1409 = vmatpush.msra.mxu0 0.0
  %1410 = vmatpush.msra.mxu0 0.0
  %1411 = vmatpush.msra.mxu0 0.0
  %1412 = vmatpush.msra.mxu0 0.0
  %1413 = vmatpush.msra.mxu0 0.0
  %1414 = vmatpush.msra.mxu0 0.0
  %1415 = vmatpush.msra.mxu0 0.0
  %1416 = vmatpush.msra.mxu0 0.0
  %1417 = vmatpush.msra.mxu0 0.0
  %1418 = vmatpush.msra.mxu0 0.0
  %1419 = vmatpush.msra.mxu0 %v1307
  %1420 = vmatmul.f32.gmra.mxu0 %v1402
  %v1421 = vpop.f32.mrf.mxu0
  %v1422 = vadd.f32 0.0, %v1421
  %1423 = vdwg.mxu0
  %1424 = vrot.lane.b32.xlu0 %v784, 120
  %v1425 = vpop.permute.xlu0 %1424
  %v1428 = vsel %vm93, %v1398, 0
  %1430 = vmatpush.msra.mxu0 0.0
  %1431 = vmatpush.msra.mxu0 0.0
  %1432 = vmatpush.msra.mxu0 0.0
  %1433 = vmatpush.msra.mxu0 0.0
  %1434 = vmatpush.msra.mxu0 0.0
  %1435 = vmatpush.msra.mxu0 0.0
  %1436 = vmatpush.msra.mxu0 0.0
  %1437 = vmatpush.msra.mxu0 0.0
  %1438 = vmatpush.msra.mxu0 0.0
  %1439 = vmatpush.msra.mxu0 0.0
  %1440 = vmatpush.msra.mxu0 0.0
  %1441 = vmatpush.msra.mxu0 0.0
  %1442 = vmatpush.msra.mxu0 0.0
  %1443 = vmatpush.msra.mxu0 0.0
  %1444 = vmatpush.msra.mxu0 0.0
  %1445 = vmatpush.msra.mxu0 %v1425
  %1446 = vmatmul.f32.gmra.mxu0 %v1428
  %v1447 = vpop.f32.mrf.mxu0
  %v1448 = vadd.f32 %v1422, %v1447
  %1449 = vdwg.mxu0
  %s1450 = scalar_lea.vmem %s5, 16
  %v1451 = vld [vmem:[%s1450] sm:$0x3]
  %v1453 = vsel %vm93, %v1451, 0
  %1455 = vmatpush.msra.mxu0 0.0
  %1456 = vmatpush.msra.mxu0 0.0
  %1457 = vmatpush.msra.mxu0 0.0
  %1458 = vmatpush.msra.mxu0 0.0
  %1459 = vmatpush.msra.mxu0 0.0
  %1460 = vmatpush.msra.mxu0 0.0
  %1461 = vmatpush.msra.mxu0 0.0
  %1462 = vmatpush.msra.mxu0 0.0
  %1463 = vmatpush.msra.mxu0 0.0
  %1464 = vmatpush.msra.mxu0 0.0
  %1465 = vmatpush.msra.mxu0 0.0
  %1466 = vmatpush.msra.mxu0 0.0
  %1467 = vmatpush.msra.mxu0 0.0
  %1468 = vmatpush.msra.mxu0 0.0
  %1469 = vmatpush.msra.mxu0 0.0
  %1470 = vmatpush.msra.mxu0 %v940
  %1471 = vmatmul.f32.gmra.mxu0 %v1453
  %v1472 = vpop.f32.mrf.mxu0
  %v1473 = vadd.f32 0.0, %v1472
  %1474 = vdwg.mxu0
  %v1475 = vadd.f32 %v1448, %v1473
  %s1476 = scalar_lea.vmem %s5, 20
  %v1477 = vld [vmem:[%s1476] sm:$0x3]
  %v1479 = vsel %vm93, %v1477, 0
  %1481 = vmatpush.msra.mxu0 0.0
  %1482 = vmatpush.msra.mxu0 0.0
  %1483 = vmatpush.msra.mxu0 0.0
  %1484 = vmatpush.msra.mxu0 0.0
  %1485 = vmatpush.msra.mxu0 0.0
  %1486 = vmatpush.msra.mxu0 0.0
  %1487 = vmatpush.msra.mxu0 0.0
  %1488 = vmatpush.msra.mxu0 0.0
  %1489 = vmatpush.msra.mxu0 0.0
  %1490 = vmatpush.msra.mxu0 0.0
  %1491 = vmatpush.msra.mxu0 0.0
  %1492 = vmatpush.msra.mxu0 0.0
  %1493 = vmatpush.msra.mxu0 0.0
  %1494 = vmatpush.msra.mxu0 0.0
  %1495 = vmatpush.msra.mxu0 0.0
  %1496 = vmatpush.msra.mxu0 %v819
  %1497 = vmatmul.f32.gmra.mxu0 %v1479
  %v1498 = vpop.f32.mrf.mxu0
  %v1499 = vadd.f32 0.0, %v1498
  %1500 = vdwg.mxu0
  %v1501 = vadd.f32 %v1475, %v1499
  %v1502 = vld [vmem:[%s6] sm:$0x3]
  %1504 = vset.pattern.permute.xlu0 0
  %1505 = vperm.xlu0 %1504, %v1502
  %v1506 = vpop.permute.xlu0 %1505
  %v1508 = vadd.f32 %v1501, %v1506
  %v1509 = vtanh.pop %v1508
  %1511 = vrot.lane.b32.xlu0 %v1509, 117
  %v1512 = vpop.permute.xlu0 %1511
  %v1513 = vrot.slane %v1512, 6
  %vm1514 = vcmask 957440
  %v1515 = vsel %vm1514, %v1513, %v1512
  %vm1517 = vcmask 1042344
  %vm1518 = vcmask 306178
  %vm1519 = vmor %vm1518, %vm1517
  %1520 = vst.msk [vmem:[%s7 + $0x2] sm:$0xf] %vm1519, %v1515
  %v1521 = vld [vmem:[%s1274] sm:$0x3]
  %v1522 = vld [vmem:[%s1277] sm:$0x3]
  %v1524 = vsel %vm93, %v1522, 0
  %1526 = vmatpush.msra.mxu0 0.0
  %1527 = vmatpush.msra.mxu0 0.0
  %1528 = vmatpush.msra.mxu0 0.0
  %1529 = vmatpush.msra.mxu0 0.0
  %1530 = vmatpush.msra.mxu0 0.0
  %1531 = vmatpush.msra.mxu0 0.0
  %1532 = vmatpush.msra.mxu0 0.0
  %1533 = vmatpush.msra.mxu0 0.0
  %1534 = vmatpush.msra.mxu0 0.0
  %1535 = vmatpush.msra.mxu0 0.0
  %1536 = vmatpush.msra.mxu0 0.0
  %1537 = vmatpush.msra.mxu0 0.0
  %1538 = vmatpush.msra.mxu0 0.0
  %1539 = vmatpush.msra.mxu0 0.0
  %1540 = vmatpush.msra.mxu0 0.0
  %1541 = vmatpush.msra.mxu0 %v1307
  %1542 = vmatmul.f32.gmra.mxu0 %v1524
  %v1543 = vpop.f32.mrf.mxu0
  %v1544 = vadd.f32 0.0, %v1543
  %1545 = vdwg.mxu0
  %v1547 = vsel %vm93, %v1521, 0
  %1549 = vmatpush.msra.mxu0 0.0
  %1550 = vmatpush.msra.mxu0 0.0
  %1551 = vmatpush.msra.mxu0 0.0
  %1552 = vmatpush.msra.mxu0 0.0
  %1553 = vmatpush.msra.mxu0 0.0
  %1554 = vmatpush.msra.mxu0 0.0
  %1555 = vmatpush.msra.mxu0 0.0
  %1556 = vmatpush.msra.mxu0 0.0
  %1557 = vmatpush.msra.mxu0 0.0
  %1558 = vmatpush.msra.mxu0 0.0
  %1559 = vmatpush.msra.mxu0 0.0
  %1560 = vmatpush.msra.mxu0 0.0
  %1561 = vmatpush.msra.mxu0 0.0
  %1562 = vmatpush.msra.mxu0 0.0
  %1563 = vmatpush.msra.mxu0 0.0
  %1564 = vmatpush.msra.mxu0 %v1425
  %1565 = vmatmul.f32.gmra.mxu0 %v1547
  %v1566 = vpop.f32.mrf.mxu0
  %v1567 = vadd.f32 %v1544, %v1566
  %1568 = vdwg.mxu0
  %v1569 = vld [vmem:[%s1332] sm:$0x3]
  %v1571 = vsel %vm93, %v1569, 0
  %1573 = vmatpush.msra.mxu0 0.0
  %1574 = vmatpush.msra.mxu0 0.0
  %1575 = vmatpush.msra.mxu0 0.0
  %1576 = vmatpush.msra.mxu0 0.0
  %1577 = vmatpush.msra.mxu0 0.0
  %1578 = vmatpush.msra.mxu0 0.0
  %1579 = vmatpush.msra.mxu0 0.0
  %1580 = vmatpush.msra.mxu0 0.0
  %1581 = vmatpush.msra.mxu0 0.0
  %1582 = vmatpush.msra.mxu0 0.0
  %1583 = vmatpush.msra.mxu0 0.0
  %1584 = vmatpush.msra.mxu0 0.0
  %1585 = vmatpush.msra.mxu0 0.0
  %1586 = vmatpush.msra.mxu0 0.0
  %1587 = vmatpush.msra.mxu0 0.0
  %1588 = vmatpush.msra.mxu0 %v940
  %1589 = vmatmul.f32.gmra.mxu0 %v1571
  %v1590 = vpop.f32.mrf.mxu0
  %v1591 = vadd.f32 0.0, %v1590
  %1592 = vdwg.mxu0
  %v1593 = vadd.f32 %v1567, %v1591
  %v1594 = vld [vmem:[%s1358] sm:$0x3]
  %v1596 = vsel %vm93, %v1594, 0
  %1598 = vmatpush.msra.mxu0 0.0
  %1599 = vmatpush.msra.mxu0 0.0
  %1600 = vmatpush.msra.mxu0 0.0
  %1601 = vmatpush.msra.mxu0 0.0
  %1602 = vmatpush.msra.mxu0 0.0
  %1603 = vmatpush.msra.mxu0 0.0
  %1604 = vmatpush.msra.mxu0 0.0
  %1605 = vmatpush.msra.mxu0 0.0
  %1606 = vmatpush.msra.mxu0 0.0
  %1607 = vmatpush.msra.mxu0 0.0
  %1608 = vmatpush.msra.mxu0 0.0
  %1609 = vmatpush.msra.mxu0 0.0
  %1610 = vmatpush.msra.mxu0 0.0
  %1611 = vmatpush.msra.mxu0 0.0
  %1612 = vmatpush.msra.mxu0 0.0
  %1613 = vmatpush.msra.mxu0 %v819
  %1614 = vmatmul.f32.gmra.mxu0 %v1596
  %v1615 = vpop.f32.mrf.mxu0
  %v1616 = vadd.f32 0.0, %v1615
  %1617 = vdwg.mxu0
  %v1618 = vadd.f32 %v1593, %v1616
  %v1619 = vld [vmem:[%s6] sm:$0x3]
  %1621 = vset.pattern.permute.xlu0 0
  %1622 = vperm.xlu0 %1621, %v1619
  %v1623 = vpop.permute.xlu0 %1622
  %v1625 = vadd.f32 %v1618, %v1623
  %v1626 = vtanh.pop %v1625
  %1628 = vrot.lane.b32.xlu0 %v1626, 38
  %v1629 = vpop.permute.xlu0 %1628
  %vm1631 = vcmask 705840
  %1632 = vst.msk [vmem:[%s7 + $0x4] sm:$0x3] %vm1631, %v1629
  %v1633 = vmul.f32 %v783, %v379
  %v1634 = vld [vmem:[%s5] sm:$0x3]
  %v1635 = vld [vmem:[%s1399] sm:$0x3]
  %v1637 = vsel %vm93, %v1635, 0
  %1639 = vmatpush.msra.mxu0 0.0
  %1640 = vmatpush.msra.mxu0 0.0
  %1641 = vmatpush.msra.mxu0 0.0
  %1642 = vmatpush.msra.mxu0 0.0
  %1643 = vmatpush.msra.mxu0 0.0
  %1644 = vmatpush.msra.mxu0 0.0
  %1645 = vmatpush.msra.mxu0 0.0
  %1646 = vmatpush.msra.mxu0 0.0
  %1647 = vmatpush.msra.mxu0 0.0
  %1648 = vmatpush.msra.mxu0 0.0
  %1649 = vmatpush.msra.mxu0 0.0
  %1650 = vmatpush.msra.mxu0 0.0
  %1651 = vmatpush.msra.mxu0 0.0
  %1652 = vmatpush.msra.mxu0 0.0
  %1653 = vmatpush.msra.mxu0 0.0
  %1654 = vmatpush.msra.mxu0 %v1425
  %1655 = vmatmul.f32.gmra.mxu0 %v1637
  %v1656 = vpop.f32.mrf.mxu0
  %v1657 = vadd.f32 0.0, %v1656
  %1658 = vdwg.mxu0
  %1660 = vrot.lane.b32.xlu0 %v1633, 119
  %v1661 = vpop.permute.xlu0 %1660
  %v1664 = vsel %vm93, %v1634, 0
  %1666 = vmatpush.msra.mxu0 0.0
  %1667 = vmatpush.msra.mxu0 0.0
  %1668 = vmatpush.msra.mxu0 0.0
  %1669 = vmatpush.msra.mxu0 0.0
  %1670 = vmatpush.msra.mxu0 0.0
  %1671 = vmatpush.msra.mxu0 0.0
  %1672 = vmatpush.msra.mxu0 0.0
  %1673 = vmatpush.msra.mxu0 0.0
  %1674 = vmatpush.msra.mxu0 0.0
  %1675 = vmatpush.msra.mxu0 0.0
  %1676 = vmatpush.msra.mxu0 0.0
  %1677 = vmatpush.msra.mxu0 0.0
  %1678 = vmatpush.msra.mxu0 0.0
  %1679 = vmatpush.msra.mxu0 0.0
  %1680 = vmatpush.msra.mxu0 0.0
  %1681 = vmatpush.msra.mxu0 %v1661
  %1682 = vmatmul.f32.gmra.mxu0 %v1664
  %v1683 = vpop.f32.mrf.mxu0
  %v1684 = vadd.f32 %v1657, %v1683
  %1685 = vdwg.mxu0
  %v1686 = vld [vmem:[%s1450] sm:$0x3]
  %v1688 = vsel %vm93, %v1686, 0
  %1690 = vmatpush.msra.mxu0 0.0
  %1691 = vmatpush.msra.mxu0 0.0
  %1692 = vmatpush.msra.mxu0 0.0
  %1693 = vmatpush.msra.mxu0 0.0
  %1694 = vmatpush.msra.mxu0 0.0
  %1695 = vmatpush.msra.mxu0 0.0
  %1696 = vmatpush.msra.mxu0 0.0
  %1697 = vmatpush.msra.mxu0 0.0
  %1698 = vmatpush.msra.mxu0 0.0
  %1699 = vmatpush.msra.mxu0 0.0
  %1700 = vmatpush.msra.mxu0 0.0
  %1701 = vmatpush.msra.mxu0 0.0
  %1702 = vmatpush.msra.mxu0 0.0
  %1703 = vmatpush.msra.mxu0 0.0
  %1704 = vmatpush.msra.mxu0 0.0
  %1705 = vmatpush.msra.mxu0 %v1180
  %1706 = vmatmul.f32.gmra.mxu0 %v1688
  %v1707 = vpop.f32.mrf.mxu0
  %v1708 = vadd.f32 0.0, %v1707
  %1709 = vdwg.mxu0
  %v1710 = vadd.f32 %v1684, %v1708
  %v1711 = vld [vmem:[%s1476] sm:$0x3]
  %v1713 = vsel %vm93, %v1711, 0
  %1715 = vmatpush.msra.mxu0 0.0
  %1716 = vmatpush.msra.mxu0 0.0
  %1717 = vmatpush.msra.mxu0 0.0
  %1718 = vmatpush.msra.mxu0 0.0
  %1719 = vmatpush.msra.mxu0 0.0
  %1720 = vmatpush.msra.mxu0 0.0
  %1721 = vmatpush.msra.mxu0 0.0
  %1722 = vmatpush.msra.mxu0 0.0
  %1723 = vmatpush.msra.mxu0 0.0
  %1724 = vmatpush.msra.mxu0 0.0
  %1725 = vmatpush.msra.mxu0 0.0
  %1726 = vmatpush.msra.mxu0 0.0
  %1727 = vmatpush.msra.mxu0 0.0
  %1728 = vmatpush.msra.mxu0 0.0
  %1729 = vmatpush.msra.mxu0 0.0
  %1730 = vmatpush.msra.mxu0 %v940
  %1731 = vmatmul.f32.gmra.mxu0 %v1713
  %v1732 = vpop.f32.mrf.mxu0
  %v1733 = vadd.f32 0.0, %v1732
  %1734 = vdwg.mxu0
  %v1735 = vadd.f32 %v1710, %v1733
  %v1736 = vld [vmem:[%s6] sm:$0x3]
  %1738 = vset.pattern.permute.xlu0 0
  %1739 = vperm.xlu0 %1738, %v1736
  %v1740 = vpop.permute.xlu0 %1739
  %v1742 = vadd.f32 %v1735, %v1740
  %v1743 = vtanh.pop %v1742
  %1745 = vrot.lane.b32.xlu0 %v1743, 87
  %v1746 = vpop.permute.xlu0 %1745
  %v1747 = vrot.slane %v1746, 6
  %vm1748 = vcmask 711680
  %v1749 = vsel %vm1748, %v1747, %v1746
  %vm1751 = vcmask 1042104
  %vm1752 = vcmask 60418
  %vm1753 = vmor %vm1752, %vm1751
  %1754 = vst.msk [vmem:[%s7 + $0x4] sm:$0xf] %vm1753, %v1749
  %v1755 = vld [vmem:[%s785] sm:$0x3]
  %v1756 = vld [vmem:[%s788] sm:$0x3]
  %v1758 = vsel %vm93, %v1756, 0
  %1760 = vmatpush.msra.mxu0 0.0
  %1761 = vmatpush.msra.mxu0 0.0
  %1762 = vmatpush.msra.mxu0 0.0
  %1763 = vmatpush.msra.mxu0 0.0
  %1764 = vmatpush.msra.mxu0 0.0
  %1765 = vmatpush.msra.mxu0 0.0
  %1766 = vmatpush.msra.mxu0 0.0
  %1767 = vmatpush.msra.mxu0 0.0
  %1768 = vmatpush.msra.mxu0 0.0
  %1769 = vmatpush.msra.mxu0 0.0
  %1770 = vmatpush.msra.mxu0 0.0
  %1771 = vmatpush.msra.mxu0 0.0
  %1772 = vmatpush.msra.mxu0 0.0
  %1773 = vmatpush.msra.mxu0 0.0
  %1774 = vmatpush.msra.mxu0 0.0
  %1775 = vmatpush.msra.mxu0 %v1281
  %1776 = vmatmul.f32.gmra.mxu0 %v1758
  %v1777 = vpop.f32.mrf.mxu0
  %v1778 = vadd.f32 0.0, %v1777
  %1779 = vdwg.mxu0
  %v1781 = vsel %vm93, %v1755, 0
  %1783 = vmatpush.msra.mxu0 0.0
  %1784 = vmatpush.msra.mxu0 0.0
  %1785 = vmatpush.msra.mxu0 0.0
  %1786 = vmatpush.msra.mxu0 0.0
  %1787 = vmatpush.msra.mxu0 0.0
  %1788 = vmatpush.msra.mxu0 0.0
  %1789 = vmatpush.msra.mxu0 0.0
  %1790 = vmatpush.msra.mxu0 0.0
  %1791 = vmatpush.msra.mxu0 0.0
  %1792 = vmatpush.msra.mxu0 0.0
  %1793 = vmatpush.msra.mxu0 0.0
  %1794 = vmatpush.msra.mxu0 0.0
  %1795 = vmatpush.msra.mxu0 0.0
  %1796 = vmatpush.msra.mxu0 0.0
  %1797 = vmatpush.msra.mxu0 0.0
  %1798 = vmatpush.msra.mxu0 %v1307
  %1799 = vmatmul.f32.gmra.mxu0 %v1781
  %v1800 = vpop.f32.mrf.mxu0
  %v1801 = vadd.f32 %v1778, %v1800
  %1802 = vdwg.mxu0
  %v1803 = vld [vmem:[%s844] sm:$0x3]
  %v1805 = vsel %vm93, %v1803, 0
  %1807 = vmatpush.msra.mxu0 0.0
  %1808 = vmatpush.msra.mxu0 0.0
  %1809 = vmatpush.msra.mxu0 0.0
  %1810 = vmatpush.msra.mxu0 0.0
  %1811 = vmatpush.msra.mxu0 0.0
  %1812 = vmatpush.msra.mxu0 0.0
  %1813 = vmatpush.msra.mxu0 0.0
  %1814 = vmatpush.msra.mxu0 0.0
  %1815 = vmatpush.msra.mxu0 0.0
  %1816 = vmatpush.msra.mxu0 0.0
  %1817 = vmatpush.msra.mxu0 0.0
  %1818 = vmatpush.msra.mxu0 0.0
  %1819 = vmatpush.msra.mxu0 0.0
  %1820 = vmatpush.msra.mxu0 0.0
  %1821 = vmatpush.msra.mxu0 0.0
  %1822 = vmatpush.msra.mxu0 %v819
  %1823 = vmatmul.f32.gmra.mxu0 %v1805
  %v1824 = vpop.f32.mrf.mxu0
  %v1825 = vadd.f32 0.0, %v1824
  %1826 = vdwg.mxu0
  %v1827 = vadd.f32 %v1801, %v1825
  %v1828 = vld [vmem:[%s875] sm:$0x3]
  %v1830 = vsel %vm93, %v1828, 0
  %1832 = vmatpush.msra.mxu0 0.0
  %1833 = vmatpush.msra.mxu0 0.0
  %1834 = vmatpush.msra.mxu0 0.0
  %1835 = vmatpush.msra.mxu0 0.0
  %1836 = vmatpush.msra.mxu0 0.0
  %1837 = vmatpush.msra.mxu0 0.0
  %1838 = vmatpush.msra.mxu0 0.0
  %1839 = vmatpush.msra.mxu0 0.0
  %1840 = vmatpush.msra.mxu0 0.0
  %1841 = vmatpush.msra.mxu0 0.0
  %1842 = vmatpush.msra.mxu0 0.0
  %1843 = vmatpush.msra.mxu0 0.0
  %1844 = vmatpush.msra.mxu0 0.0
  %1845 = vmatpush.msra.mxu0 0.0
  %1846 = vmatpush.msra.mxu0 0.0
  %1847 = vmatpush.msra.mxu0 %v792
  %1848 = vmatmul.f32.gmra.mxu0 %v1830
  %v1849 = vpop.f32.mrf.mxu0
  %v1850 = vadd.f32 0.0, %v1849
  %1851 = vdwg.mxu0
  %v1852 = vadd.f32 %v1827, %v1850
  %v1853 = vld [vmem:[%s6] sm:$0x3]
  %1855 = vset.pattern.permute.xlu0 0
  %1856 = vperm.xlu0 %1855, %v1853
  %v1857 = vpop.permute.xlu0 %1856
  %v1859 = vadd.f32 %v1852, %v1857
  %v1860 = vtanh.pop %v1859
  %1862 = vrot.lane.b32.xlu0 %v1860, 8
  %v1863 = vpop.permute.xlu0 %1862
  %1865 = vst.msk [vmem:[%s7 + $0x6] sm:$0x3] %vm181, %v1863
  %v1866 = vld [vmem:[%s911] sm:$0x3]
  %v1867 = vld [vmem:[%s913] sm:$0x3]
  %v1869 = vsel %vm93, %v1867, 0
  %1871 = vmatpush.msra.mxu0 0.0
  %1872 = vmatpush.msra.mxu0 0.0
  %1873 = vmatpush.msra.mxu0 0.0
  %1874 = vmatpush.msra.mxu0 0.0
  %1875 = vmatpush.msra.mxu0 0.0
  %1876 = vmatpush.msra.mxu0 0.0
  %1877 = vmatpush.msra.mxu0 0.0
  %1878 = vmatpush.msra.mxu0 0.0
  %1879 = vmatpush.msra.mxu0 0.0
  %1880 = vmatpush.msra.mxu0 0.0
  %1881 = vmatpush.msra.mxu0 0.0
  %1882 = vmatpush.msra.mxu0 0.0
  %1883 = vmatpush.msra.mxu0 0.0
  %1884 = vmatpush.msra.mxu0 0.0
  %1885 = vmatpush.msra.mxu0 0.0
  %1886 = vmatpush.msra.mxu0 %v1307
  %1887 = vmatmul.f32.gmra.mxu0 %v1869
  %v1888 = vpop.f32.mrf.mxu0
  %v1889 = vadd.f32 0.0, %v1888
  %1890 = vdwg.mxu0
  %v1892 = vsel %vm93, %v1866, 0
  %1894 = vmatpush.msra.mxu0 0.0
  %1895 = vmatpush.msra.mxu0 0.0
  %1896 = vmatpush.msra.mxu0 0.0
  %1897 = vmatpush.msra.mxu0 0.0
  %1898 = vmatpush.msra.mxu0 0.0
  %1899 = vmatpush.msra.mxu0 0.0
  %1900 = vmatpush.msra.mxu0 0.0
  %1901 = vmatpush.msra.mxu0 0.0
  %1902 = vmatpush.msra.mxu0 0.0
  %1903 = vmatpush.msra.mxu0 0.0
  %1904 = vmatpush.msra.mxu0 0.0
  %1905 = vmatpush.msra.mxu0 0.0
  %1906 = vmatpush.msra.mxu0 0.0
  %1907 = vmatpush.msra.mxu0 0.0
  %1908 = vmatpush.msra.mxu0 0.0
  %1909 = vmatpush.msra.mxu0 %v1425
  %1910 = vmatmul.f32.gmra.mxu0 %v1892
  %v1911 = vpop.f32.mrf.mxu0
  %v1912 = vadd.f32 %v1889, %v1911
  %1913 = vdwg.mxu0
  %v1914 = vld [vmem:[%s965] sm:$0x3]
  %v1916 = vsel %vm93, %v1914, 0
  %1918 = vmatpush.msra.mxu0 0.0
  %1919 = vmatpush.msra.mxu0 0.0
  %1920 = vmatpush.msra.mxu0 0.0
  %1921 = vmatpush.msra.mxu0 0.0
  %1922 = vmatpush.msra.mxu0 0.0
  %1923 = vmatpush.msra.mxu0 0.0
  %1924 = vmatpush.msra.mxu0 0.0
  %1925 = vmatpush.msra.mxu0 0.0
  %1926 = vmatpush.msra.mxu0 0.0
  %1927 = vmatpush.msra.mxu0 0.0
  %1928 = vmatpush.msra.mxu0 0.0
  %1929 = vmatpush.msra.mxu0 0.0
  %1930 = vmatpush.msra.mxu0 0.0
  %1931 = vmatpush.msra.mxu0 0.0
  %1932 = vmatpush.msra.mxu0 0.0
  %1933 = vmatpush.msra.mxu0 %v940
  %1934 = vmatmul.f32.gmra.mxu0 %v1916
  %v1935 = vpop.f32.mrf.mxu0
  %v1936 = vadd.f32 0.0, %v1935
  %1937 = vdwg.mxu0
  %v1938 = vadd.f32 %v1912, %v1936
  %v1939 = vld [vmem:[%s995] sm:$0x3]
  %v1941 = vsel %vm93, %v1939, 0
  %1943 = vmatpush.msra.mxu0 0.0
  %1944 = vmatpush.msra.mxu0 0.0
  %1945 = vmatpush.msra.mxu0 0.0
  %1946 = vmatpush.msra.mxu0 0.0
  %1947 = vmatpush.msra.mxu0 0.0
  %1948 = vmatpush.msra.mxu0 0.0
  %1949 = vmatpush.msra.mxu0 0.0
  %1950 = vmatpush.msra.mxu0 0.0
  %1951 = vmatpush.msra.mxu0 0.0
  %1952 = vmatpush.msra.mxu0 0.0
  %1953 = vmatpush.msra.mxu0 0.0
  %1954 = vmatpush.msra.mxu0 0.0
  %1955 = vmatpush.msra.mxu0 0.0
  %1956 = vmatpush.msra.mxu0 0.0
  %1957 = vmatpush.msra.mxu0 0.0
  %1958 = vmatpush.msra.mxu0 %v819
  %1959 = vmatmul.f32.gmra.mxu0 %v1941
  %v1960 = vpop.f32.mrf.mxu0
  %v1961 = vadd.f32 0.0, %v1960
  %1962 = vdwg.mxu0
  %v1963 = vadd.f32 %v1938, %v1961
  %v1964 = vld [vmem:[%s6] sm:$0x3]
  %1966 = vset.pattern.permute.xlu0 0
  %1967 = vperm.xlu0 %1966, %v1964
  %v1968 = vpop.permute.xlu0 %1967
  %v1970 = vadd.f32 %v1963, %v1968
  %v1971 = vtanh.pop %v1970
  %1973 = vrot.lane.b32.xlu0 %v1971, 57
  %v1974 = vpop.permute.xlu0 %1973
  %vm1976 = vcmask 861640
  %1977 = vst.msk [vmem:[%s7 + $0x6] sm:$0x3] %vm1976, %v1974
  %v1978 = vld [vmem:[%s785] sm:$0x3]
  %v1979 = vld [vmem:[%s788] sm:$0x3]
  %v1981 = vsel %vm93, %v1979, 0
  %1983 = vmatpush.msra.mxu0 0.0
  %1984 = vmatpush.msra.mxu0 0.0
  %1985 = vmatpush.msra.mxu0 0.0
  %1986 = vmatpush.msra.mxu0 0.0
  %1987 = vmatpush.msra.mxu0 0.0
  %1988 = vmatpush.msra.mxu0 0.0
  %1989 = vmatpush.msra.mxu0 0.0
  %1990 = vmatpush.msra.mxu0 0.0
  %1991 = vmatpush.msra.mxu0 0.0
  %1992 = vmatpush.msra.mxu0 0.0
  %1993 = vmatpush.msra.mxu0 0.0
  %1994 = vmatpush.msra.mxu0 0.0
  %1995 = vmatpush.msra.mxu0 0.0
  %1996 = vmatpush.msra.mxu0 0.0
  %1997 = vmatpush.msra.mxu0 0.0
  %1998 = vmatpush.msra.mxu0 %v1307
  %1999 = vmatmul.f32.gmra.mxu0 %v1981
  %v2000 = vpop.f32.mrf.mxu0
  %v2001 = vadd.f32 0.0, %v2000
  %2002 = vdwg.mxu0
  %v2004 = vsel %vm93, %v1978, 0
  %2006 = vmatpush.msra.mxu0 0.0
  %2007 = vmatpush.msra.mxu0 0.0
  %2008 = vmatpush.msra.mxu0 0.0
  %2009 = vmatpush.msra.mxu0 0.0
  %2010 = vmatpush.msra.mxu0 0.0
  %2011 = vmatpush.msra.mxu0 0.0
  %2012 = vmatpush.msra.mxu0 0.0
  %2013 = vmatpush.msra.mxu0 0.0
  %2014 = vmatpush.msra.mxu0 0.0
  %2015 = vmatpush.msra.mxu0 0.0
  %2016 = vmatpush.msra.mxu0 0.0
  %2017 = vmatpush.msra.mxu0 0.0
  %2018 = vmatpush.msra.mxu0 0.0
  %2019 = vmatpush.msra.mxu0 0.0
  %2020 = vmatpush.msra.mxu0 0.0
  %2021 = vmatpush.msra.mxu0 %v1425
  %2022 = vmatmul.f32.gmra.mxu0 %v2004
  %v2023 = vpop.f32.mrf.mxu0
  %v2024 = vadd.f32 %v2001, %v2023
  %2025 = vdwg.mxu0
  %v2026 = vld [vmem:[%s844] sm:$0x3]
  %v2028 = vsel %vm93, %v2026, 0
  %2030 = vmatpush.msra.mxu0 0.0
  %2031 = vmatpush.msra.mxu0 0.0
  %2032 = vmatpush.msra.mxu0 0.0
  %2033 = vmatpush.msra.mxu0 0.0
  %2034 = vmatpush.msra.mxu0 0.0
  %2035 = vmatpush.msra.mxu0 0.0
  %2036 = vmatpush.msra.mxu0 0.0
  %2037 = vmatpush.msra.mxu0 0.0
  %2038 = vmatpush.msra.mxu0 0.0
  %2039 = vmatpush.msra.mxu0 0.0
  %2040 = vmatpush.msra.mxu0 0.0
  %2041 = vmatpush.msra.mxu0 0.0
  %2042 = vmatpush.msra.mxu0 0.0
  %2043 = vmatpush.msra.mxu0 0.0
  %2044 = vmatpush.msra.mxu0 0.0
  %2045 = vmatpush.msra.mxu0 %v940
  %2046 = vmatmul.f32.gmra.mxu0 %v2028
  %v2047 = vpop.f32.mrf.mxu0
  %v2048 = vadd.f32 0.0, %v2047
  %2049 = vdwg.mxu0
  %v2050 = vadd.f32 %v2024, %v2048
  %v2051 = vld [vmem:[%s875] sm:$0x3]
  %v2053 = vsel %vm93, %v2051, 0
  %2055 = vmatpush.msra.mxu0 0.0
  %2056 = vmatpush.msra.mxu0 0.0
  %2057 = vmatpush.msra.mxu0 0.0
  %2058 = vmatpush.msra.mxu0 0.0
  %2059 = vmatpush.msra.mxu0 0.0
  %2060 = vmatpush.msra.mxu0 0.0
  %2061 = vmatpush.msra.mxu0 0.0
  %2062 = vmatpush.msra.mxu0 0.0
  %2063 = vmatpush.msra.mxu0 0.0
  %2064 = vmatpush.msra.mxu0 0.0
  %2065 = vmatpush.msra.mxu0 0.0
  %2066 = vmatpush.msra.mxu0 0.0
  %2067 = vmatpush.msra.mxu0 0.0
  %2068 = vmatpush.msra.mxu0 0.0
  %2069 = vmatpush.msra.mxu0 0.0
  %2070 = vmatpush.msra.mxu0 %v819
  %2071 = vmatmul.f32.gmra.mxu0 %v2053
  %v2072 = vpop.f32.mrf.mxu0
  %v2073 = vadd.f32 0.0, %v2072
  %2074 = vdwg.mxu0
  %v2075 = vadd.f32 %v2050, %v2073
  %v2076 = vld [vmem:[%s6] sm:$0x3]
  %2078 = vset.pattern.permute.xlu0 0
  %2079 = vperm.xlu0 %2078, %v2076
  %v2080 = vpop.permute.xlu0 %2079
  %v2082 = vadd.f32 %v2075, %v2080
  %v2083 = vtanh.pop %v2082
  %2085 = vrot.lane.b32.xlu0 %v2083, 106
  %v2086 = vpop.permute.xlu0 %2085
  %v2087 = vrot.slane %v2086, 6
  %vm2088 = vcmask 867328
  %v2089 = vsel %vm2088, %v2087, %v2086
  %vm2091 = vcmask 1042256
  %vm2092 = vcmask 216066
  %vm2093 = vmor %vm2092, %vm2091
  %2094 = vst.msk [vmem:[%s7 + $0x6] sm:$0xf] %vm2093, %v2089
  %v2095 = vld [vmem:[%s911] sm:$0x3]
  %v2096 = vld [vmem:[%s913] sm:$0x3]
  %v2098 = vsel %vm93, %v2096, 0
  %2100 = vmatpush.msra.mxu0 0.0
  %2101 = vmatpush.msra.mxu0 0.0
  %2102 = vmatpush.msra.mxu0 0.0
  %2103 = vmatpush.msra.mxu0 0.0
  %2104 = vmatpush.msra.mxu0 0.0
  %2105 = vmatpush.msra.mxu0 0.0
  %2106 = vmatpush.msra.mxu0 0.0
  %2107 = vmatpush.msra.mxu0 0.0
  %2108 = vmatpush.msra.mxu0 0.0
  %2109 = vmatpush.msra.mxu0 0.0
  %2110 = vmatpush.msra.mxu0 0.0
  %2111 = vmatpush.msra.mxu0 0.0
  %2112 = vmatpush.msra.mxu0 0.0
  %2113 = vmatpush.msra.mxu0 0.0
  %2114 = vmatpush.msra.mxu0 0.0
  %2115 = vmatpush.msra.mxu0 %v1425
  %2116 = vmatmul.f32.gmra.mxu0 %v2098
  %v2117 = vpop.f32.mrf.mxu0
  %v2118 = vadd.f32 0.0, %v2117
  %2119 = vdwg.mxu0
  %v2121 = vsel %vm93, %v2095, 0
  %2123 = vmatpush.msra.mxu0 0.0
  %2124 = vmatpush.msra.mxu0 0.0
  %2125 = vmatpush.msra.mxu0 0.0
  %2126 = vmatpush.msra.mxu0 0.0
  %2127 = vmatpush.msra.mxu0 0.0
  %2128 = vmatpush.msra.mxu0 0.0
  %2129 = vmatpush.msra.mxu0 0.0
  %2130 = vmatpush.msra.mxu0 0.0
  %2131 = vmatpush.msra.mxu0 0.0
  %2132 = vmatpush.msra.mxu0 0.0
  %2133 = vmatpush.msra.mxu0 0.0
  %2134 = vmatpush.msra.mxu0 0.0
  %2135 = vmatpush.msra.mxu0 0.0
  %2136 = vmatpush.msra.mxu0 0.0
  %2137 = vmatpush.msra.mxu0 0.0
  %2138 = vmatpush.msra.mxu0 %v1661
  %2139 = vmatmul.f32.gmra.mxu0 %v2121
  %v2140 = vpop.f32.mrf.mxu0
  %v2141 = vadd.f32 %v2118, %v2140
  %2142 = vdwg.mxu0
  %v2143 = vld [vmem:[%s965] sm:$0x3]
  %v2145 = vsel %vm93, %v2143, 0
  %2147 = vmatpush.msra.mxu0 0.0
  %2148 = vmatpush.msra.mxu0 0.0
  %2149 = vmatpush.msra.mxu0 0.0
  %2150 = vmatpush.msra.mxu0 0.0
  %2151 = vmatpush.msra.mxu0 0.0
  %2152 = vmatpush.msra.mxu0 0.0
  %2153 = vmatpush.msra.mxu0 0.0
  %2154 = vmatpush.msra.mxu0 0.0
  %2155 = vmatpush.msra.mxu0 0.0
  %2156 = vmatpush.msra.mxu0 0.0
  %2157 = vmatpush.msra.mxu0 0.0
  %2158 = vmatpush.msra.mxu0 0.0
  %2159 = vmatpush.msra.mxu0 0.0
  %2160 = vmatpush.msra.mxu0 0.0
  %2161 = vmatpush.msra.mxu0 0.0
  %2162 = vmatpush.msra.mxu0 %v1180
  %2163 = vmatmul.f32.gmra.mxu0 %v2145
  %v2164 = vpop.f32.mrf.mxu0
  %v2165 = vadd.f32 0.0, %v2164
  %2166 = vdwg.mxu0
  %v2167 = vadd.f32 %v2141, %v2165
  %v2168 = vld [vmem:[%s995] sm:$0x3]
  %v2170 = vsel %vm93, %v2168, 0
  %2172 = vmatpush.msra.mxu0 0.0
  %2173 = vmatpush.msra.mxu0 0.0
  %2174 = vmatpush.msra.mxu0 0.0
  %2175 = vmatpush.msra.mxu0 0.0
  %2176 = vmatpush.msra.mxu0 0.0
  %2177 = vmatpush.msra.mxu0 0.0
  %2178 = vmatpush.msra.mxu0 0.0
  %2179 = vmatpush.msra.mxu0 0.0
  %2180 = vmatpush.msra.mxu0 0.0
  %2181 = vmatpush.msra.mxu0 0.0
  %2182 = vmatpush.msra.mxu0 0.0
  %2183 = vmatpush.msra.mxu0 0.0
  %2184 = vmatpush.msra.mxu0 0.0
  %2185 = vmatpush.msra.mxu0 0.0
  %2186 = vmatpush.msra.mxu0 0.0
  %2187 = vmatpush.msra.mxu0 %v940
  %2188 = vmatmul.f32.gmra.mxu0 %v2170
  %v2189 = vpop.f32.mrf.mxu0
  %v2190 = vadd.f32 0.0, %v2189
  %2191 = vdwg.mxu0
  %v2192 = vadd.f32 %v2167, %v2190
  %v2193 = vld [vmem:[%s6] sm:$0x3]
  %2195 = vset.pattern.permute.xlu0 0
  %2196 = vperm.xlu0 %2195, %v2193
  %v2197 = vpop.permute.xlu0 %2196
  %v2199 = vadd.f32 %v2192, %v2197
  %v2200 = vtanh.pop %v2199
  %2202 = vrot.lane.b32.xlu0 %v2200, 27
  %v2203 = vpop.permute.xlu0 %2202
  %vm2205 = vcmask 615640
  %2206 = vst.msk [vmem:[%s7 + $0x8] sm:$0x3] %vm2205, %v2203
  %v2207 = vld [vmem:[%s1274] sm:$0x3]
  %v2208 = vmul.f32 %v782, %v523
  %v2209 = vld [vmem:[%s1277] sm:$0x3]
  %2211 = vrot.lane.b32.xlu0 %v2208, 114
  %v2212 = vpop.permute.xlu0 %2211
  %v2215 = vsel %vm93, %v2209, 0
  %2217 = vmatpush.msra.mxu0 0.0
  %2218 = vmatpush.msra.mxu0 0.0
  %2219 = vmatpush.msra.mxu0 0.0
  %2220 = vmatpush.msra.mxu0 0.0
  %2221 = vmatpush.msra.mxu0 0.0
  %2222 = vmatpush.msra.mxu0 0.0
  %2223 = vmatpush.msra.mxu0 0.0
  %2224 = vmatpush.msra.mxu0 0.0
  %2225 = vmatpush.msra.mxu0 0.0
  %2226 = vmatpush.msra.mxu0 0.0
  %2227 = vmatpush.msra.mxu0 0.0
  %2228 = vmatpush.msra.mxu0 0.0
  %2229 = vmatpush.msra.mxu0 0.0
  %2230 = vmatpush.msra.mxu0 0.0
  %2231 = vmatpush.msra.mxu0 0.0
  %2232 = vmatpush.msra.mxu0 %v2212
  %2233 = vmatmul.f32.gmra.mxu0 %v2215
  %v2234 = vpop.f32.mrf.mxu0
  %v2235 = vadd.f32 0.0, %v2234
  %2236 = vdwg.mxu0
  %2237 = vrot.lane.b32.xlu0 %v781, 113
  %v2238 = vpop.permute.xlu0 %2237
  %v2241 = vsel %vm93, %v2207, 0
  %2243 = vmatpush.msra.mxu0 0.0
  %2244 = vmatpush.msra.mxu0 0.0
  %2245 = vmatpush.msra.mxu0 0.0
  %2246 = vmatpush.msra.mxu0 0.0
  %2247 = vmatpush.msra.mxu0 0.0
  %2248 = vmatpush.msra.mxu0 0.0
  %2249 = vmatpush.msra.mxu0 0.0
  %2250 = vmatpush.msra.mxu0 0.0
  %2251 = vmatpush.msra.mxu0 0.0
  %2252 = vmatpush.msra.mxu0 0.0
  %2253 = vmatpush.msra.mxu0 0.0
  %2254 = vmatpush.msra.mxu0 0.0
  %2255 = vmatpush.msra.mxu0 0.0
  %2256 = vmatpush.msra.mxu0 0.0
  %2257 = vmatpush.msra.mxu0 0.0
  %2258 = vmatpush.msra.mxu0 %v2238
  %2259 = vmatmul.f32.gmra.mxu0 %v2241
  %v2260 = vpop.f32.mrf.mxu0
  %v2261 = vadd.f32 %v2235, %v2260
  %2262 = vdwg.mxu0
  %v2263 = vld [vmem:[%s1332] sm:$0x3]
  %v2265 = vsel %vm93, %v2263, 0
  %2267 = vmatpush.msra.mxu0 0.0
  %2268 = vmatpush.msra.mxu0 0.0
  %2269 = vmatpush.msra.mxu0 0.0
  %2270 = vmatpush.msra.mxu0 0.0
  %2271 = vmatpush.msra.mxu0 0.0
  %2272 = vmatpush.msra.mxu0 0.0
  %2273 = vmatpush.msra.mxu0 0.0
  %2274 = vmatpush.msra.mxu0 0.0
  %2275 = vmatpush.msra.mxu0 0.0
  %2276 = vmatpush.msra.mxu0 0.0
  %2277 = vmatpush.msra.mxu0 0.0
  %2278 = vmatpush.msra.mxu0 0.0
  %2279 = vmatpush.msra.mxu0 0.0
  %2280 = vmatpush.msra.mxu0 0.0
  %2281 = vmatpush.msra.mxu0 0.0
  %2282 = vmatpush.msra.mxu0 %v1307
  %2283 = vmatmul.f32.gmra.mxu0 %v2265
  %v2284 = vpop.f32.mrf.mxu0
  %v2285 = vadd.f32 0.0, %v2284
  %2286 = vdwg.mxu0
  %v2287 = vadd.f32 %v2261, %v2285
  %v2288 = vld [vmem:[%s1358] sm:$0x3]
  %v2290 = vsel %vm93, %v2288, 0
  %2292 = vmatpush.msra.mxu0 0.0
  %2293 = vmatpush.msra.mxu0 0.0
  %2294 = vmatpush.msra.mxu0 0.0
  %2295 = vmatpush.msra.mxu0 0.0
  %2296 = vmatpush.msra.mxu0 0.0
  %2297 = vmatpush.msra.mxu0 0.0
  %2298 = vmatpush.msra.mxu0 0.0
  %2299 = vmatpush.msra.mxu0 0.0
  %2300 = vmatpush.msra.mxu0 0.0
  %2301 = vmatpush.msra.mxu0 0.0
  %2302 = vmatpush.msra.mxu0 0.0
  %2303 = vmatpush.msra.mxu0 0.0
  %2304 = vmatpush.msra.mxu0 0.0
  %2305 = vmatpush.msra.mxu0 0.0
  %2306 = vmatpush.msra.mxu0 0.0
  %2307 = vmatpush.msra.mxu0 %v1281
  %2308 = vmatmul.f32.gmra.mxu0 %v2290
  %v2309 = vpop.f32.mrf.mxu0
  %v2310 = vadd.f32 0.0, %v2309
  %2311 = vdwg.mxu0
  %v2312 = vadd.f32 %v2287, %v2310
  %v2313 = vld [vmem:[%s6] sm:$0x3]
  %2315 = vset.pattern.permute.xlu0 0
  %2316 = vperm.xlu0 %2315, %v2313
  %v2317 = vpop.permute.xlu0 %2316
  %v2319 = vadd.f32 %v2312, %v2317
  %v2320 = vtanh.pop %v2319
  %2322 = vrot.lane.b32.xlu0 %v2320, 76
  %v2323 = vpop.permute.xlu0 %2322
  %vm2325 = vcmask 1017440
  %2326 = vst.msk [vmem:[%s7 + $0x8] sm:$0x3] %vm2325, %v2323
  %v2327 = vld [vmem:[%s5] sm:$0x3]
  %v2328 = vld [vmem:[%s1399] sm:$0x3]
  %v2330 = vsel %vm93, %v2328, 0
  %2332 = vmatpush.msra.mxu0 0.0
  %2333 = vmatpush.msra.mxu0 0.0
  %2334 = vmatpush.msra.mxu0 0.0
  %2335 = vmatpush.msra.mxu0 0.0
  %2336 = vmatpush.msra.mxu0 0.0
  %2337 = vmatpush.msra.mxu0 0.0
  %2338 = vmatpush.msra.mxu0 0.0
  %2339 = vmatpush.msra.mxu0 0.0
  %2340 = vmatpush.msra.mxu0 0.0
  %2341 = vmatpush.msra.mxu0 0.0
  %2342 = vmatpush.msra.mxu0 0.0
  %2343 = vmatpush.msra.mxu0 0.0
  %2344 = vmatpush.msra.mxu0 0.0
  %2345 = vmatpush.msra.mxu0 0.0
  %2346 = vmatpush.msra.mxu0 0.0
  %2347 = vmatpush.msra.mxu0 %v2238
  %2348 = vmatmul.f32.gmra.mxu0 %v2330
  %v2349 = vpop.f32.mrf.mxu0
  %v2350 = vadd.f32 0.0, %v2349
  %2351 = vdwg.mxu0
  %2352 = vrot.lane.b32.xlu0 %v782, 113
  %v2353 = vpop.permute.xlu0 %2352
  %v2356 = vsel %vm93, %v2327, 0
  %2358 = vmatpush.msra.mxu0 0.0
  %2359 = vmatpush.msra.mxu0 0.0
  %2360 = vmatpush.msra.mxu0 0.0
  %2361 = vmatpush.msra.mxu0 0.0
  %2362 = vmatpush.msra.mxu0 0.0
  %2363 = vmatpush.msra.mxu0 0.0
  %2364 = vmatpush.msra.mxu0 0.0
  %2365 = vmatpush.msra.mxu0 0.0
  %2366 = vmatpush.msra.mxu0 0.0
  %2367 = vmatpush.msra.mxu0 0.0
  %2368 = vmatpush.msra.mxu0 0.0
  %2369 = vmatpush.msra.mxu0 0.0
  %2370 = vmatpush.msra.mxu0 0.0
  %2371 = vmatpush.msra.mxu0 0.0
  %2372 = vmatpush.msra.mxu0 0.0
  %2373 = vmatpush.msra.mxu0 %v2353
  %2374 = vmatmul.f32.gmra.mxu0 %v2356
  %v2375 = vpop.f32.mrf.mxu0
  %v2376 = vadd.f32 %v2350, %v2375
  %2377 = vdwg.mxu0
  %v2378 = vld [vmem:[%s1450] sm:$0x3]
  %v2380 = vsel %vm93, %v2378, 0
  %2382 = vmatpush.msra.mxu0 0.0
  %2383 = vmatpush.msra.mxu0 0.0
  %2384 = vmatpush.msra.mxu0 0.0
  %2385 = vmatpush.msra.mxu0 0.0
  %2386 = vmatpush.msra.mxu0 0.0
  %2387 = vmatpush.msra.mxu0 0.0
  %2388 = vmatpush.msra.mxu0 0.0
  %2389 = vmatpush.msra.mxu0 0.0
  %2390 = vmatpush.msra.mxu0 0.0
  %2391 = vmatpush.msra.mxu0 0.0
  %2392 = vmatpush.msra.mxu0 0.0
  %2393 = vmatpush.msra.mxu0 0.0
  %2394 = vmatpush.msra.mxu0 0.0
  %2395 = vmatpush.msra.mxu0 0.0
  %2396 = vmatpush.msra.mxu0 0.0
  %2397 = vmatpush.msra.mxu0 %v1425
  %2398 = vmatmul.f32.gmra.mxu0 %v2380
  %v2399 = vpop.f32.mrf.mxu0
  %v2400 = vadd.f32 0.0, %v2399
  %2401 = vdwg.mxu0
  %v2402 = vadd.f32 %v2376, %v2400
  %v2403 = vld [vmem:[%s1476] sm:$0x3]
  %v2405 = vsel %vm93, %v2403, 0
  %2407 = vmatpush.msra.mxu0 0.0
  %2408 = vmatpush.msra.mxu0 0.0
  %2409 = vmatpush.msra.mxu0 0.0
  %2410 = vmatpush.msra.mxu0 0.0
  %2411 = vmatpush.msra.mxu0 0.0
  %2412 = vmatpush.msra.mxu0 0.0
  %2413 = vmatpush.msra.mxu0 0.0
  %2414 = vmatpush.msra.mxu0 0.0
  %2415 = vmatpush.msra.mxu0 0.0
  %2416 = vmatpush.msra.mxu0 0.0
  %2417 = vmatpush.msra.mxu0 0.0
  %2418 = vmatpush.msra.mxu0 0.0
  %2419 = vmatpush.msra.mxu0 0.0
  %2420 = vmatpush.msra.mxu0 0.0
  %2421 = vmatpush.msra.mxu0 0.0
  %2422 = vmatpush.msra.mxu0 %v1307
  %2423 = vmatmul.f32.gmra.mxu0 %v2405
  %v2424 = vpop.f32.mrf.mxu0
  %v2425 = vadd.f32 0.0, %v2424
  %2426 = vdwg.mxu0
  %v2427 = vadd.f32 %v2402, %v2425
  %v2428 = vld [vmem:[%s6] sm:$0x3]
  %2430 = vset.pattern.permute.xlu0 0
  %2431 = vperm.xlu0 %2430, %v2428
  %v2432 = vpop.permute.xlu0 %2431
  %v2434 = vadd.f32 %v2427, %v2432
  %v2435 = vtanh.pop %v2434
  %2437 = vrot.lane.b32.xlu0 %v2435, 125
  %v2438 = vpop.permute.xlu0 %2437
  %v2439 = vrot.slane %v2438, 6
  %vm2440 = vcmask 1022976
  %v2441 = vsel %vm2440, %v2439, %v2438
  %vm2443 = vcmask 1042408
  %vm2444 = vcmask 371714
  %vm2445 = vmor %vm2444, %vm2443
  %2446 = vst.msk [vmem:[%s7 + $0x8] sm:$0xf] %vm2445, %v2441
  %v2447 = vld [vmem:[%s1274] sm:$0x3]
  %v2448 = vld [vmem:[%s1277] sm:$0x3]
  %v2450 = vsel %vm93, %v2448, 0
  %2452 = vmatpush.msra.mxu0 0.0
  %2453 = vmatpush.msra.mxu0 0.0
  %2454 = vmatpush.msra.mxu0 0.0
  %2455 = vmatpush.msra.mxu0 0.0
  %2456 = vmatpush.msra.mxu0 0.0
  %2457 = vmatpush.msra.mxu0 0.0
  %2458 = vmatpush.msra.mxu0 0.0
  %2459 = vmatpush.msra.mxu0 0.0
  %2460 = vmatpush.msra.mxu0 0.0
  %2461 = vmatpush.msra.mxu0 0.0
  %2462 = vmatpush.msra.mxu0 0.0
  %2463 = vmatpush.msra.mxu0 0.0
  %2464 = vmatpush.msra.mxu0 0.0
  %2465 = vmatpush.msra.mxu0 0.0
  %2466 = vmatpush.msra.mxu0 0.0
  %2467 = vmatpush.msra.mxu0 %v2238
  %2468 = vmatmul.f32.gmra.mxu0 %v2450
  %v2469 = vpop.f32.mrf.mxu0
  %v2470 = vadd.f32 0.0, %v2469
  %2471 = vdwg.mxu0
  %v2473 = vsel %vm93, %v2447, 0
  %2475 = vmatpush.msra.mxu0 0.0
  %2476 = vmatpush.msra.mxu0 0.0
  %2477 = vmatpush.msra.mxu0 0.0
  %2478 = vmatpush.msra.mxu0 0.0
  %2479 = vmatpush.msra.mxu0 0.0
  %2480 = vmatpush.msra.mxu0 0.0
  %2481 = vmatpush.msra.mxu0 0.0
  %2482 = vmatpush.msra.mxu0 0.0
  %2483 = vmatpush.msra.mxu0 0.0
  %2484 = vmatpush.msra.mxu0 0.0
  %2485 = vmatpush.msra.mxu0 0.0
  %2486 = vmatpush.msra.mxu0 0.0
  %2487 = vmatpush.msra.mxu0 0.0
  %2488 = vmatpush.msra.mxu0 0.0
  %2489 = vmatpush.msra.mxu0 0.0
  %2490 = vmatpush.msra.mxu0 %v2353
  %2491 = vmatmul.f32.gmra.mxu0 %v2473
  %v2492 = vpop.f32.mrf.mxu0
  %v2493 = vadd.f32 %v2470, %v2492
  %2494 = vdwg.mxu0
  %v2495 = vld [vmem:[%s1332] sm:$0x3]
  %v2497 = vsel %vm93, %v2495, 0
  %2499 = vmatpush.msra.mxu0 0.0
  %2500 = vmatpush.msra.mxu0 0.0
  %2501 = vmatpush.msra.mxu0 0.0
  %2502 = vmatpush.msra.mxu0 0.0
  %2503 = vmatpush.msra.mxu0 0.0
  %2504 = vmatpush.msra.mxu0 0.0
  %2505 = vmatpush.msra.mxu0 0.0
  %2506 = vmatpush.msra.mxu0 0.0
  %2507 = vmatpush.msra.mxu0 0.0
  %2508 = vmatpush.msra.mxu0 0.0
  %2509 = vmatpush.msra.mxu0 0.0
  %2510 = vmatpush.msra.mxu0 0.0
  %2511 = vmatpush.msra.mxu0 0.0
  %2512 = vmatpush.msra.mxu0 0.0
  %2513 = vmatpush.msra.mxu0 0.0
  %2514 = vmatpush.msra.mxu0 %v1425
  %2515 = vmatmul.f32.gmra.mxu0 %v2497
  %v2516 = vpop.f32.mrf.mxu0
  %v2517 = vadd.f32 0.0, %v2516
  %2518 = vdwg.mxu0
  %v2519 = vadd.f32 %v2493, %v2517
  %v2520 = vld [vmem:[%s1358] sm:$0x3]
  %v2522 = vsel %vm93, %v2520, 0
  %2524 = vmatpush.msra.mxu0 0.0
  %2525 = vmatpush.msra.mxu0 0.0
  %2526 = vmatpush.msra.mxu0 0.0
  %2527 = vmatpush.msra.mxu0 0.0
  %2528 = vmatpush.msra.mxu0 0.0
  %2529 = vmatpush.msra.mxu0 0.0
  %2530 = vmatpush.msra.mxu0 0.0
  %2531 = vmatpush.msra.mxu0 0.0
  %2532 = vmatpush.msra.mxu0 0.0
  %2533 = vmatpush.msra.mxu0 0.0
  %2534 = vmatpush.msra.mxu0 0.0
  %2535 = vmatpush.msra.mxu0 0.0
  %2536 = vmatpush.msra.mxu0 0.0
  %2537 = vmatpush.msra.mxu0 0.0
  %2538 = vmatpush.msra.mxu0 0.0
  %2539 = vmatpush.msra.mxu0 %v1307
  %2540 = vmatmul.f32.gmra.mxu0 %v2522
  %v2541 = vpop.f32.mrf.mxu0
  %v2542 = vadd.f32 0.0, %v2541
  %2543 = vdwg.mxu0
  %v2544 = vadd.f32 %v2519, %v2542
  %v2545 = vld [vmem:[%s6] sm:$0x3]
  %2547 = vset.pattern.permute.xlu0 0
  %2548 = vperm.xlu0 %2547, %v2545
  %v2549 = vpop.permute.xlu0 %2548
  %v2551 = vadd.f32 %v2544, %v2549
  %v2552 = vtanh.pop %v2551
  %2554 = vrot.lane.b32.xlu0 %v2552, 46
  %v2555 = vpop.permute.xlu0 %2554
  %vm2557 = vcmask 771440
  %2558 = vst.msk [vmem:[%s7 + $0xa] sm:$0x3] %vm2557, %v2555
  %v2559 = vmul.f32 %v781, %v655
  %v2560 = vld [vmem:[%s5] sm:$0x3]
  %v2561 = vld [vmem:[%s1399] sm:$0x3]
  %v2563 = vsel %vm93, %v2561, 0
  %2565 = vmatpush.msra.mxu0 0.0
  %2566 = vmatpush.msra.mxu0 0.0
  %2567 = vmatpush.msra.mxu0 0.0
  %2568 = vmatpush.msra.mxu0 0.0
  %2569 = vmatpush.msra.mxu0 0.0
  %2570 = vmatpush.msra.mxu0 0.0
  %2571 = vmatpush.msra.mxu0 0.0
  %2572 = vmatpush.msra.mxu0 0.0
  %2573 = vmatpush.msra.mxu0 0.0
  %2574 = vmatpush.msra.mxu0 0.0
  %2575 = vmatpush.msra.mxu0 0.0
  %2576 = vmatpush.msra.mxu0 0.0
  %2577 = vmatpush.msra.mxu0 0.0
  %2578 = vmatpush.msra.mxu0 0.0
  %2579 = vmatpush.msra.mxu0 0.0
  %2580 = vmatpush.msra.mxu0 %v2353
  %2581 = vmatmul.f32.gmra.mxu0 %v2563
  %v2582 = vpop.f32.mrf.mxu0
  %v2583 = vadd.f32 0.0, %v2582
  %2584 = vdwg.mxu0
  %2586 = vrot.lane.b32.xlu0 %v2559, 112
  %v2587 = vpop.permute.xlu0 %2586
  %v2590 = vsel %vm93, %v2560, 0
  %2592 = vmatpush.msra.mxu0 0.0
  %2593 = vmatpush.msra.mxu0 0.0
  %2594 = vmatpush.msra.mxu0 0.0
  %2595 = vmatpush.msra.mxu0 0.0
  %2596 = vmatpush.msra.mxu0 0.0
  %2597 = vmatpush.msra.mxu0 0.0
  %2598 = vmatpush.msra.mxu0 0.0
  %2599 = vmatpush.msra.mxu0 0.0
  %2600 = vmatpush.msra.mxu0 0.0
  %2601 = vmatpush.msra.mxu0 0.0
  %2602 = vmatpush.msra.mxu0 0.0
  %2603 = vmatpush.msra.mxu0 0.0
  %2604 = vmatpush.msra.mxu0 0.0
  %2605 = vmatpush.msra.mxu0 0.0
  %2606 = vmatpush.msra.mxu0 0.0
  %2607 = vmatpush.msra.mxu0 %v2587
  %2608 = vmatmul.f32.gmra.mxu0 %v2590
  %v2609 = vpop.f32.mrf.mxu0
  %v2610 = vadd.f32 %v2583, %v2609
  %2611 = vdwg.mxu0
  %v2612 = vld [vmem:[%s1450] sm:$0x3]
  %v2614 = vsel %vm93, %v2612, 0
  %2616 = vmatpush.msra.mxu0 0.0
  %2617 = vmatpush.msra.mxu0 0.0
  %2618 = vmatpush.msra.mxu0 0.0
  %2619 = vmatpush.msra.mxu0 0.0
  %2620 = vmatpush.msra.mxu0 0.0
  %2621 = vmatpush.msra.mxu0 0.0
  %2622 = vmatpush.msra.mxu0 0.0
  %2623 = vmatpush.msra.mxu0 0.0
  %2624 = vmatpush.msra.mxu0 0.0
  %2625 = vmatpush.msra.mxu0 0.0
  %2626 = vmatpush.msra.mxu0 0.0
  %2627 = vmatpush.msra.mxu0 0.0
  %2628 = vmatpush.msra.mxu0 0.0
  %2629 = vmatpush.msra.mxu0 0.0
  %2630 = vmatpush.msra.mxu0 0.0
  %2631 = vmatpush.msra.mxu0 %v1661
  %2632 = vmatmul.f32.gmra.mxu0 %v2614
  %v2633 = vpop.f32.mrf.mxu0
  %v2634 = vadd.f32 0.0, %v2633
  %2635 = vdwg.mxu0
  %v2636 = vadd.f32 %v2610, %v2634
  %v2637 = vld [vmem:[%s1476] sm:$0x3]
  %v2639 = vsel %vm93, %v2637, 0
  %2641 = vmatpush.msra.mxu0 0.0
  %2642 = vmatpush.msra.mxu0 0.0
  %2643 = vmatpush.msra.mxu0 0.0
  %2644 = vmatpush.msra.mxu0 0.0
  %2645 = vmatpush.msra.mxu0 0.0
  %2646 = vmatpush.msra.mxu0 0.0
  %2647 = vmatpush.msra.mxu0 0.0
  %2648 = vmatpush.msra.mxu0 0.0
  %2649 = vmatpush.msra.mxu0 0.0
  %2650 = vmatpush.msra.mxu0 0.0
  %2651 = vmatpush.msra.mxu0 0.0
  %2652 = vmatpush.msra.mxu0 0.0
  %2653 = vmatpush.msra.mxu0 0.0
  %2654 = vmatpush.msra.mxu0 0.0
  %2655 = vmatpush.msra.mxu0 0.0
  %2656 = vmatpush.msra.mxu0 %v1425
  %2657 = vmatmul.f32.gmra.mxu0 %v2639
  %v2658 = vpop.f32.mrf.mxu0
  %v2659 = vadd.f32 0.0, %v2658
  %2660 = vdwg.mxu0
  %v2661 = vadd.f32 %v2636, %v2659
  %v2662 = vld [vmem:[%s6] sm:$0x3]
  %2664 = vset.pattern.permute.xlu0 0
  %2665 = vperm.xlu0 %2664, %v2662
  %v2666 = vpop.permute.xlu0 %2665
  %v2668 = vadd.f32 %v2661, %v2666
  %v2669 = vtanh.pop %v2668
  %2671 = vrot.lane.b32.xlu0 %v2669, 95
  %v2672 = vpop.permute.xlu0 %2671
  %v2673 = vrot.slane %v2672, 6
  %vm2674 = vcmask 777216
  %v2675 = vsel %vm2674, %v2673, %v2672
  %vm2677 = vcmask 1042168
  %vm2678 = vcmask 125954
  %vm2679 = vmor %vm2678, %vm2677
  %2680 = vst.msk [vmem:[%s7 + $0xa] sm:$0xf] %vm2679, %v2675
  // Predicated region
  $region30: #{decoder_forward.1} parent=0 // pred_check
    _
  $region31: #{decoder_forward.1} parent=0 // pred_check_branch
    %2682 = sbr.rel (0) target = $region33
  $region32: #{decoder_forward.1} parent=0 // pred_region
    _
  $region33: #{decoder_forward.1} parent=0 // pred_fallthru
    _
  // Predicated region
  $region34: #{decoder_forward.1} parent=0 // pred_check
    _
  $region35: #{decoder_forward.1} parent=0 // pred_check_branch
    %2684 = sbr.rel (0) target = $region37
  $region36: #{decoder_forward.1} parent=0 // pred_region
    _
  $region37: #{decoder_forward.1} parent=0 // pred_fallthru
    _

</llo_original>
